<compile_context>
chip_gen: v5e
topology: v5e:2x2
jax: 0.10.0
libtpu: 0.0.40
codegen_flags: <defaults>
</compile_context>

<pallas_src>
import jax
import jax.numpy as jnp
from jax import lax
from jax.experimental import pallas as pl
from jax.experimental.pallas import tpu as pltpu

B = 2          # batch
H = W = 16     # input spatial size (1 input channel, per the module)


# --------------------------- wrapper-side helpers ---------------------------

def _pair_select(n_groups, width):
    """0/1 matrices selecting even / odd columns within each group of `width` rows."""
    half = width // 2
    q = jnp.arange(n_groups * half)
    p_even = (q // half) * width + (q % half) * 2
    cols = jnp.arange(n_groups * width)
    s_even = (cols[None, :] == p_even[:, None]).astype(jnp.float32)
    s_odd = (cols[None, :] == (p_even + 1)[:, None]).astype(jnp.float32)
    return s_even, s_odd


def fuse_params(params):
    (dw1_w, dw1_b, pw1_w, pw1_b, sq_w, sq_b, e1_w, e1_b,
     e3_w, e3_b, dwc_w, dwc_b, pwc_w, pwc_b, fc_w, fc_b) = params

    # layer1: depthwise(1->1) o pointwise(1->32)  ==  full 3x3 conv 1->32
    w1 = dw1_w * pw1_w                              # (9, 32)
    b1 = dw1_b @ pw1_w + pw1_b                      # (1, 32)

    # fire expand: embed the 1x1 branch into the centre tap of the 3x3 branch
    we = jnp.zeros((9, 16, 64), jnp.float32)
    we = we.at[:, :, 32:].set(e3_w)
    we = we.at[4, :, :32].set(e1_w)                 # tap (dh=1, dw=1) == centre
    we = we.reshape(9 * 16, 64)
    be = jnp.concatenate([e1_b, e3_b], axis=-1)     # (1, 64)

    # concat_conv: depthwise(64, groups=64) o pointwise(64->64) == full 3x3 conv 64->64
    wcc = (dwc_w[:, :, None] * pwc_w[None, :, :]).reshape(9 * 64, 64)
    bcc = dwc_b @ pwc_w + pwc_b                     # (1, 64)

    return w1, b1, sq_w, sq_b, we, be, wcc, bcc, fc_w, fc_b


# ------------------------------- wrapper ------------------------------------

def dsc_cnn_forward(x_nchw, params):
    b, _, hi, wi = x_nchw.shape
    h1, w1 = hi // 2, wi // 2
    h2, w2 = h1 // 2, w1 // 2

    x = jnp.transpose(x_nchw, (0, 2, 3, 1)).astype(jnp.float32)      # NCHW -> NHWC
    xpad = jnp.pad(x, ((0, 0), (1, 1), (1, 1), (0, 0)))
    # layer-1 im2col patches (input layout plumbing, done once in XLA) -> (b*hi*wi, 9)
    p1 = jnp.concatenate(
        [xpad[:, dh:dh + hi, dw:dw + wi, :] for dh in range(3) for dw in range(3)],
        axis=-1).reshape(b * hi * wi, 9)

    w1f, b1f, sq_w, sq_b, we, be, wcc, bcc, fc_w, fc_b = fuse_params(params)
    s1e, s1o = _pair_select(b * h1, wi)      # (b*h1*w1, b*h1*wi) = (128, 256)
    s2e, s2o = _pair_select(b * h2, w1)      # (b*h2*w2, b*h2*w1) = (32, 64)
    nsp = h2 * w2
    avg = (jnp.arange(b * nsp)[None, :] // nsp ==
           jnp.arange(b)[:, None]).astype(jnp.float32) / nsp          # (b, b*nsp)

    def kernel(p1_ref, w1_ref, b1_ref, sqw_ref, sqb_ref, we_ref, be_ref,
               wcc_ref, bcc_ref, fcw_ref, fcb_ref,
               s1e_ref, s1o_ref, s2e_ref, s2o_ref, avg_ref,
               out_ref, padB, padC):

        def mm(a, bb):
            return jnp.dot(a, bb, preferred_element_type=jnp.float32)

        def relu(v):
            return jnp.maximum(v, 0.0)

        def pool2x2(y_flat, h, w, c, se_ref, so_ref):
            # Rows of y_flat are ordered (batch, row, col).  Row pairs are pooled via a
            # tile-aligned reshape + max (layout no-op); column pairs via 0/1 selection
            # matmuls (no scratch, no strided sublane loads).
            y = jnp.max(y_flat.reshape(b * h // 2, 2, w, c), axis=1)
            z = y.reshape(b * (h // 2) * w, c)
            return jnp.maximum(mm(se_ref[...], z), mm(so_ref[...], z))

        def im2col3x3(y_flat, h, w, c, pad_ref):
            pad_ref[...] = jnp.zeros_like(pad_ref)
            pad_ref[:, 1:h + 1, 1:w + 1, :] = y_flat.reshape(b, h, w, c)
            pats = jnp.concatenate(
                [pad_ref[:, dh:dh + h, dw:dw + w, :]
                 for dh in range(3) for dw in range(3)], axis=-1)
            return pats.reshape(b * h * w, 9 * c)

        # ---- layer1: fused depthwise3x3 + pointwise1x1 (1->32), then ReLU ----
        y = relu(mm(p1_ref[...], w1_ref[...]) + b1_ref[...])          # (b*hi*wi, 32)

        # ---- pool1: MaxPool2d(2, 2) ----
        y = pool2x2(y, hi, wi, 32, s1e_ref, s1o_ref)                  # (b*h1*w1, 32)

        # ---- FireModule(32, 16, 32): squeeze -> ReLU -> fused expand -> ReLU ----
        sq = relu(mm(y, sqw_ref[...]) + sqb_ref[...])                 # (b*h1*w1, 16)
        fire = relu(mm(im2col3x3(sq, h1, w1, 16, padB), we_ref[...]) + be_ref[...])

        # ---- concat_conv: fused depthwise3x3 + pointwise1x1 (64->64), then ReLU ----
        y = relu(mm(im2col3x3(fire, h1, w1, 64, padC), wcc_ref[...]) + bcc_ref[...])

        # ---- pool2: MaxPool2d(2, 2) ----
        y = pool2x2(y, h1, w1, 64, s2e_ref, s2o_ref)                  # (b*h2*w2, 64)

        # ---- dropout(p=0.5): identity in eval mode ----
        # TODO(synk): training-mode stochastic dropout (pltpu.prng_*) not implemented.

        # ---- AdaptiveAvgPool2d((1,1)) as averaging matmul, flatten, fc ----
        feat = mm(avg_ref[...], y)                                    # (b, 64)
        out_ref[...] = mm(feat, fcw_ref[...]) + fcb_ref[...]          # (b, 4)

    vmem = lambda: pl.BlockSpec(memory_space=pltpu.MemorySpace.VMEM)
    out = pl.pallas_call(
        kernel,
        out_shape=jax.ShapeDtypeStruct((b, 4), jnp.float32),
        in_specs=[vmem() for _ in range(16)],
        out_specs=vmem(),
        scratch_shapes=[
            pltpu.VMEM((b, h1 + 2, w1 + 2, 16), jnp.float32),   # fire expand3x3 pad
            pltpu.VMEM((b, h1 + 2, w1 + 2, 64), jnp.float32),   # concat_conv pad
        ],
    )(p1, w1f, b1f, sq_w, sq_b, we, be, wcc, bcc, fc_w, fc_b,
      s1e, s1o, s2e, s2o, avg)
    return out                                                        # (B, 4)


# --------------------------- parameter init ---------------------------------

def init_params(key):
    ks = jax.random.split(key, 16)

    def norm(k, shape, scale=0.5):
        return (scale * jax.random.normal(k, shape)).astype(jnp.float32)

    dw1_w = norm(ks[0], (9, 1));      dw1_b = norm(ks[1], (1, 1))
    pw1_w = norm(ks[2], (1, 32));     pw1_b = norm(ks[3], (1, 32))
    sq_w = norm(ks[4], (32, 16));     sq_b = norm(ks[5], (1, 16))
    e1_w = norm(ks[6], (16, 32));     e1_b = norm(ks[7], (1, 32))
    e3_w = norm(ks[8], (9, 16, 32));  e3_b = norm(ks[9], (1, 32))
    dwc_w = norm(ks[10], (9, 64));    dwc_b = norm(ks[11], (1, 64))
    pwc_w = norm(ks[12], (64, 64));   pwc_b = norm(ks[13], (1, 64))
    fc_w = norm(ks[14], (64, 4));     fc_b = norm(ks[15], (1, 4))
    return (dw1_w, dw1_b, pw1_w, pw1_b, sq_w, sq_b, e1_w, e1_b,
            e3_w, e3_b, dwc_w, dwc_b, pwc_w, pwc_b, fc_w, fc_b)


# --------------------- pure-JAX reference (NCHW, like PyTorch) --------------

def reference_forward(x_nchw, params):
    (dw1_w, dw1_b, pw1_w, pw1_b, sq_w, sq_b, e1_w, e1_b,
     e3_w, e3_b, dwc_w, dwc_b, pwc_w, pwc_b, fc_w, fc_b) = params

    def conv(x, w_oihw, bias, padding, groups=1):
        y = lax.conv_general_dilated(
            x, w_oihw, window_strides=(1, 1),
            padding=((padding, padding), (padding, padding)),
            dimension_numbers=("NCHW", "OIHW", "NCHW"),
            feature_group_count=groups)
        return y + bias.reshape(1, -1, 1, 1)

    def maxpool(x):
        return lax.reduce_window(x, -jnp.inf, lax.max,
                                 (1, 1, 2, 2), (1, 1, 2, 2), "VALID")

    y = conv(x_nchw, dw1_w.T.reshape(1, 1, 3, 3), dw1_b.reshape(-1), 1)
    y = conv(y, pw1_w.T.reshape(32, 1, 1, 1), pw1_b.reshape(-1), 0)
    y = jax.nn.relu(y)
    y = maxpool(y)
    s = jax.nn.relu(conv(y, sq_w.T.reshape(16, 32, 1, 1), sq_b.reshape(-1), 0))
    a = jax.nn.relu(conv(s, e1_w.T.reshape(32, 16, 1, 1), e1_b.reshape(-1), 0))
    c = jax.nn.relu(conv(s, e3_w.reshape(3, 3, 16, 32).transpose(3, 2, 0, 1),
                         e3_b.reshape(-1), 1))
    y = jnp.concatenate([a, c], axis=1)
    y = conv(y, dwc_w.T.reshape(64, 1, 3, 3), dwc_b.reshape(-1), 1, groups=64)
    y = conv(y, pwc_w.T.reshape(64, 64, 1, 1), pwc_b.reshape(-1), 0)
    y = jax.nn.relu(y)
    y = maxpool(y)
    feat = jnp.mean(y, axis=(2, 3))                  # dropout = identity (eval)
    return feat @ fc_w + fc_b


# ------------------------------------ main -----------------------------------

if __name__ == "__main__":
    key = jax.random.PRNGKey(0)
    kx, kp = jax.random.split(key)
    x = jax.random.normal(kx, (B, 1, H, W), dtype=jnp.float32)
    params = init_params(kp)

    out = dsc_cnn_forward(x, params)
    out = jax.block_until_ready(out)
    assert out.shape == (B, 4)

    ref = reference_forward(x, params)
    # tolerance accommodates MXU default-precision / reassociation differences between
    # the fused-matmul kernel path and the conv-based f32 reference.
    assert jnp.allclose(out, ref, atol=1e-2, rtol=1e-2), (out, ref)

    print("KERNEL_OK")
</pallas_src>

<mosaic_0001>
module attributes {stable_mosaic.version = 11 : i64} {
  func.func @kernel(%arg0: memref<512x9xf32, #tpu.memory_space<vmem>>, %arg1: memref<9x32xf32, #tpu.memory_space<vmem>>, %arg2: memref<1x32xf32, #tpu.memory_space<vmem>>, %arg3: memref<32x16xf32, #tpu.memory_space<vmem>>, %arg4: memref<1x16xf32, #tpu.memory_space<vmem>>, %arg5: memref<144x64xf32, #tpu.memory_space<vmem>>, %arg6: memref<1x64xf32, #tpu.memory_space<vmem>>, %arg7: memref<576x64xf32, #tpu.memory_space<vmem>>, %arg8: memref<1x64xf32, #tpu.memory_space<vmem>>, %arg9: memref<64x4xf32, #tpu.memory_space<vmem>>, %arg10: memref<1x4xf32, #tpu.memory_space<vmem>>, %arg11: memref<128x256xf32, #tpu.memory_space<vmem>>, %arg12: memref<128x256xf32, #tpu.memory_space<vmem>>, %arg13: memref<32x64xf32, #tpu.memory_space<vmem>>, %arg14: memref<32x64xf32, #tpu.memory_space<vmem>>, %arg15: memref<2x32xf32, #tpu.memory_space<vmem>>, %arg16: memref<2x4xf32, #tpu.memory_space<vmem>>, %arg17: memref<2x10x10x16xf32, #tpu.memory_space<vmem>>, %arg18: memref<2x10x10x64xf32, #tpu.memory_space<vmem>>) attributes {dimension_semantics = [], scalar_prefetch = 0 : i64, scratch_operands = 2 : i64, tpu.core_type = #tpu.core_type<tc>} {
    %c0 = arith.constant 0 : index
    %c0_0 = arith.constant 0 : index
    %0 = vector.load %arg0[%c0, %c0_0] : memref<512x9xf32, #tpu.memory_space<vmem>>, vector<512x9xf32>
    %c0_1 = arith.constant 0 : index
    %c0_2 = arith.constant 0 : index
    %1 = vector.load %arg1[%c0_1, %c0_2] : memref<9x32xf32, #tpu.memory_space<vmem>>, vector<9x32xf32>
    %cst = arith.constant dense<0.000000e+00> : vector<512x32xf32>
    %2 = tpu.matmul %0, %1, %cst {dimension_numbers = #tpu.dot_dimension_numbers<[1], [0], [0], [1], [0, 0, 1, 1], [], []>} : vector<512x9xf32>, vector<9x32xf32>, vector<512x32xf32> -> vector<512x32xf32>
    %c0_3 = arith.constant 0 : index
    %c0_4 = arith.constant 0 : index
    %3 = vector.load %arg2[%c0_3, %c0_4] : memref<1x32xf32, #tpu.memory_space<vmem>>, vector<1x32xf32>
    %4 = vector.broadcast %3 : vector<1x32xf32> to vector<512x32xf32>
    %5 = arith.addf %2, %4 : vector<512x32xf32>
    %cst_5 = arith.constant 0.000000e+00 : f32
    %6 = vector.broadcast %cst_5 : f32 to vector<512x32xf32>
    %7 = arith.maximumf %5, %6 : vector<512x32xf32>
    %8 = vector.shape_cast %7 : vector<512x32xf32> to vector<16x2x16x32xf32>
    %cst_6 = arith.constant dense<0xFF800000> : vector<16x16x32xf32>
    %9 = vector.multi_reduction <maximumf>, %8, %cst_6 [1] : vector<16x2x16x32xf32> to vector<16x16x32xf32>
    %10 = vector.shape_cast %9 : vector<16x16x32xf32> to vector<256x32xf32>
    %c0_7 = arith.constant 0 : index
    %c0_8 = arith.constant 0 : index
    %11 = vector.load %arg11[%c0_7, %c0_8] : memref<128x256xf32, #tpu.memory_space<vmem>>, vector<128x256xf32>
    %cst_9 = arith.constant dense<0.000000e+00> : vector<128x32xf32>
    %12 = tpu.matmul %11, %10, %cst_9 {dimension_numbers = #tpu.dot_dimension_numbers<[1], [0], [0], [1], [0, 0, 1, 1], [], []>} : vector<128x256xf32>, vector<256x32xf32>, vector<128x32xf32> -> vector<128x32xf32>
    %c0_10 = arith.constant 0 : index
    %c0_11 = arith.constant 0 : index
    %13 = vector.load %arg12[%c0_10, %c0_11] : memref<128x256xf32, #tpu.memory_space<vmem>>, vector<128x256xf32>
    %cst_12 = arith.constant dense<0.000000e+00> : vector<128x32xf32>
    %14 = tpu.matmul %13, %10, %cst_12 {dimension_numbers = #tpu.dot_dimension_numbers<[1], [0], [0], [1], [0, 0, 1, 1], [], []>} : vector<128x256xf32>, vector<256x32xf32>, vector<128x32xf32> -> vector<128x32xf32>
    %15 = arith.maximumf %12, %14 : vector<128x32xf32>
    %c0_13 = arith.constant 0 : index
    %c0_14 = arith.constant 0 : index
    %16 = vector.load %arg3[%c0_13, %c0_14] : memref<32x16xf32, #tpu.memory_space<vmem>>, vector<32x16xf32>
    %cst_15 = arith.constant dense<0.000000e+00> : vector<128x16xf32>
    %17 = tpu.matmul %15, %16, %cst_15 {dimension_numbers = #tpu.dot_dimension_numbers<[1], [0], [0], [1], [0, 0, 1, 1], [], []>} : vector<128x32xf32>, vector<32x16xf32>, vector<128x16xf32> -> vector<128x16xf32>
    %c0_16 = arith.constant 0 : index
    %c0_17 = arith.constant 0 : index
    %18 = vector.load %arg4[%c0_16, %c0_17] : memref<1x16xf32, #tpu.memory_space<vmem>>, vector<1x16xf32>
    %19 = vector.broadcast %18 : vector<1x16xf32> to vector<128x16xf32>
    %20 = arith.addf %17, %19 : vector<128x16xf32>
    %cst_18 = arith.constant 0.000000e+00 : f32
    %21 = vector.broadcast %cst_18 : f32 to vector<128x16xf32>
    %22 = arith.maximumf %20, %21 : vector<128x16xf32>
    %cst_19 = arith.constant 0.000000e+00 : f32
    %23 = vector.broadcast %cst_19 : f32 to vector<2x10x10x16xf32>
    %c0_20 = arith.constant 0 : index
    %c0_21 = arith.constant 0 : index
    %c0_22 = arith.constant 0 : index
    %c0_23 = arith.constant 0 : index
    %24 = vector.load %arg17[%c0_20, %c0_21, %c0_22, %c0_23] : memref<2x10x10x16xf32, #tpu.memory_space<vmem>>, vector<2x10x10x16xf32>
    tpu.vector_store %arg17[%c0_20, %c0_21, %c0_22, %c0_23], %23 {strides = array<i32>} : memref<2x10x10x16xf32, #tpu.memory_space<vmem>>, vector<2x10x10x16xf32>,
    %25 = vector.shape_cast %22 : vector<128x16xf32> to vector<2x8x8x16xf32>
    %c0_24 = arith.constant 0 : index
    %c1 = arith.constant 1 : index
    %c1_25 = arith.constant 1 : index
    %c0_26 = arith.constant 0 : index
    %26 = vector.load %arg17[%c0_24, %c1, %c1_25, %c0_26] : memref<2x10x10x16xf32, #tpu.memory_space<vmem>>, vector<2x8x8x16xf32>
    tpu.vector_store %arg17[%c0_24, %c1, %c1_25, %c0_26], %25 {strides = array<i32>} : memref<2x10x10x16xf32, #tpu.memory_space<vmem>>, vector<2x8x8x16xf32>,
    %c0_27 = arith.constant 0 : index
    %c0_28 = arith.constant 0 : index
    %c0_29 = arith.constant 0 : index
    %c0_30 = arith.constant 0 : index
    %27 = vector.load %arg17[%c0_27, %c0_28, %c0_29, %c0_30] : memref<2x10x10x16xf32, #tpu.memory_space<vmem>>, vector<2x8x8x16xf32>
    %c0_31 = arith.constant 0 : index
    %c0_32 = arith.constant 0 : index
    %c1_33 = arith.constant 1 : index
    %c0_34 = arith.constant 0 : index
    %28 = vector.load %arg17[%c0_31, %c0_32, %c1_33, %c0_34] : memref<2x10x10x16xf32, #tpu.memory_space<vmem>>, vector<2x8x8x16xf32>
    %c0_35 = arith.constant 0 : index
    %c0_36 = arith.constant 0 : index
    %c2 = arith.constant 2 : index
    %c0_37 = arith.constant 0 : index
    %29 = vector.load %arg17[%c0_35, %c0_36, %c2, %c0_37] : memref<2x10x10x16xf32, #tpu.memory_space<vmem>>, vector<2x8x8x16xf32>
    %c0_38 = arith.constant 0 : index
    %c1_39 = arith.constant 1 : index
    %c0_40 = arith.constant 0 : index
    %c0_41 = arith.constant 0 : index
    %30 = vector.load %arg17[%c0_38, %c1_39, %c0_40, %c0_41] : memref<2x10x10x16xf32, #tpu.memory_space<vmem>>, vector<2x8x8x16xf32>
    %c0_42 = arith.constant 0 : index
    %c1_43 = arith.constant 1 : index
    %c1_44 = arith.constant 1 : index
    %c0_45 = arith.constant 0 : index
    %31 = vector.load %arg17[%c0_42, %c1_43, %c1_44, %c0_45] : memref<2x10x10x16xf32, #tpu.memory_space<vmem>>, vector<2x8x8x16xf32>
    %c0_46 = arith.constant 0 : index
    %c1_47 = arith.constant 1 : index
    %c2_48 = arith.constant 2 : index
    %c0_49 = arith.constant 0 : index
    %32 = vector.load %arg17[%c0_46, %c1_47, %c2_48, %c0_49] : memref<2x10x10x16xf32, #tpu.memory_space<vmem>>, vector<2x8x8x16xf32>
    %c0_50 = arith.constant 0 : index
    %c2_51 = arith.constant 2 : index
    %c0_52 = arith.constant 0 : index
    %c0_53 = arith.constant 0 : index
    %33 = vector.load %arg17[%c0_50, %c2_51, %c0_52, %c0_53] : memref<2x10x10x16xf32, #tpu.memory_space<vmem>>, vector<2x8x8x16xf32>
    %c0_54 = arith.constant 0 : index
    %c2_55 = arith.constant 2 : index
    %c1_56 = arith.constant 1 : index
    %c0_57 = arith.constant 0 : index
    %34 = vector.load %arg17[%c0_54, %c2_55, %c1_56, %c0_57] : memref<2x10x10x16xf32, #tpu.memory_space<vmem>>, vector<2x8x8x16xf32>
    %c0_58 = arith.constant 0 : index
    %c2_59 = arith.constant 2 : index
    %c2_60 = arith.constant 2 : index
    %c0_61 = arith.constant 0 : index
    %35 = vector.load %arg17[%c0_58, %c2_59, %c2_60, %c0_61] : memref<2x10x10x16xf32, #tpu.memory_space<vmem>>, vector<2x8x8x16xf32>
    %36 = tpu.concatenate %27, %28, %29, %30, %31, %32, %33, %34, %35 in 3 : vector<2x8x8x16xf32>, vector<2x8x8x16xf32>, vector<2x8x8x16xf32>, vector<2x8x8x16xf32>, vector<2x8x8x16xf32>, vector<2x8x8x16xf32>, vector<2x8x8x16xf32>, vector<2x8x8x16xf32>, vector<2x8x8x16xf32> -> vector<2x8x8x144xf32>
    %37 = vector.shape_cast %36 : vector<2x8x8x144xf32> to vector<128x144xf32>
    %c0_62 = arith.constant 0 : index
    %c0_63 = arith.constant 0 : index
    %38 = vector.load %arg5[%c0_62, %c0_63] : memref<144x64xf32, #tpu.memory_space<vmem>>, vector<144x64xf32>
    %cst_64 = arith.constant dense<0.000000e+00> : vector<128x64xf32>
    %39 = tpu.matmul %37, %38, %cst_64 {dimension_numbers = #tpu.dot_dimension_numbers<[1], [0], [0], [1], [0, 0, 1, 1], [], []>} : vector<128x144xf32>, vector<144x64xf32>, vector<128x64xf32> -> vector<128x64xf32>
    %c0_65 = arith.constant 0 : index
    %c0_66 = arith.constant 0 : index
    %40 = vector.load %arg6[%c0_65, %c0_66] : memref<1x64xf32, #tpu.memory_space<vmem>>, vector<1x64xf32>
    %41 = vector.broadcast %40 : vector<1x64xf32> to vector<128x64xf32>
    %42 = arith.addf %39, %41 : vector<128x64xf32>
    %cst_67 = arith.constant 0.000000e+00 : f32
    %43 = vector.broadcast %cst_67 : f32 to vector<128x64xf32>
    %44 = arith.maximumf %42, %43 : vector<128x64xf32>
    %cst_68 = arith.constant 0.000000e+00 : f32
    %45 = vector.broadcast %cst_68 : f32 to vector<2x10x10x64xf32>
    %c0_69 = arith.constant 0 : index
    %c0_70 = arith.constant 0 : index
    %c0_71 = arith.constant 0 : index
    %c0_72 = arith.constant 0 : index
    %46 = vector.load %arg18[%c0_69, %c0_70, %c0_71, %c0_72] : memref<2x10x10x64xf32, #tpu.memory_space<vmem>>, vector<2x10x10x64xf32>
    tpu.vector_store %arg18[%c0_69, %c0_70, %c0_71, %c0_72], %45 {strides = array<i32>} : memref<2x10x10x64xf32, #tpu.memory_space<vmem>>, vector<2x10x10x64xf32>,
    %47 = vector.shape_cast %44 : vector<128x64xf32> to vector<2x8x8x64xf32>
    %c0_73 = arith.constant 0 : index
    %c1_74 = arith.constant 1 : index
    %c1_75 = arith.constant 1 : index
    %c0_76 = arith.constant 0 : index
    %48 = vector.load %arg18[%c0_73, %c1_74, %c1_75, %c0_76] : memref<2x10x10x64xf32, #tpu.memory_space<vmem>>, vector<2x8x8x64xf32>
    tpu.vector_store %arg18[%c0_73, %c1_74, %c1_75, %c0_76], %47 {strides = array<i32>} : memref<2x10x10x64xf32, #tpu.memory_space<vmem>>, vector<2x8x8x64xf32>,
    %c0_77 = arith.constant 0 : index
    %c0_78 = arith.constant 0 : index
    %c0_79 = arith.constant 0 : index
    %c0_80 = arith.constant 0 : index
    %49 = vector.load %arg18[%c0_77, %c0_78, %c0_79, %c0_80] : memref<2x10x10x64xf32, #tpu.memory_space<vmem>>, vector<2x8x8x64xf32>
    %c0_81 = arith.constant 0 : index
    %c0_82 = arith.constant 0 : index
    %c1_83 = arith.constant 1 : index
    %c0_84 = arith.constant 0 : index
    %50 = vector.load %arg18[%c0_81, %c0_82, %c1_83, %c0_84] : memref<2x10x10x64xf32, #tpu.memory_space<vmem>>, vector<2x8x8x64xf32>
    %c0_85 = arith.constant 0 : index
    %c0_86 = arith.constant 0 : index
    %c2_87 = arith.constant 2 : index
    %c0_88 = arith.constant 0 : index
    %51 = vector.load %arg18[%c0_85, %c0_86, %c2_87, %c0_88] : memref<2x10x10x64xf32, #tpu.memory_space<vmem>>, vector<2x8x8x64xf32>
    %c0_89 = arith.constant 0 : index
    %c1_90 = arith.constant 1 : index
    %c0_91 = arith.constant 0 : index
    %c0_92 = arith.constant 0 : index
    %52 = vector.load %arg18[%c0_89, %c1_90, %c0_91, %c0_92] : memref<2x10x10x64xf32, #tpu.memory_space<vmem>>, vector<2x8x8x64xf32>
    %c0_93 = arith.constant 0 : index
    %c1_94 = arith.constant 1 : index
    %c1_95 = arith.constant 1 : index
    %c0_96 = arith.constant 0 : index
    %53 = vector.load %arg18[%c0_93, %c1_94, %c1_95, %c0_96] : memref<2x10x10x64xf32, #tpu.memory_space<vmem>>, vector<2x8x8x64xf32>
    %c0_97 = arith.constant 0 : index
    %c1_98 = arith.constant 1 : index
    %c2_99 = arith.constant 2 : index
    %c0_100 = arith.constant 0 : index
    %54 = vector.load %arg18[%c0_97, %c1_98, %c2_99, %c0_100] : memref<2x10x10x64xf32, #tpu.memory_space<vmem>>, vector<2x8x8x64xf32>
    %c0_101 = arith.constant 0 : index
    %c2_102 = arith.constant 2 : index
    %c0_103 = arith.constant 0 : index
    %c0_104 = arith.constant 0 : index
    %55 = vector.load %arg18[%c0_101, %c2_102, %c0_103, %c0_104] : memref<2x10x10x64xf32, #tpu.memory_space<vmem>>, vector<2x8x8x64xf32>
    %c0_105 = arith.constant 0 : index
    %c2_106 = arith.constant 2 : index
    %c1_107 = arith.constant 1 : index
    %c0_108 = arith.constant 0 : index
    %56 = vector.load %arg18[%c0_105, %c2_106, %c1_107, %c0_108] : memref<2x10x10x64xf32, #tpu.memory_space<vmem>>, vector<2x8x8x64xf32>
    %c0_109 = arith.constant 0 : index
    %c2_110 = arith.constant 2 : index
    %c2_111 = arith.constant 2 : index
    %c0_112 = arith.constant 0 : index
    %57 = vector.load %arg18[%c0_109, %c2_110, %c2_111, %c0_112] : memref<2x10x10x64xf32, #tpu.memory_space<vmem>>, vector<2x8x8x64xf32>
    %58 = tpu.concatenate %49, %50, %51, %52, %53, %54, %55, %56, %57 in 3 : vector<2x8x8x64xf32>, vector<2x8x8x64xf32>, vector<2x8x8x64xf32>, vector<2x8x8x64xf32>, vector<2x8x8x64xf32>, vector<2x8x8x64xf32>, vector<2x8x8x64xf32>, vector<2x8x8x64xf32>, vector<2x8x8x64xf32> -> vector<2x8x8x576xf32>
    %59 = vector.shape_cast %58 : vector<2x8x8x576xf32> to vector<128x576xf32>
    %c0_113 = arith.constant 0 : index
    %c0_114 = arith.constant 0 : index
    %60 = vector.load %arg7[%c0_113, %c0_114] : memref<576x64xf32, #tpu.memory_space<vmem>>, vector<576x64xf32>
    %cst_115 = arith.constant dense<0.000000e+00> : vector<128x64xf32>
    %61 = tpu.matmul %59, %60, %cst_115 {dimension_numbers = #tpu.dot_dimension_numbers<[1], [0], [0], [1], [0, 0, 1, 1], [], []>} : vector<128x576xf32>, vector<576x64xf32>, vector<128x64xf32> -> vector<128x64xf32>
    %c0_116 = arith.constant 0 : index
    %c0_117 = arith.constant 0 : index
    %62 = vector.load %arg8[%c0_116, %c0_117] : memref<1x64xf32, #tpu.memory_space<vmem>>, vector<1x64xf32>
    %63 = vector.broadcast %62 : vector<1x64xf32> to vector<128x64xf32>
    %64 = arith.addf %61, %63 : vector<128x64xf32>
    %cst_118 = arith.constant 0.000000e+00 : f32
    %65 = vector.broadcast %cst_118 : f32 to vector<128x64xf32>
    %66 = arith.maximumf %64, %65 : vector<128x64xf32>
    %67 = vector.shape_cast %66 : vector<128x64xf32> to vector<8x2x8x64xf32>
    %cst_119 = arith.constant dense<0xFF800000> : vector<8x8x64xf32>
    %68 = vector.multi_reduction <maximumf>, %67, %cst_119 [1] : vector<8x2x8x64xf32> to vector<8x8x64xf32>
    %69 = vector.shape_cast %68 : vector<8x8x64xf32> to vector<64x64xf32>
    %c0_120 = arith.constant 0 : index
    %c0_121 = arith.constant 0 : index
    %70 = vector.load %arg13[%c0_120, %c0_121] : memref<32x64xf32, #tpu.memory_space<vmem>>, vector<32x64xf32>
    %cst_122 = arith.constant dense<0.000000e+00> : vector<32x64xf32>
    %71 = tpu.matmul %70, %69, %cst_122 {dimension_numbers = #tpu.dot_dimension_numbers<[1], [0], [0], [1], [0, 0, 1, 1], [], []>} : vector<32x64xf32>, vector<64x64xf32>, vector<32x64xf32> -> vector<32x64xf32>
    %c0_123 = arith.constant 0 : index
    %c0_124 = arith.constant 0 : index
    %72 = vector.load %arg14[%c0_123, %c0_124] : memref<32x64xf32, #tpu.memory_space<vmem>>, vector<32x64xf32>
    %cst_125 = arith.constant dense<0.000000e+00> : vector<32x64xf32>
    %73 = tpu.matmul %72, %69, %cst_125 {dimension_numbers = #tpu.dot_dimension_numbers<[1], [0], [0], [1], [0, 0, 1, 1], [], []>} : vector<32x64xf32>, vector<64x64xf32>, vector<32x64xf32> -> vector<32x64xf32>
    %74 = arith.maximumf %71, %73 : vector<32x64xf32>
    %c0_126 = arith.constant 0 : index
    %c0_127 = arith.constant 0 : index
    %75 = vector.load %arg15[%c0_126, %c0_127] : memref<2x32xf32, #tpu.memory_space<vmem>>, vector<2x32xf32>
    %cst_128 = arith.constant dense<0.000000e+00> : vector<2x64xf32>
    %76 = tpu.matmul %75, %74, %cst_128 {dimension_numbers = #tpu.dot_dimension_numbers<[1], [0], [0], [1], [0, 0, 1, 1], [], []>} : vector<2x32xf32>, vector<32x64xf32>, vector<2x64xf32> -> vector<2x64xf32>
    %c0_129 = arith.constant 0 : index
    %c0_130 = arith.constant 0 : index
    %77 = vector.load %arg9[%c0_129, %c0_130] : memref<64x4xf32, #tpu.memory_space<vmem>>, vector<64x4xf32>
    %cst_131 = arith.constant dense<0.000000e+00> : vector<2x4xf32>
    %78 = tpu.matmul %76, %77, %cst_131 {dimension_numbers = #tpu.dot_dimension_numbers<[1], [0], [0], [1], [0, 0, 1, 1], [], []>} : vector<2x64xf32>, vector<64x4xf32>, vector<2x4xf32> -> vector<2x4xf32>
    %c0_132 = arith.constant 0 : index
    %c0_133 = arith.constant 0 : index
    %79 = vector.load %arg10[%c0_132, %c0_133] : memref<1x4xf32, #tpu.memory_space<vmem>>, vector<1x4xf32>
    %80 = vector.broadcast %79 : vector<1x4xf32> to vector<2x4xf32>
    %81 = arith.addf %78, %80 : vector<2x4xf32>
    %c0_134 = arith.constant 0 : index
    %c0_135 = arith.constant 0 : index
    %82 = vector.load %arg16[%c0_134, %c0_135] : memref<2x4xf32, #tpu.memory_space<vmem>>, vector<2x4xf32>
    tpu.vector_store %arg16[%c0_134, %c0_135], %81 {strides = array<i32>} : memref<2x4xf32, #tpu.memory_space<vmem>>, vector<2x4xf32>,
    return
  }
}

</mosaic_0001>

<llo_original>
// kernel: tpu_custom_call.1
$region0: #{tpu_custom_call.1}
  #allocation0 [shape = 'u32[]', space=smem, size = 0x4, offset = 0x4, fixed_abs, tag = 'smem constant byte address 0x4 - core index']
  #allocation1 [shape = 'u32[72,128]{1,0:T(1,128)}', space=vmem, size = 0x9000, scoped, tag = 'internal scratch']
  #allocation2 [shape = 'f32[2,10,10,16]{3,2,1,0:T(8,128)}', space=vmem, size = 0x28000, scoped, tag = 'scratch operand']
  #allocation3 [shape = 'f32[2,10,10,64]{3,2,1,0:T(8,128)}', space=vmem, size = 0x28000, scoped, tag = 'scratch operand']
  %s0 = inlined_call_operand.vmem [shape: f32[512,9], index: 0, kind: input, shape index: {}]
  %s1 = inlined_call_operand.vmem [shape: f32[9,32], index: 1, kind: input, shape index: {}]
  %s2 = inlined_call_operand.vmem [shape: f32[1,32], index: 2, kind: input, shape index: {}]
  %s3 = inlined_call_operand.vmem [shape: f32[32,16], index: 3, kind: input, shape index: {}]
  %s4 = inlined_call_operand.vmem [shape: f32[1,16], index: 4, kind: input, shape index: {}]
  %s5 = inlined_call_operand.vmem [shape: f32[144,64], index: 5, kind: input, shape index: {}]
  %s6 = inlined_call_operand.vmem [shape: f32[1,64], index: 6, kind: input, shape index: {}]
  %s7 = inlined_call_operand.vmem [shape: f32[576,64], index: 7, kind: input, shape index: {}]
  %s8 = inlined_call_operand.vmem [shape: f32[1,64], index: 8, kind: input, shape index: {}]
  %s9 = inlined_call_operand.vmem [shape: f32[64,4], index: 9, kind: input, shape index: {}]
  %s10 = inlined_call_operand.vmem [shape: f32[1,4], index: 10, kind: input, shape index: {}]
  %s11 = inlined_call_operand.vmem [shape: f32[128,256], index: 11, kind: input, shape index: {}]
  %s12 = inlined_call_operand.vmem [shape: f32[128,256], index: 12, kind: input, shape index: {}]
  %s13 = inlined_call_operand.vmem [shape: f32[32,64], index: 13, kind: input, shape index: {}]
  %s14 = inlined_call_operand.vmem [shape: f32[32,64], index: 14, kind: input, shape index: {}]
  %s15 = inlined_call_operand.vmem [shape: f32[2,32], index: 15, kind: input, shape index: {}]
  %s16 = inlined_call_operand.hbm [shape: f32[2,4], index: 16, kind: output, shape index: {}]
  %s17 = sld [smem:[#allocation0]]
  $region74: #{tpu_custom_call.1} parent=0
    _
  %s19 = ssub.s32 1, %s17
  %s20 = scalar_select 0, %s19, %s17
  $region1: #{tpu_custom_call.1} parent=0
    #allocation4 [shape = 'u8[1024]{0}', space=vmem, size = 0x400, scoped, tag = 'output window, operand 0, single buffered']
    #allocation5 [shape = 's32[1]{0}', space=sflag, size = 0x4, scoped, tag = 'scoped memory for tpu_custom_call.1']
    %21 = vsyncpa [#allocation5], 0
    // Predicated region
    $region2: #{tpu_custom_call.1} parent=1 // pred_check
      _
    $region3: #{tpu_custom_call.1} parent=1 // pred_check_branch
      %23 = sbr.rel (0) target = $region5
    $region4: #{tpu_custom_call.1} parent=1 // pred_region
      _
    $region5: #{tpu_custom_call.1} parent=1 // pred_fallthru
      _
    // Predicated region
    $region6: #{tpu_custom_call.1} parent=1 // pred_check
      _
    $region7: #{tpu_custom_call.1} parent=1 // pred_check_branch
      %25 = sbr.rel (0) target = $region9
    $region8: #{tpu_custom_call.1} parent=1 // pred_region
      _
    $region9: #{tpu_custom_call.1} parent=1 // pred_fallthru
      _
    // Predicated region
    $region10: #{tpu_custom_call.1} parent=1 // pred_check
      _
    $region11: #{tpu_custom_call.1} parent=1 // pred_check_branch
      %27 = sbr.rel (0) target = $region13
    $region12: #{tpu_custom_call.1} parent=1 // pred_region
      _
    $region13: #{tpu_custom_call.1} parent=1 // pred_fallthru
      _
    // Predicated region
    $region14: #{tpu_custom_call.1} parent=1 // pred_check
      _
    $region15: #{tpu_custom_call.1} parent=1 // pred_check_branch
      %29 = sbr.rel (0) target = $region17
    $region16: #{tpu_custom_call.1} parent=1 // pred_region
      _
    $region17: #{tpu_custom_call.1} parent=1 // pred_fallthru
      _
    // Predicated region
    $region18: #{tpu_custom_call.1} parent=1 // pred_check
      _
    $region19: #{tpu_custom_call.1} parent=1 // pred_check_branch
      %31 = sbr.rel (0) target = $region21
    $region20: #{tpu_custom_call.1} parent=1 // pred_region
      _
    $region21: #{tpu_custom_call.1} parent=1 // pred_fallthru
      _
    // Predicated region
    $region22: #{tpu_custom_call.1} parent=1 // pred_check
      _
    $region23: #{tpu_custom_call.1} parent=1 // pred_check_branch
      %33 = sbr.rel (0) target = $region25
    $region24: #{tpu_custom_call.1} parent=1 // pred_region
      _
    $region25: #{tpu_custom_call.1} parent=1 // pred_fallthru
      _
    // Predicated region
    $region26: #{tpu_custom_call.1} parent=1 // pred_check
      _
    $region27: #{tpu_custom_call.1} parent=1 // pred_check_branch
      %35 = sbr.rel (0) target = $region29
    $region28: #{tpu_custom_call.1} parent=1 // pred_region
      _
    $region29: #{tpu_custom_call.1} parent=1 // pred_fallthru
      _
    // Predicated region
    $region30: #{tpu_custom_call.1} parent=1 // pred_check
      _
    $region31: #{tpu_custom_call.1} parent=1 // pred_check_branch
      %37 = sbr.rel (0) target = $region33
    $region32: #{tpu_custom_call.1} parent=1 // pred_region
      _
    $region33: #{tpu_custom_call.1} parent=1 // pred_fallthru
      _
    // Predicated region
    $region34: #{tpu_custom_call.1} parent=1 // pred_check
      _
    $region35: #{tpu_custom_call.1} parent=1 // pred_check_branch
      %39 = sbr.rel (0) target = $region37
    $region36: #{tpu_custom_call.1} parent=1 // pred_region
      _
    $region37: #{tpu_custom_call.1} parent=1 // pred_fallthru
      _
    // Predicated region
    $region38: #{tpu_custom_call.1} parent=1 // pred_check
      _
    $region39: #{tpu_custom_call.1} parent=1 // pred_check_branch
      %41 = sbr.rel (0) target = $region41
    $region40: #{tpu_custom_call.1} parent=1 // pred_region
      _
    $region41: #{tpu_custom_call.1} parent=1 // pred_fallthru
      _
    // Predicated region
    $region42: #{tpu_custom_call.1} parent=1 // pred_check
      _
    $region43: #{tpu_custom_call.1} parent=1 // pred_check_branch
      %43 = sbr.rel (0) target = $region45
    $region44: #{tpu_custom_call.1} parent=1 // pred_region
      _
    $region45: #{tpu_custom_call.1} parent=1 // pred_fallthru
      _
    // Predicated region
    $region46: #{tpu_custom_call.1} parent=1 // pred_check
      _
    $region47: #{tpu_custom_call.1} parent=1 // pred_check_branch
      %45 = sbr.rel (0) target = $region49
    $region48: #{tpu_custom_call.1} parent=1 // pred_region
      _
    $region49: #{tpu_custom_call.1} parent=1 // pred_fallthru
      _
    // Predicated region
    $region50: #{tpu_custom_call.1} parent=1 // pred_check
      _
    $region51: #{tpu_custom_call.1} parent=1 // pred_check_branch
      %47 = sbr.rel (0) target = $region53
    $region52: #{tpu_custom_call.1} parent=1 // pred_region
      _
    $region53: #{tpu_custom_call.1} parent=1 // pred_fallthru
      _
    // Predicated region
    $region54: #{tpu_custom_call.1} parent=1 // pred_check
      _
    $region55: #{tpu_custom_call.1} parent=1 // pred_check_branch
      %49 = sbr.rel (0) target = $region57
    $region56: #{tpu_custom_call.1} parent=1 // pred_region
      _
    $region57: #{tpu_custom_call.1} parent=1 // pred_fallthru
      _
    // Predicated region
    $region58: #{tpu_custom_call.1} parent=1 // pred_check
      _
    $region59: #{tpu_custom_call.1} parent=1 // pred_check_branch
      %51 = sbr.rel (0) target = $region61
    $region60: #{tpu_custom_call.1} parent=1 // pred_region
      _
    $region61: #{tpu_custom_call.1} parent=1 // pred_fallthru
      _
    // Predicated region
    $region62: #{tpu_custom_call.1} parent=1 // pred_check
      _
    $region63: #{tpu_custom_call.1} parent=1 // pred_check_branch
      %53 = sbr.rel (0) target = $region65
    $region64: #{tpu_custom_call.1} parent=1 // pred_region
      _
    $region65: #{tpu_custom_call.1} parent=1 // pred_fallthru
      _
    %v54 = vld [vmem:[%s0] sm:$0xff]
    %v55 = vld [vmem:[%s0 + $0x8] sm:$0xff]
    %v56 = vld [vmem:[%s0 + $0x10] sm:$0xff]
    %v57 = vld [vmem:[%s0 + $0x18] sm:$0xff]
    %v58 = vld [vmem:[%s0 + $0x20] sm:$0xff]
    %v59 = vld [vmem:[%s0 + $0x28] sm:$0xff]
    %v60 = vld [vmem:[%s0 + $0x30] sm:$0xff]
    %v61 = vld [vmem:[%s0 + $0x38] sm:$0xff]
    %v62 = vld [vmem:[%s0 + $0x40] sm:$0xff]
    %v63 = vld [vmem:[%s0 + $0x48] sm:$0xff]
    %v64 = vld [vmem:[%s0 + $0x50] sm:$0xff]
    %v65 = vld [vmem:[%s0 + $0x58] sm:$0xff]
    %v66 = vld [vmem:[%s0 + $0x60] sm:$0xff]
    %v67 = vld [vmem:[%s0 + $0x68] sm:$0xff]
    %v68 = vld [vmem:[%s0 + $0x70] sm:$0xff]
    %v69 = vld [vmem:[%s0 + $0x78] sm:$0xff]
    %v70 = vld [vmem:[%s0 + $0x80] sm:$0xff]
    %v71 = vld [vmem:[%s0 + $0x88] sm:$0xff]
    %v72 = vld [vmem:[%s0 + $0x90] sm:$0xff]
    %v73 = vld [vmem:[%s0 + $0x98] sm:$0xff]
    %v74 = vld [vmem:[%s0 + $0xa0] sm:$0xff]
    %v75 = vld [vmem:[%s0 + $0xa8] sm:$0xff]
    %v76 = vld [vmem:[%s0 + $0xb0] sm:$0xff]
    %v77 = vld [vmem:[%s0 + $0xb8] sm:$0xff]
    %v78 = vld [vmem:[%s0 + $0xc0] sm:$0xff]
    %v79 = vld [vmem:[%s0 + $0xc8] sm:$0xff]
    %v80 = vld [vmem:[%s0 + $0xd0] sm:$0xff]
    %v81 = vld [vmem:[%s0 + $0xd8] sm:$0xff]
    %v82 = vld [vmem:[%s0 + $0xe0] sm:$0xff]
    %v83 = vld [vmem:[%s0 + $0xe8] sm:$0xff]
    %v84 = vld [vmem:[%s0 + $0xf0] sm:$0xff]
    %v85 = vld [vmem:[%s0 + $0xf8] sm:$0xff]
    %v86 = vld [vmem:[%s0 + $0x100] sm:$0xff]
    %v87 = vld [vmem:[%s0 + $0x108] sm:$0xff]
    %v88 = vld [vmem:[%s0 + $0x110] sm:$0xff]
    %v89 = vld [vmem:[%s0 + $0x118] sm:$0xff]
    %v90 = vld [vmem:[%s0 + $0x120] sm:$0xff]
    %v91 = vld [vmem:[%s0 + $0x128] sm:$0xff]
    %v92 = vld [vmem:[%s0 + $0x130] sm:$0xff]
    %v93 = vld [vmem:[%s0 + $0x138] sm:$0xff]
    %v94 = vld [vmem:[%s0 + $0x140] sm:$0xff]
    %v95 = vld [vmem:[%s0 + $0x148] sm:$0xff]
    %v96 = vld [vmem:[%s0 + $0x150] sm:$0xff]
    %v97 = vld [vmem:[%s0 + $0x158] sm:$0xff]
    %v98 = vld [vmem:[%s0 + $0x160] sm:$0xff]
    %v99 = vld [vmem:[%s0 + $0x168] sm:$0xff]
    %v100 = vld [vmem:[%s0 + $0x170] sm:$0xff]
    %v101 = vld [vmem:[%s0 + $0x178] sm:$0xff]
    %v102 = vld [vmem:[%s0 + $0x180] sm:$0xff]
    %v103 = vld [vmem:[%s0 + $0x188] sm:$0xff]
    %v104 = vld [vmem:[%s0 + $0x190] sm:$0xff]
    %v105 = vld [vmem:[%s0 + $0x198] sm:$0xff]
    %v106 = vld [vmem:[%s0 + $0x1a0] sm:$0xff]
    %v107 = vld [vmem:[%s0 + $0x1a8] sm:$0xff]
    %v108 = vld [vmem:[%s0 + $0x1b0] sm:$0xff]
    %v109 = vld [vmem:[%s0 + $0x1b8] sm:$0xff]
    %v110 = vld [vmem:[%s0 + $0x1c0] sm:$0xff]
    %v111 = vld [vmem:[%s0 + $0x1c8] sm:$0xff]
    %v112 = vld [vmem:[%s0 + $0x1d0] sm:$0xff]
    %v113 = vld [vmem:[%s0 + $0x1d8] sm:$0xff]
    %v114 = vld [vmem:[%s0 + $0x1e0] sm:$0xff]
    %v115 = vld [vmem:[%s0 + $0x1e8] sm:$0xff]
    %v116 = vld [vmem:[%s0 + $0x1f0] sm:$0xff]
    %v117 = vld [vmem:[%s0 + $0x1f8] sm:$0xff]
    %v118 = vld [vmem:[%s1] sm:$0xff]
    %v119 = vld [vmem:[%s1 + $0x8] sm:$0x1]
    %v120 = vld [vmem:[%s2] sm:$0x1]
    %v122 = vperm.slane %v120, 0
    %vm124 = vcmask 72704
    %v126 = vsel %vm124, %v54, 0
    %v129 = vsel %vm124, %v55, 0
    %v132 = vsel %vm124, %v56, 0
    %v135 = vsel %vm124, %v57, 0
    %v138 = vsel %vm124, %v58, 0
    %v141 = vsel %vm124, %v59, 0
    %v144 = vsel %vm124, %v60, 0
    %v147 = vsel %vm124, %v61, 0
    %v150 = vsel %vm124, %v62, 0
    %v153 = vsel %vm124, %v63, 0
    %v156 = vsel %vm124, %v64, 0
    %v159 = vsel %vm124, %v65, 0
    %v162 = vsel %vm124, %v66, 0
    %v165 = vsel %vm124, %v67, 0
    %v168 = vsel %vm124, %v68, 0
    %v171 = vsel %vm124, %v69, 0
    %v174 = vsel %vm124, %v70, 0
    %v177 = vsel %vm124, %v71, 0
    %v180 = vsel %vm124, %v72, 0
    %v183 = vsel %vm124, %v73, 0
    %v186 = vsel %vm124, %v74, 0
    %v189 = vsel %vm124, %v75, 0
    %v192 = vsel %vm124, %v76, 0
    %v195 = vsel %vm124, %v77, 0
    %v198 = vsel %vm124, %v78, 0
    %v201 = vsel %vm124, %v79, 0
    %v204 = vsel %vm124, %v80, 0
    %v207 = vsel %vm124, %v81, 0
    %v210 = vsel %vm124, %v82, 0
    %v213 = vsel %vm124, %v83, 0
    %v216 = vsel %vm124, %v84, 0
    %v219 = vsel %vm124, %v85, 0
    %v222 = vsel %vm124, %v86, 0
    %v225 = vsel %vm124, %v87, 0
    %v228 = vsel %vm124, %v88, 0
    %v231 = vsel %vm124, %v89, 0
    %v234 = vsel %vm124, %v90, 0
    %v237 = vsel %vm124, %v91, 0
    %v240 = vsel %vm124, %v92, 0
    %v243 = vsel %vm124, %v93, 0
    %v246 = vsel %vm124, %v94, 0
    %v249 = vsel %vm124, %v95, 0
    %v252 = vsel %vm124, %v96, 0
    %v255 = vsel %vm124, %v97, 0
    %v258 = vsel %vm124, %v98, 0
    %v261 = vsel %vm124, %v99, 0
    %v264 = vsel %vm124, %v100, 0
    %v267 = vsel %vm124, %v101, 0
    %v270 = vsel %vm124, %v102, 0
    %v273 = vsel %vm124, %v103, 0
    %v276 = vsel %vm124, %v104, 0
    %v279 = vsel %vm124, %v105, 0
    %v282 = vsel %vm124, %v106, 0
    %v285 = vsel %vm124, %v107, 0
    %v288 = vsel %vm124, %v108, 0
    %v291 = vsel %vm124, %v109, 0
    %v294 = vsel %vm124, %v110, 0
    %v297 = vsel %vm124, %v111, 0
    %v300 = vsel %vm124, %v112, 0
    %v303 = vsel %vm124, %v113, 0
    %v306 = vsel %vm124, %v114, 0
    %v309 = vsel %vm124, %v115, 0
    %v312 = vsel %vm124, %v116, 0
    %v315 = vsel %vm124, %v117, 0
    %vm317 = vcmask 1040384
    %v319 = vsel %vm317, %v119, 0
    %321 = vmatpush.msra.mxu0 0.0
    %322 = vmatpush.msra.mxu0 0.0
    %323 = vmatpush.msra.mxu0 0.0
    %324 = vmatpush.msra.mxu0 0.0
    %325 = vmatpush.msra.mxu0 0.0
    %326 = vmatpush.msra.mxu0 0.0
    %327 = vmatpush.msra.mxu0 0.0
    %328 = vmatpush.msra.mxu0 0.0
    %329 = vmatpush.msra.mxu0 0.0
    %330 = vmatpush.msra.mxu0 0.0
    %331 = vmatpush.msra.mxu0 0.0
    %332 = vmatpush.msra.mxu0 0.0
    %333 = vmatpush.msra.mxu0 0.0
    %334 = vmatpush.msra.mxu0 0.0
    %335 = vmatpush.msra.mxu0 %v319
    %336 = vmatpush.msra.mxu0 %v118
    %337 = vmatmul.f32.gmra.mxu0 %v126
    %v338 = vpop.f32.mrf.mxu0
    %v339 = vadd.f32 %v122, %v338
    %340 = vmatmul.f32.gmra.mxu0 %v129
    %v341 = vpop.f32.mrf.mxu0
    %v342 = vadd.f32 %v122, %v341
    %343 = vmatmul.f32.gmra.mxu0 %v132
    %v344 = vpop.f32.mrf.mxu0
    %v345 = vadd.f32 %v122, %v344
    %346 = vmatmul.f32.gmra.mxu0 %v135
    %v347 = vpop.f32.mrf.mxu0
    %v348 = vadd.f32 %v122, %v347
    %349 = vmatmul.f32.gmra.mxu0 %v138
    %v350 = vpop.f32.mrf.mxu0
    %v351 = vadd.f32 %v122, %v350
    %352 = vmatmul.f32.gmra.mxu0 %v141
    %v353 = vpop.f32.mrf.mxu0
    %v354 = vadd.f32 %v122, %v353
    %355 = vmatmul.f32.gmra.mxu0 %v144
    %v356 = vpop.f32.mrf.mxu0
    %v357 = vadd.f32 %v122, %v356
    %358 = vmatmul.f32.gmra.mxu0 %v147
    %v359 = vpop.f32.mrf.mxu0
    %v360 = vadd.f32 %v122, %v359
    %361 = vmatmul.f32.gmra.mxu0 %v150
    %v362 = vpop.f32.mrf.mxu0
    %v363 = vadd.f32 %v122, %v362
    %364 = vmatmul.f32.gmra.mxu0 %v153
    %v365 = vpop.f32.mrf.mxu0
    %v366 = vadd.f32 %v122, %v365
    %367 = vmatmul.f32.gmra.mxu0 %v156
    %v368 = vpop.f32.mrf.mxu0
    %v369 = vadd.f32 %v122, %v368
    %370 = vmatmul.f32.gmra.mxu0 %v159
    %v371 = vpop.f32.mrf.mxu0
    %v372 = vadd.f32 %v122, %v371
    %373 = vmatmul.f32.gmra.mxu0 %v162
    %v374 = vpop.f32.mrf.mxu0
    %v375 = vadd.f32 %v122, %v374
    %376 = vmatmul.f32.gmra.mxu0 %v165
    %v377 = vpop.f32.mrf.mxu0
    %v378 = vadd.f32 %v122, %v377
    %379 = vmatmul.f32.gmra.mxu0 %v168
    %v380 = vpop.f32.mrf.mxu0
    %v381 = vadd.f32 %v122, %v380
    %382 = vmatmul.f32.gmra.mxu0 %v171
    %v383 = vpop.f32.mrf.mxu0
    %v384 = vadd.f32 %v122, %v383
    %385 = vmatmul.f32.gmra.mxu0 %v174
    %v386 = vpop.f32.mrf.mxu0
    %v387 = vadd.f32 %v122, %v386
    %388 = vmatmul.f32.gmra.mxu0 %v177
    %v389 = vpop.f32.mrf.mxu0
    %v390 = vadd.f32 %v122, %v389
    %391 = vmatmul.f32.gmra.mxu0 %v180
    %v392 = vpop.f32.mrf.mxu0
    %v393 = vadd.f32 %v122, %v392
    %394 = vmatmul.f32.gmra.mxu0 %v183
    %v395 = vpop.f32.mrf.mxu0
    %v396 = vadd.f32 %v122, %v395
    %397 = vmatmul.f32.gmra.mxu0 %v186
    %v398 = vpop.f32.mrf.mxu0
    %v399 = vadd.f32 %v122, %v398
    %400 = vmatmul.f32.gmra.mxu0 %v189
    %v401 = vpop.f32.mrf.mxu0
    %v402 = vadd.f32 %v122, %v401
    %403 = vmatmul.f32.gmra.mxu0 %v192
    %v404 = vpop.f32.mrf.mxu0
    %v405 = vadd.f32 %v122, %v404
    %406 = vmatmul.f32.gmra.mxu0 %v195
    %v407 = vpop.f32.mrf.mxu0
    %v408 = vadd.f32 %v122, %v407
    %409 = vmatmul.f32.gmra.mxu0 %v198
    %v410 = vpop.f32.mrf.mxu0
    %v411 = vadd.f32 %v122, %v410
    %412 = vmatmul.f32.gmra.mxu0 %v201
    %v413 = vpop.f32.mrf.mxu0
    %v414 = vadd.f32 %v122, %v413
    %415 = vmatmul.f32.gmra.mxu0 %v204
    %v416 = vpop.f32.mrf.mxu0
    %v417 = vadd.f32 %v122, %v416
    %418 = vmatmul.f32.gmra.mxu0 %v207
    %v419 = vpop.f32.mrf.mxu0
    %v420 = vadd.f32 %v122, %v419
    %421 = vmatmul.f32.gmra.mxu0 %v210
    %v422 = vpop.f32.mrf.mxu0
    %v423 = vadd.f32 %v122, %v422
    %424 = vmatmul.f32.gmra.mxu0 %v213
    %v425 = vpop.f32.mrf.mxu0
    %v426 = vadd.f32 %v122, %v425
    %427 = vmatmul.f32.gmra.mxu0 %v216
    %v428 = vpop.f32.mrf.mxu0
    %v429 = vadd.f32 %v122, %v428
    %430 = vmatmul.f32.gmra.mxu0 %v219
    %v431 = vpop.f32.mrf.mxu0
    %v432 = vadd.f32 %v122, %v431
    %433 = vmatmul.f32.gmra.mxu0 %v222
    %v434 = vpop.f32.mrf.mxu0
    %v435 = vadd.f32 %v122, %v434
    %436 = vmatmul.f32.gmra.mxu0 %v225
    %v437 = vpop.f32.mrf.mxu0
    %v438 = vadd.f32 %v122, %v437
    %439 = vmatmul.f32.gmra.mxu0 %v228
    %v440 = vpop.f32.mrf.mxu0
    %v441 = vadd.f32 %v122, %v440
    %442 = vmatmul.f32.gmra.mxu0 %v231
    %v443 = vpop.f32.mrf.mxu0
    %v444 = vadd.f32 %v122, %v443
    %445 = vmatmul.f32.gmra.mxu0 %v234
    %v446 = vpop.f32.mrf.mxu0
    %v447 = vadd.f32 %v122, %v446
    %448 = vmatmul.f32.gmra.mxu0 %v237
    %v449 = vpop.f32.mrf.mxu0
    %v450 = vadd.f32 %v122, %v449
    %451 = vmatmul.f32.gmra.mxu0 %v240
    %v452 = vpop.f32.mrf.mxu0
    %v453 = vadd.f32 %v122, %v452
    %454 = vmatmul.f32.gmra.mxu0 %v243
    %v455 = vpop.f32.mrf.mxu0
    %v456 = vadd.f32 %v122, %v455
    %457 = vmatmul.f32.gmra.mxu0 %v246
    %v458 = vpop.f32.mrf.mxu0
    %v459 = vadd.f32 %v122, %v458
    %460 = vmatmul.f32.gmra.mxu0 %v249
    %v461 = vpop.f32.mrf.mxu0
    %v462 = vadd.f32 %v122, %v461
    %463 = vmatmul.f32.gmra.mxu0 %v252
    %v464 = vpop.f32.mrf.mxu0
    %v465 = vadd.f32 %v122, %v464
    %466 = vmatmul.f32.gmra.mxu0 %v255
    %v467 = vpop.f32.mrf.mxu0
    %v468 = vadd.f32 %v122, %v467
    %469 = vmatmul.f32.gmra.mxu0 %v258
    %v470 = vpop.f32.mrf.mxu0
    %v471 = vadd.f32 %v122, %v470
    %472 = vmatmul.f32.gmra.mxu0 %v261
    %v473 = vpop.f32.mrf.mxu0
    %v474 = vadd.f32 %v122, %v473
    %475 = vmatmul.f32.gmra.mxu0 %v264
    %v476 = vpop.f32.mrf.mxu0
    %v477 = vadd.f32 %v122, %v476
    %478 = vmatmul.f32.gmra.mxu0 %v267
    %v479 = vpop.f32.mrf.mxu0
    %v480 = vadd.f32 %v122, %v479
    %481 = vmatmul.f32.gmra.mxu0 %v270
    %v482 = vpop.f32.mrf.mxu0
    %v483 = vadd.f32 %v122, %v482
    %484 = vmatmul.f32.gmra.mxu0 %v273
    %v485 = vpop.f32.mrf.mxu0
    %v486 = vadd.f32 %v122, %v485
    %487 = vmatmul.f32.gmra.mxu0 %v276
    %v488 = vpop.f32.mrf.mxu0
    %v489 = vadd.f32 %v122, %v488
    %490 = vmatmul.f32.gmra.mxu0 %v279
    %v491 = vpop.f32.mrf.mxu0
    %v492 = vadd.f32 %v122, %v491
    %493 = vmatmul.f32.gmra.mxu0 %v282
    %v494 = vpop.f32.mrf.mxu0
    %v495 = vadd.f32 %v122, %v494
    %496 = vmatmul.f32.gmra.mxu0 %v285
    %v497 = vpop.f32.mrf.mxu0
    %v498 = vadd.f32 %v122, %v497
    %499 = vmatmul.f32.gmra.mxu0 %v288
    %v500 = vpop.f32.mrf.mxu0
    %v501 = vadd.f32 %v122, %v500
    %502 = vmatmul.f32.gmra.mxu0 %v291
    %v503 = vpop.f32.mrf.mxu0
    %v504 = vadd.f32 %v122, %v503
    %505 = vmatmul.f32.gmra.mxu0 %v294
    %v506 = vpop.f32.mrf.mxu0
    %v507 = vadd.f32 %v122, %v506
    %508 = vmatmul.f32.gmra.mxu0 %v297
    %v509 = vpop.f32.mrf.mxu0
    %v510 = vadd.f32 %v122, %v509
    %511 = vmatmul.f32.gmra.mxu0 %v300
    %v512 = vpop.f32.mrf.mxu0
    %v513 = vadd.f32 %v122, %v512
    %514 = vmatmul.f32.gmra.mxu0 %v303
    %v515 = vpop.f32.mrf.mxu0
    %v516 = vadd.f32 %v122, %v515
    %517 = vmatmul.f32.gmra.mxu0 %v306
    %v518 = vpop.f32.mrf.mxu0
    %v519 = vadd.f32 %v122, %v518
    %520 = vmatmul.f32.gmra.mxu0 %v309
    %v521 = vpop.f32.mrf.mxu0
    %v522 = vadd.f32 %v122, %v521
    %523 = vmatmul.f32.gmra.mxu0 %v312
    %v524 = vpop.f32.mrf.mxu0
    %v525 = vadd.f32 %v122, %v524
    %526 = vmatmul.f32.gmra.mxu0 %v315
    %v527 = vpop.f32.mrf.mxu0
    %v528 = vadd.f32 %v122, %v527
    %529 = vdwg.mxu0
    %v530 = vmax.f32 %v339, 0.0
    %v531 = vmax.f32 %v342, 0.0
    %v532 = vmax.f32 %v345, 0.0
    %v533 = vmax.f32 %v348, 0.0
    %v534 = vmax.f32 %v351, 0.0
    %v535 = vmax.f32 %v354, 0.0
    %v536 = vmax.f32 %v357, 0.0
    %v537 = vmax.f32 %v360, 0.0
    %v538 = vmax.f32 %v363, 0.0
    %v539 = vmax.f32 %v366, 0.0
    %v540 = vmax.f32 %v369, 0.0
    %v541 = vmax.f32 %v372, 0.0
    %v542 = vmax.f32 %v375, 0.0
    %v543 = vmax.f32 %v378, 0.0
    %v544 = vmax.f32 %v381, 0.0
    %v545 = vmax.f32 %v384, 0.0
    %v546 = vmax.f32 %v387, 0.0
    %v547 = vmax.f32 %v390, 0.0
    %v548 = vmax.f32 %v393, 0.0
    %v549 = vmax.f32 %v396, 0.0
    %v550 = vmax.f32 %v399, 0.0
    %v551 = vmax.f32 %v402, 0.0
    %v552 = vmax.f32 %v405, 0.0
    %v553 = vmax.f32 %v408, 0.0
    %v554 = vmax.f32 %v411, 0.0
    %v555 = vmax.f32 %v414, 0.0
    %v556 = vmax.f32 %v417, 0.0
    %v557 = vmax.f32 %v420, 0.0
    %v558 = vmax.f32 %v423, 0.0
    %v559 = vmax.f32 %v426, 0.0
    %v560 = vmax.f32 %v429, 0.0
    %v561 = vmax.f32 %v432, 0.0
    %v562 = vmax.f32 %v435, 0.0
    %v563 = vmax.f32 %v438, 0.0
    %v564 = vmax.f32 %v441, 0.0
    %v565 = vmax.f32 %v444, 0.0
    %v566 = vmax.f32 %v447, 0.0
    %v567 = vmax.f32 %v450, 0.0
    %v568 = vmax.f32 %v453, 0.0
    %v569 = vmax.f32 %v456, 0.0
    %v570 = vmax.f32 %v459, 0.0
    %v571 = vmax.f32 %v462, 0.0
    %v572 = vmax.f32 %v465, 0.0
    %v573 = vmax.f32 %v468, 0.0
    %v574 = vmax.f32 %v471, 0.0
    %v575 = vmax.f32 %v474, 0.0
    %v576 = vmax.f32 %v477, 0.0
    %v577 = vmax.f32 %v480, 0.0
    %v578 = vmax.f32 %v483, 0.0
    %v579 = vmax.f32 %v486, 0.0
    %v580 = vmax.f32 %v489, 0.0
    %v581 = vmax.f32 %v492, 0.0
    %v582 = vmax.f32 %v495, 0.0
    %v583 = vmax.f32 %v498, 0.0
    %v584 = vmax.f32 %v501, 0.0
    %v585 = vmax.f32 %v504, 0.0
    %v586 = vmax.f32 %v507, 0.0
    %v587 = vmax.f32 %v510, 0.0
    %v588 = vmax.f32 %v513, 0.0
    %v589 = vmax.f32 %v516, 0.0
    %v590 = vmax.f32 %v519, 0.0
    %v591 = vmax.f32 %v522, 0.0
    %v592 = vmax.f32 %v525, 0.0
    %v593 = vmax.f32 %v528, 0.0
    %vm594 = vcmask 261120
    %v595 = vsel %vm594, %v530, -inf
    %v596 = vsel %vm594, %v532, -inf
    %v597 = vmax.f32 %v595, %v596
    %v598 = vsel %vm594, %v531, -inf
    %v599 = vsel %vm594, %v533, -inf
    %v600 = vmax.f32 %v598, %v599
    %v601 = vsel %vm594, %v534, -inf
    %v602 = vsel %vm594, %v536, -inf
    %v603 = vmax.f32 %v601, %v602
    %v604 = vsel %vm594, %v535, -inf
    %v605 = vsel %vm594, %v537, -inf
    %v606 = vmax.f32 %v604, %v605
    %v607 = vsel %vm594, %v538, -inf
    %v608 = vsel %vm594, %v540, -inf
    %v609 = vmax.f32 %v607, %v608
    %v610 = vsel %vm594, %v539, -inf
    %v611 = vsel %vm594, %v541, -inf
    %v612 = vmax.f32 %v610, %v611
    %v613 = vsel %vm594, %v542, -inf
    %v614 = vsel %vm594, %v544, -inf
    %v615 = vmax.f32 %v613, %v614
    %v616 = vsel %vm594, %v543, -inf
    %v617 = vsel %vm594, %v545, -inf
    %v618 = vmax.f32 %v616, %v617
    %v619 = vsel %vm594, %v546, -inf
    %v620 = vsel %vm594, %v548, -inf
    %v621 = vmax.f32 %v619, %v620
    %v622 = vsel %vm594, %v547, -inf
    %v623 = vsel %vm594, %v549, -inf
    %v624 = vmax.f32 %v622, %v623
    %v625 = vsel %vm594, %v550, -inf
    %v626 = vsel %vm594, %v552, -inf
    %v627 = vmax.f32 %v625, %v626
    %v628 = vsel %vm594, %v551, -inf
    %v629 = vsel %vm594, %v553, -inf
    %v630 = vmax.f32 %v628, %v629
    %v631 = vsel %vm594, %v554, -inf
    %v632 = vsel %vm594, %v556, -inf
    %v633 = vmax.f32 %v631, %v632
    %v634 = vsel %vm594, %v555, -inf
    %v635 = vsel %vm594, %v557, -inf
    %v636 = vmax.f32 %v634, %v635
    %v637 = vsel %vm594, %v558, -inf
    %v638 = vsel %vm594, %v560, -inf
    %v639 = vmax.f32 %v637, %v638
    %v640 = vsel %vm594, %v559, -inf
    %v641 = vsel %vm594, %v561, -inf
    %v642 = vmax.f32 %v640, %v641
    %v643 = vsel %vm594, %v562, -inf
    %v644 = vsel %vm594, %v564, -inf
    %v645 = vmax.f32 %v643, %v644
    %v646 = vsel %vm594, %v563, -inf
    %v647 = vsel %vm594, %v565, -inf
    %v648 = vmax.f32 %v646, %v647
    %v649 = vsel %vm594, %v566, -inf
    %v650 = vsel %vm594, %v568, -inf
    %v651 = vmax.f32 %v649, %v650
    %v652 = vsel %vm594, %v567, -inf
    %v653 = vsel %vm594, %v569, -inf
    %v654 = vmax.f32 %v652, %v653
    %v655 = vsel %vm594, %v570, -inf
    %v656 = vsel %vm594, %v572, -inf
    %v657 = vmax.f32 %v655, %v656
    %v658 = vsel %vm594, %v571, -inf
    %v659 = vsel %vm594, %v573, -inf
    %v660 = vmax.f32 %v658, %v659
    %v661 = vsel %vm594, %v574, -inf
    %v662 = vsel %vm594, %v576, -inf
    %v663 = vmax.f32 %v661, %v662
    %v664 = vsel %vm594, %v575, -inf
    %v665 = vsel %vm594, %v577, -inf
    %v666 = vmax.f32 %v664, %v665
    %v667 = vsel %vm594, %v578, -inf
    %v668 = vsel %vm594, %v580, -inf
    %v669 = vmax.f32 %v667, %v668
    %v670 = vsel %vm594, %v579, -inf
    %v671 = vsel %vm594, %v581, -inf
    %v672 = vmax.f32 %v670, %v671
    %v673 = vsel %vm594, %v582, -inf
    %v674 = vsel %vm594, %v584, -inf
    %v675 = vmax.f32 %v673, %v674
    %v676 = vsel %vm594, %v583, -inf
    %v677 = vsel %vm594, %v585, -inf
    %v678 = vmax.f32 %v676, %v677
    %v679 = vsel %vm594, %v586, -inf
    %v680 = vsel %vm594, %v588, -inf
    %v681 = vmax.f32 %v679, %v680
    %v682 = vsel %vm594, %v587, -inf
    %v683 = vsel %vm594, %v589, -inf
    %v684 = vmax.f32 %v682, %v683
    %v685 = vsel %vm594, %v590, -inf
    %v686 = vsel %vm594, %v592, -inf
    %v687 = vmax.f32 %v685, %v686
    %v688 = vsel %vm594, %v591, -inf
    %v689 = vsel %vm594, %v593, -inf
    %v690 = vmax.f32 %v688, %v689
    %v691 = vld [vmem:[%s11] sm:$0xff]
    %v692 = vld [vmem:[%s11 + $0x8] sm:$0xff]
    %v693 = vld [vmem:[%s11 + $0x10] sm:$0xff]
    %v694 = vld [vmem:[%s11 + $0x18] sm:$0xff]
    %v695 = vld [vmem:[%s11 + $0x20] sm:$0xff]
    %v696 = vld [vmem:[%s11 + $0x28] sm:$0xff]
    %v697 = vld [vmem:[%s11 + $0x30] sm:$0xff]
    %v698 = vld [vmem:[%s11 + $0x38] sm:$0xff]
    %v699 = vld [vmem:[%s11 + $0x40] sm:$0xff]
    %v700 = vld [vmem:[%s11 + $0x48] sm:$0xff]
    %v701 = vld [vmem:[%s11 + $0x50] sm:$0xff]
    %v702 = vld [vmem:[%s11 + $0x58] sm:$0xff]
    %v703 = vld [vmem:[%s11 + $0x60] sm:$0xff]
    %v704 = vld [vmem:[%s11 + $0x68] sm:$0xff]
    %v705 = vld [vmem:[%s11 + $0x70] sm:$0xff]
    %v706 = vld [vmem:[%s11 + $0x78] sm:$0xff]
    %v707 = vld [vmem:[%s11 + $0x80] sm:$0xff]
    %v708 = vld [vmem:[%s11 + $0x88] sm:$0xff]
    %v709 = vld [vmem:[%s11 + $0x90] sm:$0xff]
    %v710 = vld [vmem:[%s11 + $0x98] sm:$0xff]
    %v711 = vld [vmem:[%s11 + $0xa0] sm:$0xff]
    %v712 = vld [vmem:[%s11 + $0xa8] sm:$0xff]
    %v713 = vld [vmem:[%s11 + $0xb0] sm:$0xff]
    %v714 = vld [vmem:[%s11 + $0xb8] sm:$0xff]
    %v715 = vld [vmem:[%s11 + $0xc0] sm:$0xff]
    %v716 = vld [vmem:[%s11 + $0xc8] sm:$0xff]
    %v717 = vld [vmem:[%s11 + $0xd0] sm:$0xff]
    %v718 = vld [vmem:[%s11 + $0xd8] sm:$0xff]
    %v719 = vld [vmem:[%s11 + $0xe0] sm:$0xff]
    %v720 = vld [vmem:[%s11 + $0xe8] sm:$0xff]
    %v721 = vld [vmem:[%s11 + $0xf0] sm:$0xff]
    %v722 = vld [vmem:[%s11 + $0xf8] sm:$0xff]
    %723 = vmatpush.msra.mxu0 %v642
    %724 = vmatpush.msra.mxu0 %v639
    %725 = vmatpush.msra.mxu0 %v636
    %726 = vmatpush.msra.mxu0 %v633
    %727 = vmatpush.msra.mxu0 %v630
    %728 = vmatpush.msra.mxu0 %v627
    %729 = vmatpush.msra.mxu0 %v624
    %730 = vmatpush.msra.mxu0 %v621
    %731 = vmatpush.msra.mxu0 %v618
    %732 = vmatpush.msra.mxu0 %v615
    %733 = vmatpush.msra.mxu0 %v612
    %734 = vmatpush.msra.mxu0 %v609
    %735 = vmatpush.msra.mxu0 %v606
    %736 = vmatpush.msra.mxu0 %v603
    %737 = vmatpush.msra.mxu0 %v600
    %738 = vmatpush.msra.mxu0 %v597
    %739 = vmatmul.f32.gmra.mxu0 %v691
    %v740 = vpop.f32.mrf.mxu0
    %v741 = vadd.f32 0.0, %v740
    %742 = vmatmul.f32.gmra.mxu0 %v693
    %v743 = vpop.f32.mrf.mxu0
    %v744 = vadd.f32 0.0, %v743
    %745 = vmatmul.f32.gmra.mxu0 %v695
    %v746 = vpop.f32.mrf.mxu0
    %v747 = vadd.f32 0.0, %v746
    %748 = vmatmul.f32.gmra.mxu0 %v697
    %v749 = vpop.f32.mrf.mxu0
    %v750 = vadd.f32 0.0, %v749
    %751 = vmatmul.f32.gmra.mxu0 %v699
    %v752 = vpop.f32.mrf.mxu0
    %v753 = vadd.f32 0.0, %v752
    %754 = vmatmul.f32.gmra.mxu0 %v701
    %v755 = vpop.f32.mrf.mxu0
    %v756 = vadd.f32 0.0, %v755
    %757 = vmatmul.f32.gmra.mxu0 %v703
    %v758 = vpop.f32.mrf.mxu0
    %v759 = vadd.f32 0.0, %v758
    %760 = vmatmul.f32.gmra.mxu0 %v705
    %v761 = vpop.f32.mrf.mxu0
    %v762 = vadd.f32 0.0, %v761
    %763 = vmatmul.f32.gmra.mxu0 %v707
    %v764 = vpop.f32.mrf.mxu0
    %v765 = vadd.f32 0.0, %v764
    %766 = vmatmul.f32.gmra.mxu0 %v709
    %v767 = vpop.f32.mrf.mxu0
    %v768 = vadd.f32 0.0, %v767
    %769 = vmatmul.f32.gmra.mxu0 %v711
    %v770 = vpop.f32.mrf.mxu0
    %v771 = vadd.f32 0.0, %v770
    %772 = vmatmul.f32.gmra.mxu0 %v713
    %v773 = vpop.f32.mrf.mxu0
    %v774 = vadd.f32 0.0, %v773
    %775 = vmatmul.f32.gmra.mxu0 %v715
    %v776 = vpop.f32.mrf.mxu0
    %v777 = vadd.f32 0.0, %v776
    %778 = vmatmul.f32.gmra.mxu0 %v717
    %v779 = vpop.f32.mrf.mxu0
    %v780 = vadd.f32 0.0, %v779
    %781 = vmatmul.f32.gmra.mxu0 %v719
    %v782 = vpop.f32.mrf.mxu0
    %v783 = vadd.f32 0.0, %v782
    %784 = vmatmul.f32.gmra.mxu0 %v721
    %v785 = vpop.f32.mrf.mxu0
    %v786 = vadd.f32 0.0, %v785
    %787 = vdwg.mxu0
    %788 = vmatpush.msra.mxu0 %v690
    %789 = vmatpush.msra.mxu0 %v687
    %790 = vmatpush.msra.mxu0 %v684
    %791 = vmatpush.msra.mxu0 %v681
    %792 = vmatpush.msra.mxu0 %v678
    %793 = vmatpush.msra.mxu0 %v675
    %794 = vmatpush.msra.mxu0 %v672
    %795 = vmatpush.msra.mxu0 %v669
    %796 = vmatpush.msra.mxu0 %v666
    %797 = vmatpush.msra.mxu0 %v663
    %798 = vmatpush.msra.mxu0 %v660
    %799 = vmatpush.msra.mxu0 %v657
    %800 = vmatpush.msra.mxu0 %v654
    %801 = vmatpush.msra.mxu0 %v651
    %802 = vmatpush.msra.mxu0 %v648
    %803 = vmatpush.msra.mxu0 %v645
    %804 = vmatmul.f32.gmra.mxu0 %v692
    %v805 = vpop.f32.mrf.mxu0
    %v806 = vadd.f32 %v741, %v805
    %807 = vmatmul.f32.gmra.mxu0 %v694
    %v808 = vpop.f32.mrf.mxu0
    %v809 = vadd.f32 %v744, %v808
    %810 = vmatmul.f32.gmra.mxu0 %v696
    %v811 = vpop.f32.mrf.mxu0
    %v812 = vadd.f32 %v747, %v811
    %813 = vmatmul.f32.gmra.mxu0 %v698
    %v814 = vpop.f32.mrf.mxu0
    %v815 = vadd.f32 %v750, %v814
    %816 = vmatmul.f32.gmra.mxu0 %v700
    %v817 = vpop.f32.mrf.mxu0
    %v818 = vadd.f32 %v753, %v817
    %819 = vmatmul.f32.gmra.mxu0 %v702
    %v820 = vpop.f32.mrf.mxu0
    %v821 = vadd.f32 %v756, %v820
    %822 = vmatmul.f32.gmra.mxu0 %v704
    %v823 = vpop.f32.mrf.mxu0
    %v824 = vadd.f32 %v759, %v823
    %825 = vmatmul.f32.gmra.mxu0 %v706
    %v826 = vpop.f32.mrf.mxu0
    %v827 = vadd.f32 %v762, %v826
    %828 = vmatmul.f32.gmra.mxu0 %v708
    %v829 = vpop.f32.mrf.mxu0
    %v830 = vadd.f32 %v765, %v829
    %831 = vmatmul.f32.gmra.mxu0 %v710
    %v832 = vpop.f32.mrf.mxu0
    %v833 = vadd.f32 %v768, %v832
    %834 = vmatmul.f32.gmra.mxu0 %v712
    %v835 = vpop.f32.mrf.mxu0
    %v836 = vadd.f32 %v771, %v835
    %837 = vmatmul.f32.gmra.mxu0 %v714
    %v838 = vpop.f32.mrf.mxu0
    %v839 = vadd.f32 %v774, %v838
    %840 = vmatmul.f32.gmra.mxu0 %v716
    %v841 = vpop.f32.mrf.mxu0
    %v842 = vadd.f32 %v777, %v841
    %843 = vmatmul.f32.gmra.mxu0 %v718
    %v844 = vpop.f32.mrf.mxu0
    %v845 = vadd.f32 %v780, %v844
    %846 = vmatmul.f32.gmra.mxu0 %v720
    %v847 = vpop.f32.mrf.mxu0
    %v848 = vadd.f32 %v783, %v847
    %849 = vmatmul.f32.gmra.mxu0 %v722
    %v850 = vpop.f32.mrf.mxu0
    %v851 = vadd.f32 %v786, %v850
    %852 = vdwg.mxu0
    %v853 = vld [vmem:[%s12] sm:$0xff]
    %v854 = vld [vmem:[%s12 + $0x8] sm:$0xff]
    %v855 = vld [vmem:[%s12 + $0x10] sm:$0xff]
    %v856 = vld [vmem:[%s12 + $0x18] sm:$0xff]
    %v857 = vld [vmem:[%s12 + $0x20] sm:$0xff]
    %v858 = vld [vmem:[%s12 + $0x28] sm:$0xff]
    %v859 = vld [vmem:[%s12 + $0x30] sm:$0xff]
    %v860 = vld [vmem:[%s12 + $0x38] sm:$0xff]
    %v861 = vld [vmem:[%s12 + $0x40] sm:$0xff]
    %v862 = vld [vmem:[%s12 + $0x48] sm:$0xff]
    %v863 = vld [vmem:[%s12 + $0x50] sm:$0xff]
    %v864 = vld [vmem:[%s12 + $0x58] sm:$0xff]
    %v865 = vld [vmem:[%s12 + $0x60] sm:$0xff]
    %v866 = vld [vmem:[%s12 + $0x68] sm:$0xff]
    %v867 = vld [vmem:[%s12 + $0x70] sm:$0xff]
    %v868 = vld [vmem:[%s12 + $0x78] sm:$0xff]
    %v869 = vld [vmem:[%s12 + $0x80] sm:$0xff]
    %v870 = vld [vmem:[%s12 + $0x88] sm:$0xff]
    %v871 = vld [vmem:[%s12 + $0x90] sm:$0xff]
    %v872 = vld [vmem:[%s12 + $0x98] sm:$0xff]
    %v873 = vld [vmem:[%s12 + $0xa0] sm:$0xff]
    %v874 = vld [vmem:[%s12 + $0xa8] sm:$0xff]
    %v875 = vld [vmem:[%s12 + $0xb0] sm:$0xff]
    %v876 = vld [vmem:[%s12 + $0xb8] sm:$0xff]
    %v877 = vld [vmem:[%s12 + $0xc0] sm:$0xff]
    %v878 = vld [vmem:[%s12 + $0xc8] sm:$0xff]
    %v879 = vld [vmem:[%s12 + $0xd0] sm:$0xff]
    %v880 = vld [vmem:[%s12 + $0xd8] sm:$0xff]
    %v881 = vld [vmem:[%s12 + $0xe0] sm:$0xff]
    %v882 = vld [vmem:[%s12 + $0xe8] sm:$0xff]
    %v883 = vld [vmem:[%s12 + $0xf0] sm:$0xff]
    %v884 = vld [vmem:[%s12 + $0xf8] sm:$0xff]
    %885 = vmatpush.msra.mxu0 %v642
    %886 = vmatpush.msra.mxu0 %v639
    %887 = vmatpush.msra.mxu0 %v636
    %888 = vmatpush.msra.mxu0 %v633
    %889 = vmatpush.msra.mxu0 %v630
    %890 = vmatpush.msra.mxu0 %v627
    %891 = vmatpush.msra.mxu0 %v624
    %892 = vmatpush.msra.mxu0 %v621
    %893 = vmatpush.msra.mxu0 %v618
    %894 = vmatpush.msra.mxu0 %v615
    %895 = vmatpush.msra.mxu0 %v612
    %896 = vmatpush.msra.mxu0 %v609
    %897 = vmatpush.msra.mxu0 %v606
    %898 = vmatpush.msra.mxu0 %v603
    %899 = vmatpush.msra.mxu0 %v600
    %900 = vmatpush.msra.mxu0 %v597
    %901 = vmatmul.f32.gmra.mxu0 %v853
    %v902 = vpop.f32.mrf.mxu0
    %v903 = vadd.f32 0.0, %v902
    %904 = vmatmul.f32.gmra.mxu0 %v855
    %v905 = vpop.f32.mrf.mxu0
    %v906 = vadd.f32 0.0, %v905
    %907 = vmatmul.f32.gmra.mxu0 %v857
    %v908 = vpop.f32.mrf.mxu0
    %v909 = vadd.f32 0.0, %v908
    %910 = vmatmul.f32.gmra.mxu0 %v859
    %v911 = vpop.f32.mrf.mxu0
    %v912 = vadd.f32 0.0, %v911
    %913 = vmatmul.f32.gmra.mxu0 %v861
    %v914 = vpop.f32.mrf.mxu0
    %v915 = vadd.f32 0.0, %v914
    %916 = vmatmul.f32.gmra.mxu0 %v863
    %v917 = vpop.f32.mrf.mxu0
    %v918 = vadd.f32 0.0, %v917
    %919 = vmatmul.f32.gmra.mxu0 %v865
    %v920 = vpop.f32.mrf.mxu0
    %v921 = vadd.f32 0.0, %v920
    %922 = vmatmul.f32.gmra.mxu0 %v867
    %v923 = vpop.f32.mrf.mxu0
    %v924 = vadd.f32 0.0, %v923
    %925 = vmatmul.f32.gmra.mxu0 %v869
    %v926 = vpop.f32.mrf.mxu0
    %v927 = vadd.f32 0.0, %v926
    %928 = vmatmul.f32.gmra.mxu0 %v871
    %v929 = vpop.f32.mrf.mxu0
    %v930 = vadd.f32 0.0, %v929
    %931 = vmatmul.f32.gmra.mxu0 %v873
    %v932 = vpop.f32.mrf.mxu0
    %v933 = vadd.f32 0.0, %v932
    %934 = vmatmul.f32.gmra.mxu0 %v875
    %v935 = vpop.f32.mrf.mxu0
    %v936 = vadd.f32 0.0, %v935
    %937 = vmatmul.f32.gmra.mxu0 %v877
    %v938 = vpop.f32.mrf.mxu0
    %v939 = vadd.f32 0.0, %v938
    %940 = vmatmul.f32.gmra.mxu0 %v879
    %v941 = vpop.f32.mrf.mxu0
    %v942 = vadd.f32 0.0, %v941
    %943 = vmatmul.f32.gmra.mxu0 %v881
    %v944 = vpop.f32.mrf.mxu0
    %v945 = vadd.f32 0.0, %v944
    %946 = vmatmul.f32.gmra.mxu0 %v883
    %v947 = vpop.f32.mrf.mxu0
    %v948 = vadd.f32 0.0, %v947
    %949 = vdwg.mxu0
    %950 = vmatpush.msra.mxu0 %v690
    %951 = vmatpush.msra.mxu0 %v687
    %952 = vmatpush.msra.mxu0 %v684
    %953 = vmatpush.msra.mxu0 %v681
    %954 = vmatpush.msra.mxu0 %v678
    %955 = vmatpush.msra.mxu0 %v675
    %956 = vmatpush.msra.mxu0 %v672
    %957 = vmatpush.msra.mxu0 %v669
    %958 = vmatpush.msra.mxu0 %v666
    %959 = vmatpush.msra.mxu0 %v663
    %960 = vmatpush.msra.mxu0 %v660
    %961 = vmatpush.msra.mxu0 %v657
    %962 = vmatpush.msra.mxu0 %v654
    %963 = vmatpush.msra.mxu0 %v651
    %964 = vmatpush.msra.mxu0 %v648
    %965 = vmatpush.msra.mxu0 %v645
    %966 = vmatmul.f32.gmra.mxu0 %v854
    %v967 = vpop.f32.mrf.mxu0
    %v968 = vadd.f32 %v903, %v967
    %969 = vmatmul.f32.gmra.mxu0 %v856
    %v970 = vpop.f32.mrf.mxu0
    %v971 = vadd.f32 %v906, %v970
    %972 = vmatmul.f32.gmra.mxu0 %v858
    %v973 = vpop.f32.mrf.mxu0
    %v974 = vadd.f32 %v909, %v973
    %975 = vmatmul.f32.gmra.mxu0 %v860
    %v976 = vpop.f32.mrf.mxu0
    %v977 = vadd.f32 %v912, %v976
    %978 = vmatmul.f32.gmra.mxu0 %v862
    %v979 = vpop.f32.mrf.mxu0
    %v980 = vadd.f32 %v915, %v979
    %981 = vmatmul.f32.gmra.mxu0 %v864
    %v982 = vpop.f32.mrf.mxu0
    %v983 = vadd.f32 %v918, %v982
    %984 = vmatmul.f32.gmra.mxu0 %v866
    %v985 = vpop.f32.mrf.mxu0
    %v986 = vadd.f32 %v921, %v985
    %987 = vmatmul.f32.gmra.mxu0 %v868
    %v988 = vpop.f32.mrf.mxu0
    %v989 = vadd.f32 %v924, %v988
    %990 = vmatmul.f32.gmra.mxu0 %v870
    %v991 = vpop.f32.mrf.mxu0
    %v992 = vadd.f32 %v927, %v991
    %993 = vmatmul.f32.gmra.mxu0 %v872
    %v994 = vpop.f32.mrf.mxu0
    %v995 = vadd.f32 %v930, %v994
    %996 = vmatmul.f32.gmra.mxu0 %v874
    %v997 = vpop.f32.mrf.mxu0
    %v998 = vadd.f32 %v933, %v997
    %999 = vmatmul.f32.gmra.mxu0 %v876
    %v1000 = vpop.f32.mrf.mxu0
    %v1001 = vadd.f32 %v936, %v1000
    %1002 = vmatmul.f32.gmra.mxu0 %v878
    %v1003 = vpop.f32.mrf.mxu0
    %v1004 = vadd.f32 %v939, %v1003
    %1005 = vmatmul.f32.gmra.mxu0 %v880
    %v1006 = vpop.f32.mrf.mxu0
    %v1007 = vadd.f32 %v942, %v1006
    %1008 = vmatmul.f32.gmra.mxu0 %v882
    %v1009 = vpop.f32.mrf.mxu0
    %v1010 = vadd.f32 %v945, %v1009
    %1011 = vmatmul.f32.gmra.mxu0 %v884
    %v1012 = vpop.f32.mrf.mxu0
    %v1013 = vadd.f32 %v948, %v1012
    %1014 = vdwg.mxu0
    %v1015 = vmax.f32 %v806, %v968
    %v1016 = vmax.f32 %v809, %v971
    %v1017 = vmax.f32 %v812, %v974
    %v1018 = vmax.f32 %v815, %v977
    %v1019 = vmax.f32 %v818, %v980
    %v1020 = vmax.f32 %v821, %v983
    %v1021 = vmax.f32 %v824, %v986
    %v1022 = vmax.f32 %v827, %v989
    %v1023 = vmax.f32 %v830, %v992
    %v1024 = vmax.f32 %v833, %v995
    %v1025 = vmax.f32 %v836, %v998
    %v1026 = vmax.f32 %v839, %v1001
    %v1027 = vmax.f32 %v842, %v1004
    %v1028 = vmax.f32 %v845, %v1007
    %v1029 = vmax.f32 %v848, %v1010
    %v1030 = vmax.f32 %v851, %v1013
    %v1031 = vld [vmem:[%s3] sm:$0xff]
    %v1032 = vld [vmem:[%s3 + $0x8] sm:$0xff]
    %v1033 = vld [vmem:[%s3 + $0x10] sm:$0xff]
    %v1034 = vld [vmem:[%s3 + $0x18] sm:$0xff]
    %v1035 = vld [vmem:[%s4] sm:$0x1]
    %v1037 = vperm.slane %v1035, 0
    %v1040 = vsel %vm594, %v1015, 0
    %v1043 = vsel %vm594, %v1016, 0
    %v1046 = vsel %vm594, %v1017, 0
    %v1049 = vsel %vm594, %v1018, 0
    %v1052 = vsel %vm594, %v1019, 0
    %v1055 = vsel %vm594, %v1020, 0
    %v1058 = vsel %vm594, %v1021, 0
    %v1061 = vsel %vm594, %v1022, 0
    %v1064 = vsel %vm594, %v1023, 0
    %v1067 = vsel %vm594, %v1024, 0
    %v1070 = vsel %vm594, %v1025, 0
    %v1073 = vsel %vm594, %v1026, 0
    %v1076 = vsel %vm594, %v1027, 0
    %v1079 = vsel %vm594, %v1028, 0
    %v1082 = vsel %vm594, %v1029, 0
    %v1085 = vsel %vm594, %v1030, 0
    %1087 = vmatpush.msra.mxu0 0.0
    %1088 = vmatpush.msra.mxu0 0.0
    %1089 = vmatpush.msra.mxu0 0.0
    %1090 = vmatpush.msra.mxu0 0.0
    %1091 = vmatpush.msra.mxu0 0.0
    %1092 = vmatpush.msra.mxu0 0.0
    %1093 = vmatpush.msra.mxu0 0.0
    %1094 = vmatpush.msra.mxu0 0.0
    %1095 = vmatpush.msra.mxu0 0.0
    %1096 = vmatpush.msra.mxu0 0.0
    %1097 = vmatpush.msra.mxu0 0.0
    %1098 = vmatpush.msra.mxu0 0.0
    %1099 = vmatpush.msra.mxu0 %v1034
    %1100 = vmatpush.msra.mxu0 %v1033
    %1101 = vmatpush.msra.mxu0 %v1032
    %1102 = vmatpush.msra.mxu0 %v1031
    %1103 = vmatmul.f32.gmra.mxu0 %v1040
    %v1104 = vpop.f32.mrf.mxu0
    %v1105 = vadd.f32 %v1037, %v1104
    %1106 = vmatmul.f32.gmra.mxu0 %v1043
    %v1107 = vpop.f32.mrf.mxu0
    %v1108 = vadd.f32 %v1037, %v1107
    %1109 = vmatmul.f32.gmra.mxu0 %v1046
    %v1110 = vpop.f32.mrf.mxu0
    %v1111 = vadd.f32 %v1037, %v1110
    %1112 = vmatmul.f32.gmra.mxu0 %v1049
    %v1113 = vpop.f32.mrf.mxu0
    %v1114 = vadd.f32 %v1037, %v1113
    %1115 = vmatmul.f32.gmra.mxu0 %v1052
    %v1116 = vpop.f32.mrf.mxu0
    %v1117 = vadd.f32 %v1037, %v1116
    %1118 = vmatmul.f32.gmra.mxu0 %v1055
    %v1119 = vpop.f32.mrf.mxu0
    %v1120 = vadd.f32 %v1037, %v1119
    %1121 = vmatmul.f32.gmra.mxu0 %v1058
    %v1122 = vpop.f32.mrf.mxu0
    %v1123 = vadd.f32 %v1037, %v1122
    %1124 = vmatmul.f32.gmra.mxu0 %v1061
    %v1125 = vpop.f32.mrf.mxu0
    %v1126 = vadd.f32 %v1037, %v1125
    %1127 = vmatmul.f32.gmra.mxu0 %v1064
    %v1128 = vpop.f32.mrf.mxu0
    %v1129 = vadd.f32 %v1037, %v1128
    %1130 = vmatmul.f32.gmra.mxu0 %v1067
    %v1131 = vpop.f32.mrf.mxu0
    %v1132 = vadd.f32 %v1037, %v1131
    %1133 = vmatmul.f32.gmra.mxu0 %v1070
    %v1134 = vpop.f32.mrf.mxu0
    %v1135 = vadd.f32 %v1037, %v1134
    %1136 = vmatmul.f32.gmra.mxu0 %v1073
    %v1137 = vpop.f32.mrf.mxu0
    %v1138 = vadd.f32 %v1037, %v1137
    %1139 = vmatmul.f32.gmra.mxu0 %v1076
    %v1140 = vpop.f32.mrf.mxu0
    %v1141 = vadd.f32 %v1037, %v1140
    %1142 = vmatmul.f32.gmra.mxu0 %v1079
    %v1143 = vpop.f32.mrf.mxu0
    %v1144 = vadd.f32 %v1037, %v1143
    %1145 = vmatmul.f32.gmra.mxu0 %v1082
    %v1146 = vpop.f32.mrf.mxu0
    %v1147 = vadd.f32 %v1037, %v1146
    %1148 = vmatmul.f32.gmra.mxu0 %v1085
    %v1149 = vpop.f32.mrf.mxu0
    %v1150 = vadd.f32 %v1037, %v1149
    %1151 = vdwg.mxu0
    %v1152 = vmax.f32 %v1105, 0.0
    %v1153 = vmax.f32 %v1108, 0.0
    %v1154 = vmax.f32 %v1111, 0.0
    %v1155 = vmax.f32 %v1114, 0.0
    %v1156 = vmax.f32 %v1117, 0.0
    %v1157 = vmax.f32 %v1120, 0.0
    %v1158 = vmax.f32 %v1123, 0.0
    %v1159 = vmax.f32 %v1126, 0.0
    %v1160 = vmax.f32 %v1129, 0.0
    %v1161 = vmax.f32 %v1132, 0.0
    %v1162 = vmax.f32 %v1135, 0.0
    %v1163 = vmax.f32 %v1138, 0.0
    %v1164 = vmax.f32 %v1141, 0.0
    %v1165 = vmax.f32 %v1144, 0.0
    %v1166 = vmax.f32 %v1147, 0.0
    %v1167 = vmax.f32 %v1150, 0.0
    %vm1168 = vcmask 130048
    %1169 = vst.msk [vmem:[#allocation2] sm:$0xff] %vm1168, 0.0
    %vm1170 = vcmask 123904
    %1171 = vst.msk [vmem:[#allocation2 + $0x8] sm:$0x3] %vm1170, 0.0
    %1172 = vst.msk [vmem:[#allocation2 + $0x10] sm:$0xff] %vm1168, 0.0
    %1173 = vst.msk [vmem:[#allocation2 + $0x18] sm:$0x3] %vm1170, 0.0
    %1174 = vst.msk [vmem:[#allocation2 + $0x20] sm:$0xff] %vm1168, 0.0
    %1175 = vst.msk [vmem:[#allocation2 + $0x28] sm:$0x3] %vm1170, 0.0
    %1176 = vst.msk [vmem:[#allocation2 + $0x30] sm:$0xff] %vm1168, 0.0
    %1177 = vst.msk [vmem:[#allocation2 + $0x38] sm:$0x3] %vm1170, 0.0
    %1178 = vst.msk [vmem:[#allocation2 + $0x40] sm:$0xff] %vm1168, 0.0
    %1179 = vst.msk [vmem:[#allocation2 + $0x48] sm:$0x3] %vm1170, 0.0
    %1180 = vst.msk [vmem:[#allocation2 + $0x50] sm:$0xff] %vm1168, 0.0
    %1181 = vst.msk [vmem:[#allocation2 + $0x58] sm:$0x3] %vm1170, 0.0
    %1182 = vst.msk [vmem:[#allocation2 + $0x60] sm:$0xff] %vm1168, 0.0
    %1183 = vst.msk [vmem:[#allocation2 + $0x68] sm:$0x3] %vm1170, 0.0
    %1184 = vst.msk [vmem:[#allocation2 + $0x70] sm:$0xff] %vm1168, 0.0
    %1185 = vst.msk [vmem:[#allocation2 + $0x78] sm:$0x3] %vm1170, 0.0
    %1186 = vst.msk [vmem:[#allocation2 + $0x80] sm:$0xff] %vm1168, 0.0
    %1187 = vst.msk [vmem:[#allocation2 + $0x88] sm:$0x3] %vm1170, 0.0
    %1188 = vst.msk [vmem:[#allocation2 + $0x90] sm:$0xff] %vm1168, 0.0
    %1189 = vst.msk [vmem:[#allocation2 + $0x98] sm:$0x3] %vm1170, 0.0
    %1190 = vst.msk [vmem:[#allocation2 + $0xa0] sm:$0xff] %vm1168, 0.0
    %1191 = vst.msk [vmem:[#allocation2 + $0xa8] sm:$0x3] %vm1170, 0.0
    %1192 = vst.msk [vmem:[#allocation2 + $0xb0] sm:$0xff] %vm1168, 0.0
    %1193 = vst.msk [vmem:[#allocation2 + $0xb8] sm:$0x3] %vm1170, 0.0
    %1194 = vst.msk [vmem:[#allocation2 + $0xc0] sm:$0xff] %vm1168, 0.0
    %1195 = vst.msk [vmem:[#allocation2 + $0xc8] sm:$0x3] %vm1170, 0.0
    %1196 = vst.msk [vmem:[#allocation2 + $0xd0] sm:$0xff] %vm1168, 0.0
    %1197 = vst.msk [vmem:[#allocation2 + $0xd8] sm:$0x3] %vm1170, 0.0
    %1198 = vst.msk [vmem:[#allocation2 + $0xe0] sm:$0xff] %vm1168, 0.0
    %1199 = vst.msk [vmem:[#allocation2 + $0xe8] sm:$0x3] %vm1170, 0.0
    %1200 = vst.msk [vmem:[#allocation2 + $0xf0] sm:$0xff] %vm1168, 0.0
    %1201 = vst.msk [vmem:[#allocation2 + $0xf8] sm:$0x3] %vm1170, 0.0
    %1202 = vst.msk [vmem:[#allocation2 + $0x100] sm:$0xff] %vm1168, 0.0
    %1203 = vst.msk [vmem:[#allocation2 + $0x108] sm:$0x3] %vm1170, 0.0
    %1204 = vst.msk [vmem:[#allocation2 + $0x110] sm:$0xff] %vm1168, 0.0
    %1205 = vst.msk [vmem:[#allocation2 + $0x118] sm:$0x3] %vm1170, 0.0
    %1206 = vst.msk [vmem:[#allocation2 + $0x120] sm:$0xff] %vm1168, 0.0
    %1207 = vst.msk [vmem:[#allocation2 + $0x128] sm:$0x3] %vm1170, 0.0
    %1208 = vst.msk [vmem:[#allocation2 + $0x130] sm:$0xff] %vm1168, 0.0
    %1209 = vst.msk [vmem:[#allocation2 + $0x138] sm:$0x3] %vm1170, 0.0
    %s1210 = scalar_lea.vmem [#allocation2], 16
    %1211 = vst.msk [vmem:[%s1210 + $0x1] sm:$0xff] %vm1168, %v1152
    %1212 = vst.msk [vmem:[%s1210 + $0x11] sm:$0xff] %vm1168, %v1153
    %1213 = vst.msk [vmem:[%s1210 + $0x21] sm:$0xff] %vm1168, %v1154
    %1214 = vst.msk [vmem:[%s1210 + $0x31] sm:$0xff] %vm1168, %v1155
    %1215 = vst.msk [vmem:[%s1210 + $0x41] sm:$0xff] %vm1168, %v1156
    %1216 = vst.msk [vmem:[%s1210 + $0x51] sm:$0xff] %vm1168, %v1157
    %1217 = vst.msk [vmem:[%s1210 + $0x61] sm:$0xff] %vm1168, %v1158
    %1218 = vst.msk [vmem:[%s1210 + $0x71] sm:$0xff] %vm1168, %v1159
    %1219 = vst.msk [vmem:[%s1210 + $0xa1] sm:$0xff] %vm1168, %v1160
    %1220 = vst.msk [vmem:[%s1210 + $0xb1] sm:$0xff] %vm1168, %v1161
    %1221 = vst.msk [vmem:[%s1210 + $0xc1] sm:$0xff] %vm1168, %v1162
    %1222 = vst.msk [vmem:[%s1210 + $0xd1] sm:$0xff] %vm1168, %v1163
    %1223 = vst.msk [vmem:[%s1210 + $0xe1] sm:$0xff] %vm1168, %v1164
    %1224 = vst.msk [vmem:[%s1210 + $0xf1] sm:$0xff] %vm1168, %v1165
    %1225 = vst.msk [vmem:[%s1210 + $0x101] sm:$0xff] %vm1168, %v1166
    %1226 = vst.msk [vmem:[%s1210 + $0x111] sm:$0xff] %vm1168, %v1167
    %v1227 = vld [vmem:[#allocation2] sm:$0xff]
    %v1228 = vld [vmem:[#allocation2 + $0x10] sm:$0xff]
    %v1229 = vld [vmem:[#allocation2 + $0x20] sm:$0xff]
    %v1230 = vld [vmem:[#allocation2 + $0x30] sm:$0xff]
    %v1231 = vld [vmem:[#allocation2 + $0x40] sm:$0xff]
    %v1232 = vld [vmem:[#allocation2 + $0x50] sm:$0xff]
    %v1233 = vld [vmem:[#allocation2 + $0x60] sm:$0xff]
    %v1234 = vld [vmem:[#allocation2 + $0x70] sm:$0xff]
    %v1235 = vld [vmem:[#allocation2 + $0xa0] sm:$0xff]
    %v1236 = vld [vmem:[#allocation2 + $0xb0] sm:$0xff]
    %v1237 = vld [vmem:[#allocation2 + $0xc0] sm:$0xff]
    %v1238 = vld [vmem:[#allocation2 + $0xd0] sm:$0xff]
    %v1239 = vld [vmem:[#allocation2 + $0xe0] sm:$0xff]
    %v1240 = vld [vmem:[#allocation2 + $0xf0] sm:$0xff]
    %v1241 = vld [vmem:[#allocation2 + $0x100] sm:$0xff]
    %v1242 = vld [vmem:[#allocation2 + $0x110] sm:$0xff]
    %v1243 = vld [vmem:[#allocation2 + $0x1] sm:$0xff]
    %v1244 = vld [vmem:[#allocation2 + $0x11] sm:$0xff]
    %v1245 = vld [vmem:[#allocation2 + $0x21] sm:$0xff]
    %v1246 = vld [vmem:[#allocation2 + $0x31] sm:$0xff]
    %v1247 = vld [vmem:[#allocation2 + $0x41] sm:$0xff]
    %v1248 = vld [vmem:[#allocation2 + $0x51] sm:$0xff]
    %v1249 = vld [vmem:[#allocation2 + $0x61] sm:$0xff]
    %v1250 = vld [vmem:[#allocation2 + $0x71] sm:$0xff]
    %v1251 = vld [vmem:[#allocation2 + $0xa1] sm:$0xff]
    %v1252 = vld [vmem:[#allocation2 + $0xb1] sm:$0xff]
    %v1253 = vld [vmem:[#allocation2 + $0xc1] sm:$0xff]
    %v1254 = vld [vmem:[#allocation2 + $0xd1] sm:$0xff]
    %v1255 = vld [vmem:[#allocation2 + $0xe1] sm:$0xff]
    %v1256 = vld [vmem:[#allocation2 + $0xf1] sm:$0xff]
    %v1257 = vld [vmem:[#allocation2 + $0x101] sm:$0xff]
    %v1258 = vld [vmem:[#allocation2 + $0x111] sm:$0xff]
    %v1259 = vld [vmem:[#allocation2 + $0x2] sm:$0xff]
    %v1260 = vld [vmem:[#allocation2 + $0x12] sm:$0xff]
    %v1261 = vld [vmem:[#allocation2 + $0x22] sm:$0xff]
    %v1262 = vld [vmem:[#allocation2 + $0x32] sm:$0xff]
    %v1263 = vld [vmem:[#allocation2 + $0x42] sm:$0xff]
    %v1264 = vld [vmem:[#allocation2 + $0x52] sm:$0xff]
    %v1265 = vld [vmem:[#allocation2 + $0x62] sm:$0xff]
    %v1266 = vld [vmem:[#allocation2 + $0x72] sm:$0xff]
    %v1267 = vld [vmem:[#allocation2 + $0xa2] sm:$0xff]
    %v1268 = vld [vmem:[#allocation2 + $0xb2] sm:$0xff]
    %v1269 = vld [vmem:[#allocation2 + $0xc2] sm:$0xff]
    %v1270 = vld [vmem:[#allocation2 + $0xd2] sm:$0xff]
    %v1271 = vld [vmem:[#allocation2 + $0xe2] sm:$0xff]
    %v1272 = vld [vmem:[#allocation2 + $0xf2] sm:$0xff]
    %v1273 = vld [vmem:[#allocation2 + $0x102] sm:$0xff]
    %v1274 = vld [vmem:[#allocation2 + $0x112] sm:$0xff]
    %v1275 = vld [vmem:[%s1210] sm:$0xff]
    %v1276 = vld [vmem:[%s1210 + $0x10] sm:$0xff]
    %v1277 = vld [vmem:[%s1210 + $0x20] sm:$0xff]
    %v1278 = vld [vmem:[%s1210 + $0x30] sm:$0xff]
    %v1279 = vld [vmem:[%s1210 + $0x40] sm:$0xff]
    %v1280 = vld [vmem:[%s1210 + $0x50] sm:$0xff]
    %v1281 = vld [vmem:[%s1210 + $0x60] sm:$0xff]
    %v1282 = vld [vmem:[%s1210 + $0x70] sm:$0xff]
    %v1283 = vld [vmem:[%s1210 + $0xa0] sm:$0xff]
    %v1284 = vld [vmem:[%s1210 + $0xb0] sm:$0xff]
    %v1285 = vld [vmem:[%s1210 + $0xc0] sm:$0xff]
    %v1286 = vld [vmem:[%s1210 + $0xd0] sm:$0xff]
    %v1287 = vld [vmem:[%s1210 + $0xe0] sm:$0xff]
    %v1288 = vld [vmem:[%s1210 + $0xf0] sm:$0xff]
    %v1289 = vld [vmem:[%s1210 + $0x100] sm:$0xff]
    %v1290 = vld [vmem:[%s1210 + $0x110] sm:$0xff]
    %v1291 = vld [vmem:[%s1210 + $0x1] sm:$0xff]
    %v1292 = vld [vmem:[%s1210 + $0x11] sm:$0xff]
    %v1293 = vld [vmem:[%s1210 + $0x21] sm:$0xff]
    %v1294 = vld [vmem:[%s1210 + $0x31] sm:$0xff]
    %v1295 = vld [vmem:[%s1210 + $0x41] sm:$0xff]
    %v1296 = vld [vmem:[%s1210 + $0x51] sm:$0xff]
    %v1297 = vld [vmem:[%s1210 + $0x61] sm:$0xff]
    %v1298 = vld [vmem:[%s1210 + $0x71] sm:$0xff]
    %v1299 = vld [vmem:[%s1210 + $0xa1] sm:$0xff]
    %v1300 = vld [vmem:[%s1210 + $0xb1] sm:$0xff]
    %v1301 = vld [vmem:[%s1210 + $0xc1] sm:$0xff]
    %v1302 = vld [vmem:[%s1210 + $0xd1] sm:$0xff]
    %v1303 = vld [vmem:[%s1210 + $0xe1] sm:$0xff]
    %v1304 = vld [vmem:[%s1210 + $0xf1] sm:$0xff]
    %v1305 = vld [vmem:[%s1210 + $0x101] sm:$0xff]
    %v1306 = vld [vmem:[%s1210 + $0x111] sm:$0xff]
    %v1307 = vld [vmem:[%s1210 + $0x2] sm:$0xff]
    %v1308 = vld [vmem:[%s1210 + $0x12] sm:$0xff]
    %v1309 = vld [vmem:[%s1210 + $0x22] sm:$0xff]
    %v1310 = vld [vmem:[%s1210 + $0x32] sm:$0xff]
    %v1311 = vld [vmem:[%s1210 + $0x42] sm:$0xff]
    %v1312 = vld [vmem:[%s1210 + $0x52] sm:$0xff]
    %v1313 = vld [vmem:[%s1210 + $0x62] sm:$0xff]
    %v1314 = vld [vmem:[%s1210 + $0x72] sm:$0xff]
    %v1315 = vld [vmem:[%s1210 + $0xa2] sm:$0xff]
    %v1316 = vld [vmem:[%s1210 + $0xb2] sm:$0xff]
    %v1317 = vld [vmem:[%s1210 + $0xc2] sm:$0xff]
    %v1318 = vld [vmem:[%s1210 + $0xd2] sm:$0xff]
    %v1319 = vld [vmem:[%s1210 + $0xe2] sm:$0xff]
    %v1320 = vld [vmem:[%s1210 + $0xf2] sm:$0xff]
    %v1321 = vld [vmem:[%s1210 + $0x102] sm:$0xff]
    %v1322 = vld [vmem:[%s1210 + $0x112] sm:$0xff]
    %s1323 = scalar_lea.vmem [#allocation2], 32
    %v1324 = vld [vmem:[%s1323] sm:$0xff]
    %v1325 = vld [vmem:[%s1323 + $0x10] sm:$0xff]
    %v1326 = vld [vmem:[%s1323 + $0x20] sm:$0xff]
    %v1327 = vld [vmem:[%s1323 + $0x30] sm:$0xff]
    %v1328 = vld [vmem:[%s1323 + $0x40] sm:$0xff]
    %v1329 = vld [vmem:[%s1323 + $0x50] sm:$0xff]
    %v1330 = vld [vmem:[%s1323 + $0x60] sm:$0xff]
    %v1331 = vld [vmem:[%s1323 + $0x70] sm:$0xff]
    %v1332 = vld [vmem:[%s1323 + $0xa0] sm:$0xff]
    %v1333 = vld [vmem:[%s1323 + $0xb0] sm:$0xff]
    %v1334 = vld [vmem:[%s1323 + $0xc0] sm:$0xff]
    %v1335 = vld [vmem:[%s1323 + $0xd0] sm:$0xff]
    %v1336 = vld [vmem:[%s1323 + $0xe0] sm:$0xff]
    %v1337 = vld [vmem:[%s1323 + $0xf0] sm:$0xff]
    %v1338 = vld [vmem:[%s1323 + $0x100] sm:$0xff]
    %v1339 = vld [vmem:[%s1323 + $0x110] sm:$0xff]
    %v1340 = vld [vmem:[%s1323 + $0x1] sm:$0xff]
    %v1341 = vld [vmem:[%s1323 + $0x11] sm:$0xff]
    %v1342 = vld [vmem:[%s1323 + $0x21] sm:$0xff]
    %v1343 = vld [vmem:[%s1323 + $0x31] sm:$0xff]
    %v1344 = vld [vmem:[%s1323 + $0x41] sm:$0xff]
    %v1345 = vld [vmem:[%s1323 + $0x51] sm:$0xff]
    %v1346 = vld [vmem:[%s1323 + $0x61] sm:$0xff]
    %v1347 = vld [vmem:[%s1323 + $0x71] sm:$0xff]
    %v1348 = vld [vmem:[%s1323 + $0xa1] sm:$0xff]
    %v1349 = vld [vmem:[%s1323 + $0xb1] sm:$0xff]
    %v1350 = vld [vmem:[%s1323 + $0xc1] sm:$0xff]
    %v1351 = vld [vmem:[%s1323 + $0xd1] sm:$0xff]
    %v1352 = vld [vmem:[%s1323 + $0xe1] sm:$0xff]
    %v1353 = vld [vmem:[%s1323 + $0xf1] sm:$0xff]
    %v1354 = vld [vmem:[%s1323 + $0x101] sm:$0xff]
    %v1355 = vld [vmem:[%s1323 + $0x111] sm:$0xff]
    %v1356 = vld [vmem:[%s1323 + $0x2] sm:$0xff]
    %v1357 = vld [vmem:[%s1323 + $0x12] sm:$0xff]
    %v1358 = vld [vmem:[%s1323 + $0x22] sm:$0xff]
    %v1359 = vld [vmem:[%s1323 + $0x32] sm:$0xff]
    %v1360 = vld [vmem:[%s1323 + $0x42] sm:$0xff]
    %v1361 = vld [vmem:[%s1323 + $0x52] sm:$0xff]
    %v1362 = vld [vmem:[%s1323 + $0x62] sm:$0xff]
    %v1363 = vld [vmem:[%s1323 + $0x72] sm:$0xff]
    %v1364 = vld [vmem:[%s1323 + $0xa2] sm:$0xff]
    %v1365 = vld [vmem:[%s1323 + $0xb2] sm:$0xff]
    %v1366 = vld [vmem:[%s1323 + $0xc2] sm:$0xff]
    %v1367 = vld [vmem:[%s1323 + $0xd2] sm:$0xff]
    %v1368 = vld [vmem:[%s1323 + $0xe2] sm:$0xff]
    %v1369 = vld [vmem:[%s1323 + $0xf2] sm:$0xff]
    %v1370 = vld [vmem:[%s1323 + $0x102] sm:$0xff]
    %v1371 = vld [vmem:[%s1323 + $0x112] sm:$0xff]
    %1388 = vrot.lane.b32.xlu0 %v1243, 16
    %v1389 = vpop.permute.xlu0 %1388
    %1390 = vrot.lane.b32.xlu0 %v1244, 16
    %v1391 = vpop.permute.xlu0 %1390
    %1392 = vrot.lane.b32.xlu0 %v1245, 16
    %v1393 = vpop.permute.xlu0 %1392
    %1394 = vrot.lane.b32.xlu0 %v1246, 16
    %v1395 = vpop.permute.xlu0 %1394
    %1396 = vrot.lane.b32.xlu0 %v1247, 16
    %v1397 = vpop.permute.xlu0 %1396
    %1398 = vrot.lane.b32.xlu0 %v1248, 16
    %v1399 = vpop.permute.xlu0 %1398
    %1400 = vrot.lane.b32.xlu0 %v1249, 16
    %v1401 = vpop.permute.xlu0 %1400
    %1402 = vrot.lane.b32.xlu0 %v1250, 16
    %v1403 = vpop.permute.xlu0 %1402
    %1404 = vrot.lane.b32.xlu0 %v1251, 16
    %v1405 = vpop.permute.xlu0 %1404
    %1406 = vrot.lane.b32.xlu0 %v1252, 16
    %v1407 = vpop.permute.xlu0 %1406
    %1408 = vrot.lane.b32.xlu0 %v1253, 16
    %v1409 = vpop.permute.xlu0 %1408
    %1410 = vrot.lane.b32.xlu0 %v1254, 16
    %v1411 = vpop.permute.xlu0 %1410
    %1412 = vrot.lane.b32.xlu0 %v1255, 16
    %v1413 = vpop.permute.xlu0 %1412
    %1414 = vrot.lane.b32.xlu0 %v1256, 16
    %v1415 = vpop.permute.xlu0 %1414
    %1416 = vrot.lane.b32.xlu0 %v1257, 16
    %v1417 = vpop.permute.xlu0 %1416
    %1418 = vrot.lane.b32.xlu0 %v1258, 16
    %v1419 = vpop.permute.xlu0 %1418
    %1452 = vrot.lane.b32.xlu0 %v1259, 32
    %v1453 = vpop.permute.xlu0 %1452
    %1454 = vrot.lane.b32.xlu0 %v1260, 32
    %v1455 = vpop.permute.xlu0 %1454
    %1456 = vrot.lane.b32.xlu0 %v1261, 32
    %v1457 = vpop.permute.xlu0 %1456
    %1458 = vrot.lane.b32.xlu0 %v1262, 32
    %v1459 = vpop.permute.xlu0 %1458
    %1460 = vrot.lane.b32.xlu0 %v1263, 32
    %v1461 = vpop.permute.xlu0 %1460
    %1462 = vrot.lane.b32.xlu0 %v1264, 32
    %v1463 = vpop.permute.xlu0 %1462
    %1464 = vrot.lane.b32.xlu0 %v1265, 32
    %v1465 = vpop.permute.xlu0 %1464
    %1466 = vrot.lane.b32.xlu0 %v1266, 32
    %v1467 = vpop.permute.xlu0 %1466
    %1468 = vrot.lane.b32.xlu0 %v1267, 32
    %v1469 = vpop.permute.xlu0 %1468
    %1470 = vrot.lane.b32.xlu0 %v1268, 32
    %v1471 = vpop.permute.xlu0 %1470
    %1472 = vrot.lane.b32.xlu0 %v1269, 32
    %v1473 = vpop.permute.xlu0 %1472
    %1474 = vrot.lane.b32.xlu0 %v1270, 32
    %v1475 = vpop.permute.xlu0 %1474
    %1476 = vrot.lane.b32.xlu0 %v1271, 32
    %v1477 = vpop.permute.xlu0 %1476
    %1478 = vrot.lane.b32.xlu0 %v1272, 32
    %v1479 = vpop.permute.xlu0 %1478
    %1480 = vrot.lane.b32.xlu0 %v1273, 32
    %v1481 = vpop.permute.xlu0 %1480
    %1482 = vrot.lane.b32.xlu0 %v1274, 32
    %v1483 = vpop.permute.xlu0 %1482
    %1516 = vrot.lane.b32.xlu0 %v1275, 48
    %v1517 = vpop.permute.xlu0 %1516
    %1518 = vrot.lane.b32.xlu0 %v1276, 48
    %v1519 = vpop.permute.xlu0 %1518
    %1520 = vrot.lane.b32.xlu0 %v1277, 48
    %v1521 = vpop.permute.xlu0 %1520
    %1522 = vrot.lane.b32.xlu0 %v1278, 48
    %v1523 = vpop.permute.xlu0 %1522
    %1524 = vrot.lane.b32.xlu0 %v1279, 48
    %v1525 = vpop.permute.xlu0 %1524
    %1526 = vrot.lane.b32.xlu0 %v1280, 48
    %v1527 = vpop.permute.xlu0 %1526
    %1528 = vrot.lane.b32.xlu0 %v1281, 48
    %v1529 = vpop.permute.xlu0 %1528
    %1530 = vrot.lane.b32.xlu0 %v1282, 48
    %v1531 = vpop.permute.xlu0 %1530
    %1532 = vrot.lane.b32.xlu0 %v1283, 48
    %v1533 = vpop.permute.xlu0 %1532
    %1534 = vrot.lane.b32.xlu0 %v1284, 48
    %v1535 = vpop.permute.xlu0 %1534
    %1536 = vrot.lane.b32.xlu0 %v1285, 48
    %v1537 = vpop.permute.xlu0 %1536
    %1538 = vrot.lane.b32.xlu0 %v1286, 48
    %v1539 = vpop.permute.xlu0 %1538
    %1540 = vrot.lane.b32.xlu0 %v1287, 48
    %v1541 = vpop.permute.xlu0 %1540
    %1542 = vrot.lane.b32.xlu0 %v1288, 48
    %v1543 = vpop.permute.xlu0 %1542
    %1544 = vrot.lane.b32.xlu0 %v1289, 48
    %v1545 = vpop.permute.xlu0 %1544
    %1546 = vrot.lane.b32.xlu0 %v1290, 48
    %v1547 = vpop.permute.xlu0 %1546
    %1580 = vrot.lane.b32.xlu0 %v1291, 64
    %v1581 = vpop.permute.xlu0 %1580
    %1582 = vrot.lane.b32.xlu0 %v1292, 64
    %v1583 = vpop.permute.xlu0 %1582
    %1584 = vrot.lane.b32.xlu0 %v1293, 64
    %v1585 = vpop.permute.xlu0 %1584
    %1586 = vrot.lane.b32.xlu0 %v1294, 64
    %v1587 = vpop.permute.xlu0 %1586
    %1588 = vrot.lane.b32.xlu0 %v1295, 64
    %v1589 = vpop.permute.xlu0 %1588
    %1590 = vrot.lane.b32.xlu0 %v1296, 64
    %v1591 = vpop.permute.xlu0 %1590
    %1592 = vrot.lane.b32.xlu0 %v1297, 64
    %v1593 = vpop.permute.xlu0 %1592
    %1594 = vrot.lane.b32.xlu0 %v1298, 64
    %v1595 = vpop.permute.xlu0 %1594
    %1596 = vrot.lane.b32.xlu0 %v1299, 64
    %v1597 = vpop.permute.xlu0 %1596
    %1598 = vrot.lane.b32.xlu0 %v1300, 64
    %v1599 = vpop.permute.xlu0 %1598
    %1600 = vrot.lane.b32.xlu0 %v1301, 64
    %v1601 = vpop.permute.xlu0 %1600
    %1602 = vrot.lane.b32.xlu0 %v1302, 64
    %v1603 = vpop.permute.xlu0 %1602
    %1604 = vrot.lane.b32.xlu0 %v1303, 64
    %v1605 = vpop.permute.xlu0 %1604
    %1606 = vrot.lane.b32.xlu0 %v1304, 64
    %v1607 = vpop.permute.xlu0 %1606
    %1608 = vrot.lane.b32.xlu0 %v1305, 64
    %v1609 = vpop.permute.xlu0 %1608
    %1610 = vrot.lane.b32.xlu0 %v1306, 64
    %v1611 = vpop.permute.xlu0 %1610
    %1644 = vrot.lane.b32.xlu0 %v1307, 80
    %v1645 = vpop.permute.xlu0 %1644
    %1646 = vrot.lane.b32.xlu0 %v1308, 80
    %v1647 = vpop.permute.xlu0 %1646
    %1648 = vrot.lane.b32.xlu0 %v1309, 80
    %v1649 = vpop.permute.xlu0 %1648
    %1650 = vrot.lane.b32.xlu0 %v1310, 80
    %v1651 = vpop.permute.xlu0 %1650
    %1652 = vrot.lane.b32.xlu0 %v1311, 80
    %v1653 = vpop.permute.xlu0 %1652
    %1654 = vrot.lane.b32.xlu0 %v1312, 80
    %v1655 = vpop.permute.xlu0 %1654
    %1656 = vrot.lane.b32.xlu0 %v1313, 80
    %v1657 = vpop.permute.xlu0 %1656
    %1658 = vrot.lane.b32.xlu0 %v1314, 80
    %v1659 = vpop.permute.xlu0 %1658
    %1660 = vrot.lane.b32.xlu0 %v1315, 80
    %v1661 = vpop.permute.xlu0 %1660
    %1662 = vrot.lane.b32.xlu0 %v1316, 80
    %v1663 = vpop.permute.xlu0 %1662
    %1664 = vrot.lane.b32.xlu0 %v1317, 80
    %v1665 = vpop.permute.xlu0 %1664
    %1666 = vrot.lane.b32.xlu0 %v1318, 80
    %v1667 = vpop.permute.xlu0 %1666
    %1668 = vrot.lane.b32.xlu0 %v1319, 80
    %v1669 = vpop.permute.xlu0 %1668
    %1670 = vrot.lane.b32.xlu0 %v1320, 80
    %v1671 = vpop.permute.xlu0 %1670
    %1672 = vrot.lane.b32.xlu0 %v1321, 80
    %v1673 = vpop.permute.xlu0 %1672
    %1674 = vrot.lane.b32.xlu0 %v1322, 80
    %v1675 = vpop.permute.xlu0 %1674
    %1708 = vrot.lane.b32.xlu0 %v1324, 96
    %v1709 = vpop.permute.xlu0 %1708
    %1710 = vrot.lane.b32.xlu0 %v1325, 96
    %v1711 = vpop.permute.xlu0 %1710
    %1712 = vrot.lane.b32.xlu0 %v1326, 96
    %v1713 = vpop.permute.xlu0 %1712
    %1714 = vrot.lane.b32.xlu0 %v1327, 96
    %v1715 = vpop.permute.xlu0 %1714
    %1716 = vrot.lane.b32.xlu0 %v1328, 96
    %v1717 = vpop.permute.xlu0 %1716
    %1718 = vrot.lane.b32.xlu0 %v1329, 96
    %v1719 = vpop.permute.xlu0 %1718
    %1720 = vrot.lane.b32.xlu0 %v1330, 96
    %v1721 = vpop.permute.xlu0 %1720
    %1722 = vrot.lane.b32.xlu0 %v1331, 96
    %v1723 = vpop.permute.xlu0 %1722
    %1724 = vrot.lane.b32.xlu0 %v1332, 96
    %v1725 = vpop.permute.xlu0 %1724
    %1726 = vrot.lane.b32.xlu0 %v1333, 96
    %v1727 = vpop.permute.xlu0 %1726
    %1728 = vrot.lane.b32.xlu0 %v1334, 96
    %v1729 = vpop.permute.xlu0 %1728
    %1730 = vrot.lane.b32.xlu0 %v1335, 96
    %v1731 = vpop.permute.xlu0 %1730
    %1732 = vrot.lane.b32.xlu0 %v1336, 96
    %v1733 = vpop.permute.xlu0 %1732
    %1734 = vrot.lane.b32.xlu0 %v1337, 96
    %v1735 = vpop.permute.xlu0 %1734
    %1736 = vrot.lane.b32.xlu0 %v1338, 96
    %v1737 = vpop.permute.xlu0 %1736
    %1738 = vrot.lane.b32.xlu0 %v1339, 96
    %v1739 = vpop.permute.xlu0 %1738
    %1772 = vrot.lane.b32.xlu0 %v1340, 112
    %v1773 = vpop.permute.xlu0 %1772
    %1774 = vrot.lane.b32.xlu0 %v1341, 112
    %v1775 = vpop.permute.xlu0 %1774
    %1776 = vrot.lane.b32.xlu0 %v1342, 112
    %v1777 = vpop.permute.xlu0 %1776
    %1778 = vrot.lane.b32.xlu0 %v1343, 112
    %v1779 = vpop.permute.xlu0 %1778
    %1780 = vrot.lane.b32.xlu0 %v1344, 112
    %v1781 = vpop.permute.xlu0 %1780
    %1782 = vrot.lane.b32.xlu0 %v1345, 112
    %v1783 = vpop.permute.xlu0 %1782
    %1784 = vrot.lane.b32.xlu0 %v1346, 112
    %v1785 = vpop.permute.xlu0 %1784
    %1786 = vrot.lane.b32.xlu0 %v1347, 112
    %v1787 = vpop.permute.xlu0 %1786
    %1788 = vrot.lane.b32.xlu0 %v1348, 112
    %v1789 = vpop.permute.xlu0 %1788
    %1790 = vrot.lane.b32.xlu0 %v1349, 112
    %v1791 = vpop.permute.xlu0 %1790
    %1792 = vrot.lane.b32.xlu0 %v1350, 112
    %v1793 = vpop.permute.xlu0 %1792
    %1794 = vrot.lane.b32.xlu0 %v1351, 112
    %v1795 = vpop.permute.xlu0 %1794
    %1796 = vrot.lane.b32.xlu0 %v1352, 112
    %v1797 = vpop.permute.xlu0 %1796
    %1798 = vrot.lane.b32.xlu0 %v1353, 112
    %v1799 = vpop.permute.xlu0 %1798
    %1800 = vrot.lane.b32.xlu0 %v1354, 112
    %v1801 = vpop.permute.xlu0 %1800
    %1802 = vrot.lane.b32.xlu0 %v1355, 112
    %v1803 = vpop.permute.xlu0 %1802
    %v1820 = vsel %vm1168, %v1227, %v1389
    %v1821 = vsel %vm1168, %v1228, %v1391
    %v1822 = vsel %vm1168, %v1229, %v1393
    %v1823 = vsel %vm1168, %v1230, %v1395
    %v1824 = vsel %vm1168, %v1231, %v1397
    %v1825 = vsel %vm1168, %v1232, %v1399
    %v1826 = vsel %vm1168, %v1233, %v1401
    %v1827 = vsel %vm1168, %v1234, %v1403
    %v1828 = vsel %vm1168, %v1235, %v1405
    %v1829 = vsel %vm1168, %v1236, %v1407
    %v1830 = vsel %vm1168, %v1237, %v1409
    %v1831 = vsel %vm1168, %v1238, %v1411
    %v1832 = vsel %vm1168, %v1239, %v1413
    %v1833 = vsel %vm1168, %v1240, %v1415
    %v1834 = vsel %vm1168, %v1241, %v1417
    %v1835 = vsel %vm1168, %v1242, %v1419
    %v1836 = vsel %vm594, %v1820, %v1453
    %v1837 = vsel %vm594, %v1821, %v1455
    %v1838 = vsel %vm594, %v1822, %v1457
    %v1839 = vsel %vm594, %v1823, %v1459
    %v1840 = vsel %vm594, %v1824, %v1461
    %v1841 = vsel %vm594, %v1825, %v1463
    %v1842 = vsel %vm594, %v1826, %v1465
    %v1843 = vsel %vm594, %v1827, %v1467
    %v1844 = vsel %vm594, %v1828, %v1469
    %v1845 = vsel %vm594, %v1829, %v1471
    %v1846 = vsel %vm594, %v1830, %v1473
    %v1847 = vsel %vm594, %v1831, %v1475
    %v1848 = vsel %vm594, %v1832, %v1477
    %v1849 = vsel %vm594, %v1833, %v1479
    %v1850 = vsel %vm594, %v1834, %v1481
    %v1851 = vsel %vm594, %v1835, %v1483
    %vm1852 = vcmask 392192
    %v1853 = vsel %vm1852, %v1836, %v1517
    %v1854 = vsel %vm1852, %v1837, %v1519
    %v1855 = vsel %vm1852, %v1838, %v1521
    %v1856 = vsel %vm1852, %v1839, %v1523
    %v1857 = vsel %vm1852, %v1840, %v1525
    %v1858 = vsel %vm1852, %v1841, %v1527
    %v1859 = vsel %vm1852, %v1842, %v1529
    %v1860 = vsel %vm1852, %v1843, %v1531
    %v1861 = vsel %vm1852, %v1844, %v1533
    %v1862 = vsel %vm1852, %v1845, %v1535
    %v1863 = vsel %vm1852, %v1846, %v1537
    %v1864 = vsel %vm1852, %v1847, %v1539
    %v1865 = vsel %vm1852, %v1848, %v1541
    %v1866 = vsel %vm1852, %v1849, %v1543
    %v1867 = vsel %vm1852, %v1850, %v1545
    %v1868 = vsel %vm1852, %v1851, %v1547
    %vm1869 = vcmask 523264
    %v1870 = vsel %vm1869, %v1853, %v1581
    %v1871 = vsel %vm1869, %v1854, %v1583
    %v1872 = vsel %vm1869, %v1855, %v1585
    %v1873 = vsel %vm1869, %v1856, %v1587
    %v1874 = vsel %vm1869, %v1857, %v1589
    %v1875 = vsel %vm1869, %v1858, %v1591
    %v1876 = vsel %vm1869, %v1859, %v1593
    %v1877 = vsel %vm1869, %v1860, %v1595
    %v1878 = vsel %vm1869, %v1861, %v1597
    %v1879 = vsel %vm1869, %v1862, %v1599
    %v1880 = vsel %vm1869, %v1863, %v1601
    %v1881 = vsel %vm1869, %v1864, %v1603
    %v1882 = vsel %vm1869, %v1865, %v1605
    %v1883 = vsel %vm1869, %v1866, %v1607
    %v1884 = vsel %vm1869, %v1867, %v1609
    %v1885 = vsel %vm1869, %v1868, %v1611
    %vm1886 = vcmask 654336
    %v1887 = vsel %vm1886, %v1870, %v1645
    %v1888 = vsel %vm1886, %v1871, %v1647
    %v1889 = vsel %vm1886, %v1872, %v1649
    %v1890 = vsel %vm1886, %v1873, %v1651
    %v1891 = vsel %vm1886, %v1874, %v1653
    %v1892 = vsel %vm1886, %v1875, %v1655
    %v1893 = vsel %vm1886, %v1876, %v1657
    %v1894 = vsel %vm1886, %v1877, %v1659
    %v1895 = vsel %vm1886, %v1878, %v1661
    %v1896 = vsel %vm1886, %v1879, %v1663
    %v1897 = vsel %vm1886, %v1880, %v1665
    %v1898 = vsel %vm1886, %v1881, %v1667
    %v1899 = vsel %vm1886, %v1882, %v1669
    %v1900 = vsel %vm1886, %v1883, %v1671
    %v1901 = vsel %vm1886, %v1884, %v1673
    %v1902 = vsel %vm1886, %v1885, %v1675
    %vm1903 = vcmask 785408
    %v1904 = vsel %vm1903, %v1887, %v1709
    %v1905 = vsel %vm1903, %v1888, %v1711
    %v1906 = vsel %vm1903, %v1889, %v1713
    %v1907 = vsel %vm1903, %v1890, %v1715
    %v1908 = vsel %vm1903, %v1891, %v1717
    %v1909 = vsel %vm1903, %v1892, %v1719
    %v1910 = vsel %vm1903, %v1893, %v1721
    %v1911 = vsel %vm1903, %v1894, %v1723
    %v1912 = vsel %vm1903, %v1895, %v1725
    %v1913 = vsel %vm1903, %v1896, %v1727
    %v1914 = vsel %vm1903, %v1897, %v1729
    %v1915 = vsel %vm1903, %v1898, %v1731
    %v1916 = vsel %vm1903, %v1899, %v1733
    %v1917 = vsel %vm1903, %v1900, %v1735
    %v1918 = vsel %vm1903, %v1901, %v1737
    %v1919 = vsel %vm1903, %v1902, %v1739
    %vm1920 = vcmask 916480
    %v1921 = vsel %vm1920, %v1904, %v1773
    %v1922 = vsel %vm1920, %v1905, %v1775
    %v1923 = vsel %vm1920, %v1906, %v1777
    %v1924 = vsel %vm1920, %v1907, %v1779
    %v1925 = vsel %vm1920, %v1908, %v1781
    %v1926 = vsel %vm1920, %v1909, %v1783
    %v1927 = vsel %vm1920, %v1910, %v1785
    %v1928 = vsel %vm1920, %v1911, %v1787
    %v1929 = vsel %vm1920, %v1912, %v1789
    %v1930 = vsel %vm1920, %v1913, %v1791
    %v1931 = vsel %vm1920, %v1914, %v1793
    %v1932 = vsel %vm1920, %v1915, %v1795
    %v1933 = vsel %vm1920, %v1916, %v1797
    %v1934 = vsel %vm1920, %v1917, %v1799
    %v1935 = vsel %vm1920, %v1918, %v1801
    %v1936 = vsel %vm1920, %v1919, %v1803
    %v1937 = vld [vmem:[%s5] sm:$0xff]
    %v1938 = vld [vmem:[%s5 + $0x8] sm:$0xff]
    %v1939 = vld [vmem:[%s5 + $0x10] sm:$0xff]
    %v1940 = vld [vmem:[%s5 + $0x18] sm:$0xff]
    %v1941 = vld [vmem:[%s5 + $0x20] sm:$0xff]
    %v1942 = vld [vmem:[%s5 + $0x28] sm:$0xff]
    %v1943 = vld [vmem:[%s5 + $0x30] sm:$0xff]
    %v1944 = vld [vmem:[%s5 + $0x38] sm:$0xff]
    %v1945 = vld [vmem:[%s5 + $0x40] sm:$0xff]
    %v1946 = vld [vmem:[%s5 + $0x48] sm:$0xff]
    %v1947 = vld [vmem:[%s5 + $0x50] sm:$0xff]
    %v1948 = vld [vmem:[%s5 + $0x58] sm:$0xff]
    %v1949 = vld [vmem:[%s5 + $0x60] sm:$0xff]
    %v1950 = vld [vmem:[%s5 + $0x68] sm:$0xff]
    %v1951 = vld [vmem:[%s5 + $0x70] sm:$0xff]
    %v1952 = vld [vmem:[%s5 + $0x78] sm:$0xff]
    %v1953 = vld [vmem:[%s5 + $0x80] sm:$0xff]
    %v1954 = vld [vmem:[%s5 + $0x88] sm:$0xff]
    %v1955 = vld [vmem:[%s6] sm:$0x1]
    %v1957 = vperm.slane %v1955, 0
    %v1960 = vsel %vm1168, %v1356, 0
    %v1963 = vsel %vm1168, %v1357, 0
    %v1966 = vsel %vm1168, %v1358, 0
    %v1969 = vsel %vm1168, %v1359, 0
    %v1972 = vsel %vm1168, %v1360, 0
    %v1975 = vsel %vm1168, %v1361, 0
    %v1978 = vsel %vm1168, %v1362, 0
    %v1981 = vsel %vm1168, %v1363, 0
    %v1984 = vsel %vm1168, %v1364, 0
    %v1987 = vsel %vm1168, %v1365, 0
    %v1990 = vsel %vm1168, %v1366, 0
    %v1993 = vsel %vm1168, %v1367, 0
    %v1996 = vsel %vm1168, %v1368, 0
    %v1999 = vsel %vm1168, %v1369, 0
    %v2002 = vsel %vm1168, %v1370, 0
    %v2005 = vsel %vm1168, %v1371, 0
    %2007 = vmatpush.msra.mxu0 %v1952
    %2008 = vmatpush.msra.mxu0 %v1951
    %2009 = vmatpush.msra.mxu0 %v1950
    %2010 = vmatpush.msra.mxu0 %v1949
    %2011 = vmatpush.msra.mxu0 %v1948
    %2012 = vmatpush.msra.mxu0 %v1947
    %2013 = vmatpush.msra.mxu0 %v1946
    %2014 = vmatpush.msra.mxu0 %v1945
    %2015 = vmatpush.msra.mxu0 %v1944
    %2016 = vmatpush.msra.mxu0 %v1943
    %2017 = vmatpush.msra.mxu0 %v1942
    %2018 = vmatpush.msra.mxu0 %v1941
    %2019 = vmatpush.msra.mxu0 %v1940
    %2020 = vmatpush.msra.mxu0 %v1939
    %2021 = vmatpush.msra.mxu0 %v1938
    %2022 = vmatpush.msra.mxu0 %v1937
    %2023 = vmatmul.f32.gmra.mxu0 %v1921
    %v2024 = vpop.f32.mrf.mxu0
    %v2025 = vadd.f32 %v1957, %v2024
    %2026 = vmatmul.f32.gmra.mxu0 %v1922
    %v2027 = vpop.f32.mrf.mxu0
    %v2028 = vadd.f32 %v1957, %v2027
    %2029 = vmatmul.f32.gmra.mxu0 %v1923
    %v2030 = vpop.f32.mrf.mxu0
    %v2031 = vadd.f32 %v1957, %v2030
    %2032 = vmatmul.f32.gmra.mxu0 %v1924
    %v2033 = vpop.f32.mrf.mxu0
    %v2034 = vadd.f32 %v1957, %v2033
    %2035 = vmatmul.f32.gmra.mxu0 %v1925
    %v2036 = vpop.f32.mrf.mxu0
    %v2037 = vadd.f32 %v1957, %v2036
    %2038 = vmatmul.f32.gmra.mxu0 %v1926
    %v2039 = vpop.f32.mrf.mxu0
    %v2040 = vadd.f32 %v1957, %v2039
    %2041 = vmatmul.f32.gmra.mxu0 %v1927
    %v2042 = vpop.f32.mrf.mxu0
    %v2043 = vadd.f32 %v1957, %v2042
    %2044 = vmatmul.f32.gmra.mxu0 %v1928
    %v2045 = vpop.f32.mrf.mxu0
    %v2046 = vadd.f32 %v1957, %v2045
    %2047 = vmatmul.f32.gmra.mxu0 %v1929
    %v2048 = vpop.f32.mrf.mxu0
    %v2049 = vadd.f32 %v1957, %v2048
    %2050 = vmatmul.f32.gmra.mxu0 %v1930
    %v2051 = vpop.f32.mrf.mxu0
    %v2052 = vadd.f32 %v1957, %v2051
    %2053 = vmatmul.f32.gmra.mxu0 %v1931
    %v2054 = vpop.f32.mrf.mxu0
    %v2055 = vadd.f32 %v1957, %v2054
    %2056 = vmatmul.f32.gmra.mxu0 %v1932
    %v2057 = vpop.f32.mrf.mxu0
    %v2058 = vadd.f32 %v1957, %v2057
    %2059 = vmatmul.f32.gmra.mxu0 %v1933
    %v2060 = vpop.f32.mrf.mxu0
    %v2061 = vadd.f32 %v1957, %v2060
    %2062 = vmatmul.f32.gmra.mxu0 %v1934
    %v2063 = vpop.f32.mrf.mxu0
    %v2064 = vadd.f32 %v1957, %v2063
    %2065 = vmatmul.f32.gmra.mxu0 %v1935
    %v2066 = vpop.f32.mrf.mxu0
    %v2067 = vadd.f32 %v1957, %v2066
    %2068 = vmatmul.f32.gmra.mxu0 %v1936
    %v2069 = vpop.f32.mrf.mxu0
    %v2070 = vadd.f32 %v1957, %v2069
    %2071 = vdwg.mxu0
    %2072 = vmatpush.msra.mxu0 0.0
    %2073 = vmatpush.msra.mxu0 0.0
    %2074 = vmatpush.msra.mxu0 0.0
    %2075 = vmatpush.msra.mxu0 0.0
    %2076 = vmatpush.msra.mxu0 0.0
    %2077 = vmatpush.msra.mxu0 0.0
    %2078 = vmatpush.msra.mxu0 0.0
    %2079 = vmatpush.msra.mxu0 0.0
    %2080 = vmatpush.msra.mxu0 0.0
    %2081 = vmatpush.msra.mxu0 0.0
    %2082 = vmatpush.msra.mxu0 0.0
    %2083 = vmatpush.msra.mxu0 0.0
    %2084 = vmatpush.msra.mxu0 0.0
    %2085 = vmatpush.msra.mxu0 0.0
    %2086 = vmatpush.msra.mxu0 %v1954
    %2087 = vmatpush.msra.mxu0 %v1953
    %2088 = vmatmul.f32.gmra.mxu0 %v1960
    %v2089 = vpop.f32.mrf.mxu0
    %v2090 = vadd.f32 %v2025, %v2089
    %2091 = vmatmul.f32.gmra.mxu0 %v1963
    %v2092 = vpop.f32.mrf.mxu0
    %v2093 = vadd.f32 %v2028, %v2092
    %2094 = vmatmul.f32.gmra.mxu0 %v1966
    %v2095 = vpop.f32.mrf.mxu0
    %v2096 = vadd.f32 %v2031, %v2095
    %2097 = vmatmul.f32.gmra.mxu0 %v1969
    %v2098 = vpop.f32.mrf.mxu0
    %v2099 = vadd.f32 %v2034, %v2098
    %2100 = vmatmul.f32.gmra.mxu0 %v1972
    %v2101 = vpop.f32.mrf.mxu0
    %v2102 = vadd.f32 %v2037, %v2101
    %2103 = vmatmul.f32.gmra.mxu0 %v1975
    %v2104 = vpop.f32.mrf.mxu0
    %v2105 = vadd.f32 %v2040, %v2104
    %2106 = vmatmul.f32.gmra.mxu0 %v1978
    %v2107 = vpop.f32.mrf.mxu0
    %v2108 = vadd.f32 %v2043, %v2107
    %2109 = vmatmul.f32.gmra.mxu0 %v1981
    %v2110 = vpop.f32.mrf.mxu0
    %v2111 = vadd.f32 %v2046, %v2110
    %2112 = vmatmul.f32.gmra.mxu0 %v1984
    %v2113 = vpop.f32.mrf.mxu0
    %v2114 = vadd.f32 %v2049, %v2113
    %2115 = vmatmul.f32.gmra.mxu0 %v1987
    %v2116 = vpop.f32.mrf.mxu0
    %v2117 = vadd.f32 %v2052, %v2116
    %2118 = vmatmul.f32.gmra.mxu0 %v1990
    %v2119 = vpop.f32.mrf.mxu0
    %v2120 = vadd.f32 %v2055, %v2119
    %2121 = vmatmul.f32.gmra.mxu0 %v1993
    %v2122 = vpop.f32.mrf.mxu0
    %v2123 = vadd.f32 %v2058, %v2122
    %2124 = vmatmul.f32.gmra.mxu0 %v1996
    %v2125 = vpop.f32.mrf.mxu0
    %v2126 = vadd.f32 %v2061, %v2125
    %2127 = vmatmul.f32.gmra.mxu0 %v1999
    %v2128 = vpop.f32.mrf.mxu0
    %v2129 = vadd.f32 %v2064, %v2128
    %2130 = vmatmul.f32.gmra.mxu0 %v2002
    %v2131 = vpop.f32.mrf.mxu0
    %v2132 = vadd.f32 %v2067, %v2131
    %2133 = vmatmul.f32.gmra.mxu0 %v2005
    %v2134 = vpop.f32.mrf.mxu0
    %v2135 = vadd.f32 %v2070, %v2134
    %2136 = vdwg.mxu0
    %v2137 = vmax.f32 %v2090, 0.0
    %v2138 = vmax.f32 %v2093, 0.0
    %v2139 = vmax.f32 %v2096, 0.0
    %v2140 = vmax.f32 %v2099, 0.0
    %v2141 = vmax.f32 %v2102, 0.0
    %v2142 = vmax.f32 %v2105, 0.0
    %v2143 = vmax.f32 %v2108, 0.0
    %v2144 = vmax.f32 %v2111, 0.0
    %v2145 = vmax.f32 %v2114, 0.0
    %v2146 = vmax.f32 %v2117, 0.0
    %v2147 = vmax.f32 %v2120, 0.0
    %v2148 = vmax.f32 %v2123, 0.0
    %v2149 = vmax.f32 %v2126, 0.0
    %v2150 = vmax.f32 %v2129, 0.0
    %v2151 = vmax.f32 %v2132, 0.0
    %v2152 = vmax.f32 %v2135, 0.0
    %2153 = vst.msk [vmem:[#allocation3] sm:$0xff] %vm1869, 0.0
    %vm2154 = vcmask 517120
    %2155 = vst.msk [vmem:[#allocation3 + $0x8] sm:$0x3] %vm2154, 0.0
    %2156 = vst.msk [vmem:[#allocation3 + $0x10] sm:$0xff] %vm1869, 0.0
    %2157 = vst.msk [vmem:[#allocation3 + $0x18] sm:$0x3] %vm2154, 0.0
    %2158 = vst.msk [vmem:[#allocation3 + $0x20] sm:$0xff] %vm1869, 0.0
    %2159 = vst.msk [vmem:[#allocation3 + $0x28] sm:$0x3] %vm2154, 0.0
    %2160 = vst.msk [vmem:[#allocation3 + $0x30] sm:$0xff] %vm1869, 0.0
    %2161 = vst.msk [vmem:[#allocation3 + $0x38] sm:$0x3] %vm2154, 0.0
    %2162 = vst.msk [vmem:[#allocation3 + $0x40] sm:$0xff] %vm1869, 0.0
    %2163 = vst.msk [vmem:[#allocation3 + $0x48] sm:$0x3] %vm2154, 0.0
    %2164 = vst.msk [vmem:[#allocation3 + $0x50] sm:$0xff] %vm1869, 0.0
    %2165 = vst.msk [vmem:[#allocation3 + $0x58] sm:$0x3] %vm2154, 0.0
    %2166 = vst.msk [vmem:[#allocation3 + $0x60] sm:$0xff] %vm1869, 0.0
    %2167 = vst.msk [vmem:[#allocation3 + $0x68] sm:$0x3] %vm2154, 0.0
    %2168 = vst.msk [vmem:[#allocation3 + $0x70] sm:$0xff] %vm1869, 0.0
    %2169 = vst.msk [vmem:[#allocation3 + $0x78] sm:$0x3] %vm2154, 0.0
    %2170 = vst.msk [vmem:[#allocation3 + $0x80] sm:$0xff] %vm1869, 0.0
    %2171 = vst.msk [vmem:[#allocation3 + $0x88] sm:$0x3] %vm2154, 0.0
    %2172 = vst.msk [vmem:[#allocation3 + $0x90] sm:$0xff] %vm1869, 0.0
    %2173 = vst.msk [vmem:[#allocation3 + $0x98] sm:$0x3] %vm2154, 0.0
    %2174 = vst.msk [vmem:[#allocation3 + $0xa0] sm:$0xff] %vm1869, 0.0
    %2175 = vst.msk [vmem:[#allocation3 + $0xa8] sm:$0x3] %vm2154, 0.0
    %2176 = vst.msk [vmem:[#allocation3 + $0xb0] sm:$0xff] %vm1869, 0.0
    %2177 = vst.msk [vmem:[#allocation3 + $0xb8] sm:$0x3] %vm2154, 0.0
    %2178 = vst.msk [vmem:[#allocation3 + $0xc0] sm:$0xff] %vm1869, 0.0
    %2179 = vst.msk [vmem:[#allocation3 + $0xc8] sm:$0x3] %vm2154, 0.0
    %2180 = vst.msk [vmem:[#allocation3 + $0xd0] sm:$0xff] %vm1869, 0.0
    %2181 = vst.msk [vmem:[#allocation3 + $0xd8] sm:$0x3] %vm2154, 0.0
    %2182 = vst.msk [vmem:[#allocation3 + $0xe0] sm:$0xff] %vm1869, 0.0
    %2183 = vst.msk [vmem:[#allocation3 + $0xe8] sm:$0x3] %vm2154, 0.0
    %2184 = vst.msk [vmem:[#allocation3 + $0xf0] sm:$0xff] %vm1869, 0.0
    %2185 = vst.msk [vmem:[#allocation3 + $0xf8] sm:$0x3] %vm2154, 0.0
    %2186 = vst.msk [vmem:[#allocation3 + $0x100] sm:$0xff] %vm1869, 0.0
    %2187 = vst.msk [vmem:[#allocation3 + $0x108] sm:$0x3] %vm2154, 0.0
    %2188 = vst.msk [vmem:[#allocation3 + $0x110] sm:$0xff] %vm1869, 0.0
    %2189 = vst.msk [vmem:[#allocation3 + $0x118] sm:$0x3] %vm2154, 0.0
    %2190 = vst.msk [vmem:[#allocation3 + $0x120] sm:$0xff] %vm1869, 0.0
    %2191 = vst.msk [vmem:[#allocation3 + $0x128] sm:$0x3] %vm2154, 0.0
    %2192 = vst.msk [vmem:[#allocation3 + $0x130] sm:$0xff] %vm1869, 0.0
    %2193 = vst.msk [vmem:[#allocation3 + $0x138] sm:$0x3] %vm2154, 0.0
    %s2194 = scalar_lea.vmem [#allocation3], 16
    %2195 = vst.msk [vmem:[%s2194 + $0x1] sm:$0xff] %vm1869, %v2137
    %2196 = vst.msk [vmem:[%s2194 + $0x11] sm:$0xff] %vm1869, %v2138
    %2197 = vst.msk [vmem:[%s2194 + $0x21] sm:$0xff] %vm1869, %v2139
    %2198 = vst.msk [vmem:[%s2194 + $0x31] sm:$0xff] %vm1869, %v2140
    %2199 = vst.msk [vmem:[%s2194 + $0x41] sm:$0xff] %vm1869, %v2141
    %2200 = vst.msk [vmem:[%s2194 + $0x51] sm:$0xff] %vm1869, %v2142
    %2201 = vst.msk [vmem:[%s2194 + $0x61] sm:$0xff] %vm1869, %v2143
    %2202 = vst.msk [vmem:[%s2194 + $0x71] sm:$0xff] %vm1869, %v2144
    %2203 = vst.msk [vmem:[%s2194 + $0xa1] sm:$0xff] %vm1869, %v2145
    %2204 = vst.msk [vmem:[%s2194 + $0xb1] sm:$0xff] %vm1869, %v2146
    %2205 = vst.msk [vmem:[%s2194 + $0xc1] sm:$0xff] %vm1869, %v2147
    %2206 = vst.msk [vmem:[%s2194 + $0xd1] sm:$0xff] %vm1869, %v2148
    %2207 = vst.msk [vmem:[%s2194 + $0xe1] sm:$0xff] %vm1869, %v2149
    %2208 = vst.msk [vmem:[%s2194 + $0xf1] sm:$0xff] %vm1869, %v2150
    %2209 = vst.msk [vmem:[%s2194 + $0x101] sm:$0xff] %vm1869, %v2151
    %2210 = vst.msk [vmem:[%s2194 + $0x111] sm:$0xff] %vm1869, %v2152
    %v2211 = vld [vmem:[#allocation3] sm:$0xff]
    %v2212 = vld [vmem:[#allocation3 + $0x10] sm:$0xff]
    %v2213 = vld [vmem:[#allocation3 + $0x20] sm:$0xff]
    %v2214 = vld [vmem:[#allocation3 + $0x30] sm:$0xff]
    %v2215 = vld [vmem:[#allocation3 + $0x40] sm:$0xff]
    %v2216 = vld [vmem:[#allocation3 + $0x50] sm:$0xff]
    %v2217 = vld [vmem:[#allocation3 + $0x60] sm:$0xff]
    %v2218 = vld [vmem:[#allocation3 + $0x70] sm:$0xff]
    %v2219 = vld [vmem:[#allocation3 + $0xa0] sm:$0xff]
    %v2220 = vld [vmem:[#allocation3 + $0xb0] sm:$0xff]
    %v2221 = vld [vmem:[#allocation3 + $0xc0] sm:$0xff]
    %v2222 = vld [vmem:[#allocation3 + $0xd0] sm:$0xff]
    %v2223 = vld [vmem:[#allocation3 + $0xe0] sm:$0xff]
    %v2224 = vld [vmem:[#allocation3 + $0xf0] sm:$0xff]
    %v2225 = vld [vmem:[#allocation3 + $0x100] sm:$0xff]
    %v2226 = vld [vmem:[#allocation3 + $0x110] sm:$0xff]
    %v2227 = vld [vmem:[#allocation3 + $0x1] sm:$0xff]
    %v2228 = vld [vmem:[#allocation3 + $0x11] sm:$0xff]
    %v2229 = vld [vmem:[#allocation3 + $0x21] sm:$0xff]
    %v2230 = vld [vmem:[#allocation3 + $0x31] sm:$0xff]
    %v2231 = vld [vmem:[#allocation3 + $0x41] sm:$0xff]
    %v2232 = vld [vmem:[#allocation3 + $0x51] sm:$0xff]
    %v2233 = vld [vmem:[#allocation3 + $0x61] sm:$0xff]
    %v2234 = vld [vmem:[#allocation3 + $0x71] sm:$0xff]
    %v2235 = vld [vmem:[#allocation3 + $0xa1] sm:$0xff]
    %v2236 = vld [vmem:[#allocation3 + $0xb1] sm:$0xff]
    %v2237 = vld [vmem:[#allocation3 + $0xc1] sm:$0xff]
    %v2238 = vld [vmem:[#allocation3 + $0xd1] sm:$0xff]
    %v2239 = vld [vmem:[#allocation3 + $0xe1] sm:$0xff]
    %v2240 = vld [vmem:[#allocation3 + $0xf1] sm:$0xff]
    %v2241 = vld [vmem:[#allocation3 + $0x101] sm:$0xff]
    %v2242 = vld [vmem:[#allocation3 + $0x111] sm:$0xff]
    %v2243 = vld [vmem:[#allocation3 + $0x2] sm:$0xff]
    %v2244 = vld [vmem:[#allocation3 + $0x12] sm:$0xff]
    %v2245 = vld [vmem:[#allocation3 + $0x22] sm:$0xff]
    %v2246 = vld [vmem:[#allocation3 + $0x32] sm:$0xff]
    %v2247 = vld [vmem:[#allocation3 + $0x42] sm:$0xff]
    %v2248 = vld [vmem:[#allocation3 + $0x52] sm:$0xff]
    %v2249 = vld [vmem:[#allocation3 + $0x62] sm:$0xff]
    %v2250 = vld [vmem:[#allocation3 + $0x72] sm:$0xff]
    %v2251 = vld [vmem:[#allocation3 + $0xa2] sm:$0xff]
    %v2252 = vld [vmem:[#allocation3 + $0xb2] sm:$0xff]
    %v2253 = vld [vmem:[#allocation3 + $0xc2] sm:$0xff]
    %v2254 = vld [vmem:[#allocation3 + $0xd2] sm:$0xff]
    %v2255 = vld [vmem:[#allocation3 + $0xe2] sm:$0xff]
    %v2256 = vld [vmem:[#allocation3 + $0xf2] sm:$0xff]
    %v2257 = vld [vmem:[#allocation3 + $0x102] sm:$0xff]
    %v2258 = vld [vmem:[#allocation3 + $0x112] sm:$0xff]
    %v2259 = vld [vmem:[%s2194] sm:$0xff]
    %v2260 = vld [vmem:[%s2194 + $0x10] sm:$0xff]
    %v2261 = vld [vmem:[%s2194 + $0x20] sm:$0xff]
    %v2262 = vld [vmem:[%s2194 + $0x30] sm:$0xff]
    %v2263 = vld [vmem:[%s2194 + $0x40] sm:$0xff]
    %v2264 = vld [vmem:[%s2194 + $0x50] sm:$0xff]
    %v2265 = vld [vmem:[%s2194 + $0x60] sm:$0xff]
    %v2266 = vld [vmem:[%s2194 + $0x70] sm:$0xff]
    %v2267 = vld [vmem:[%s2194 + $0xa0] sm:$0xff]
    %v2268 = vld [vmem:[%s2194 + $0xb0] sm:$0xff]
    %v2269 = vld [vmem:[%s2194 + $0xc0] sm:$0xff]
    %v2270 = vld [vmem:[%s2194 + $0xd0] sm:$0xff]
    %v2271 = vld [vmem:[%s2194 + $0xe0] sm:$0xff]
    %v2272 = vld [vmem:[%s2194 + $0xf0] sm:$0xff]
    %v2273 = vld [vmem:[%s2194 + $0x100] sm:$0xff]
    %v2274 = vld [vmem:[%s2194 + $0x110] sm:$0xff]
    %v2275 = vld [vmem:[%s2194 + $0x1] sm:$0xff]
    %v2276 = vld [vmem:[%s2194 + $0x11] sm:$0xff]
    %v2277 = vld [vmem:[%s2194 + $0x21] sm:$0xff]
    %v2278 = vld [vmem:[%s2194 + $0x31] sm:$0xff]
    %v2279 = vld [vmem:[%s2194 + $0x41] sm:$0xff]
    %v2280 = vld [vmem:[%s2194 + $0x51] sm:$0xff]
    %v2281 = vld [vmem:[%s2194 + $0x61] sm:$0xff]
    %v2282 = vld [vmem:[%s2194 + $0x71] sm:$0xff]
    %v2283 = vld [vmem:[%s2194 + $0xa1] sm:$0xff]
    %v2284 = vld [vmem:[%s2194 + $0xb1] sm:$0xff]
    %v2285 = vld [vmem:[%s2194 + $0xc1] sm:$0xff]
    %v2286 = vld [vmem:[%s2194 + $0xd1] sm:$0xff]
    %v2287 = vld [vmem:[%s2194 + $0xe1] sm:$0xff]
    %v2288 = vld [vmem:[%s2194 + $0xf1] sm:$0xff]
    %v2289 = vld [vmem:[%s2194 + $0x101] sm:$0xff]
    %v2290 = vld [vmem:[%s2194 + $0x111] sm:$0xff]
    %v2291 = vld [vmem:[%s2194 + $0x2] sm:$0xff]
    %v2292 = vld [vmem:[%s2194 + $0x12] sm:$0xff]
    %v2293 = vld [vmem:[%s2194 + $0x22] sm:$0xff]
    %v2294 = vld [vmem:[%s2194 + $0x32] sm:$0xff]
    %v2295 = vld [vmem:[%s2194 + $0x42] sm:$0xff]
    %v2296 = vld [vmem:[%s2194 + $0x52] sm:$0xff]
    %v2297 = vld [vmem:[%s2194 + $0x62] sm:$0xff]
    %v2298 = vld [vmem:[%s2194 + $0x72] sm:$0xff]
    %v2299 = vld [vmem:[%s2194 + $0xa2] sm:$0xff]
    %v2300 = vld [vmem:[%s2194 + $0xb2] sm:$0xff]
    %v2301 = vld [vmem:[%s2194 + $0xc2] sm:$0xff]
    %v2302 = vld [vmem:[%s2194 + $0xd2] sm:$0xff]
    %v2303 = vld [vmem:[%s2194 + $0xe2] sm:$0xff]
    %v2304 = vld [vmem:[%s2194 + $0xf2] sm:$0xff]
    %v2305 = vld [vmem:[%s2194 + $0x102] sm:$0xff]
    %v2306 = vld [vmem:[%s2194 + $0x112] sm:$0xff]
    %s2307 = scalar_lea.vmem [#allocation3], 32
    %v2308 = vld [vmem:[%s2307] sm:$0xff]
    %v2309 = vld [vmem:[%s2307 + $0x10] sm:$0xff]
    %v2310 = vld [vmem:[%s2307 + $0x20] sm:$0xff]
    %v2311 = vld [vmem:[%s2307 + $0x30] sm:$0xff]
    %v2312 = vld [vmem:[%s2307 + $0x40] sm:$0xff]
    %v2313 = vld [vmem:[%s2307 + $0x50] sm:$0xff]
    %v2314 = vld [vmem:[%s2307 + $0x60] sm:$0xff]
    %v2315 = vld [vmem:[%s2307 + $0x70] sm:$0xff]
    %v2316 = vld [vmem:[%s2307 + $0xa0] sm:$0xff]
    %v2317 = vld [vmem:[%s2307 + $0xb0] sm:$0xff]
    %v2318 = vld [vmem:[%s2307 + $0xc0] sm:$0xff]
    %v2319 = vld [vmem:[%s2307 + $0xd0] sm:$0xff]
    %v2320 = vld [vmem:[%s2307 + $0xe0] sm:$0xff]
    %v2321 = vld [vmem:[%s2307 + $0xf0] sm:$0xff]
    %v2322 = vld [vmem:[%s2307 + $0x100] sm:$0xff]
    %v2323 = vld [vmem:[%s2307 + $0x110] sm:$0xff]
    %v2324 = vld [vmem:[%s2307 + $0x1] sm:$0xff]
    %v2325 = vld [vmem:[%s2307 + $0x11] sm:$0xff]
    %v2326 = vld [vmem:[%s2307 + $0x21] sm:$0xff]
    %v2327 = vld [vmem:[%s2307 + $0x31] sm:$0xff]
    %v2328 = vld [vmem:[%s2307 + $0x41] sm:$0xff]
    %v2329 = vld [vmem:[%s2307 + $0x51] sm:$0xff]
    %v2330 = vld [vmem:[%s2307 + $0x61] sm:$0xff]
    %v2331 = vld [vmem:[%s2307 + $0x71] sm:$0xff]
    %v2332 = vld [vmem:[%s2307 + $0xa1] sm:$0xff]
    %v2333 = vld [vmem:[%s2307 + $0xb1] sm:$0xff]
    %v2334 = vld [vmem:[%s2307 + $0xc1] sm:$0xff]
    %v2335 = vld [vmem:[%s2307 + $0xd1] sm:$0xff]
    %v2336 = vld [vmem:[%s2307 + $0xe1] sm:$0xff]
    %v2337 = vld [vmem:[%s2307 + $0xf1] sm:$0xff]
    %v2338 = vld [vmem:[%s2307 + $0x101] sm:$0xff]
    %v2339 = vld [vmem:[%s2307 + $0x111] sm:$0xff]
    %v2340 = vld [vmem:[%s2307 + $0x2] sm:$0xff]
    %v2341 = vld [vmem:[%s2307 + $0x12] sm:$0xff]
    %v2342 = vld [vmem:[%s2307 + $0x22] sm:$0xff]
    %v2343 = vld [vmem:[%s2307 + $0x32] sm:$0xff]
    %v2344 = vld [vmem:[%s2307 + $0x42] sm:$0xff]
    %v2345 = vld [vmem:[%s2307 + $0x52] sm:$0xff]
    %v2346 = vld [vmem:[%s2307 + $0x62] sm:$0xff]
    %v2347 = vld [vmem:[%s2307 + $0x72] sm:$0xff]
    %v2348 = vld [vmem:[%s2307 + $0xa2] sm:$0xff]
    %v2349 = vld [vmem:[%s2307 + $0xb2] sm:$0xff]
    %v2350 = vld [vmem:[%s2307 + $0xc2] sm:$0xff]
    %v2351 = vld [vmem:[%s2307 + $0xd2] sm:$0xff]
    %v2352 = vld [vmem:[%s2307 + $0xe2] sm:$0xff]
    %v2353 = vld [vmem:[%s2307 + $0xf2] sm:$0xff]
    %v2354 = vld [vmem:[%s2307 + $0x102] sm:$0xff]
    %v2355 = vld [vmem:[%s2307 + $0x112] sm:$0xff]
    %2372 = vrot.lane.b32.xlu0 %v2227, 64
    %v2373 = vpop.permute.xlu0 %2372
    %2374 = vrot.lane.b32.xlu0 %v2228, 64
    %v2375 = vpop.permute.xlu0 %2374
    %2376 = vrot.lane.b32.xlu0 %v2229, 64
    %v2377 = vpop.permute.xlu0 %2376
    %2378 = vrot.lane.b32.xlu0 %v2230, 64
    %v2379 = vpop.permute.xlu0 %2378
    %2380 = vrot.lane.b32.xlu0 %v2231, 64
    %v2381 = vpop.permute.xlu0 %2380
    %2382 = vrot.lane.b32.xlu0 %v2232, 64
    %v2383 = vpop.permute.xlu0 %2382
    %2384 = vrot.lane.b32.xlu0 %v2233, 64
    %v2385 = vpop.permute.xlu0 %2384
    %2386 = vrot.lane.b32.xlu0 %v2234, 64
    %v2387 = vpop.permute.xlu0 %2386
    %2388 = vrot.lane.b32.xlu0 %v2235, 64
    %v2389 = vpop.permute.xlu0 %2388
    %2390 = vrot.lane.b32.xlu0 %v2236, 64
    %v2391 = vpop.permute.xlu0 %2390
    %2392 = vrot.lane.b32.xlu0 %v2237, 64
    %v2393 = vpop.permute.xlu0 %2392
    %2394 = vrot.lane.b32.xlu0 %v2238, 64
    %v2395 = vpop.permute.xlu0 %2394
    %2396 = vrot.lane.b32.xlu0 %v2239, 64
    %v2397 = vpop.permute.xlu0 %2396
    %2398 = vrot.lane.b32.xlu0 %v2240, 64
    %v2399 = vpop.permute.xlu0 %2398
    %2400 = vrot.lane.b32.xlu0 %v2241, 64
    %v2401 = vpop.permute.xlu0 %2400
    %2402 = vrot.lane.b32.xlu0 %v2242, 64
    %v2403 = vpop.permute.xlu0 %2402
    %2436 = vrot.lane.b32.xlu0 %v2259, 64
    %v2437 = vpop.permute.xlu0 %2436
    %2438 = vrot.lane.b32.xlu0 %v2260, 64
    %v2439 = vpop.permute.xlu0 %2438
    %2440 = vrot.lane.b32.xlu0 %v2261, 64
    %v2441 = vpop.permute.xlu0 %2440
    %2442 = vrot.lane.b32.xlu0 %v2262, 64
    %v2443 = vpop.permute.xlu0 %2442
    %2444 = vrot.lane.b32.xlu0 %v2263, 64
    %v2445 = vpop.permute.xlu0 %2444
    %2446 = vrot.lane.b32.xlu0 %v2264, 64
    %v2447 = vpop.permute.xlu0 %2446
    %2448 = vrot.lane.b32.xlu0 %v2265, 64
    %v2449 = vpop.permute.xlu0 %2448
    %2450 = vrot.lane.b32.xlu0 %v2266, 64
    %v2451 = vpop.permute.xlu0 %2450
    %2452 = vrot.lane.b32.xlu0 %v2267, 64
    %v2453 = vpop.permute.xlu0 %2452
    %2454 = vrot.lane.b32.xlu0 %v2268, 64
    %v2455 = vpop.permute.xlu0 %2454
    %2456 = vrot.lane.b32.xlu0 %v2269, 64
    %v2457 = vpop.permute.xlu0 %2456
    %2458 = vrot.lane.b32.xlu0 %v2270, 64
    %v2459 = vpop.permute.xlu0 %2458
    %2460 = vrot.lane.b32.xlu0 %v2271, 64
    %v2461 = vpop.permute.xlu0 %2460
    %2462 = vrot.lane.b32.xlu0 %v2272, 64
    %v2463 = vpop.permute.xlu0 %2462
    %2464 = vrot.lane.b32.xlu0 %v2273, 64
    %v2465 = vpop.permute.xlu0 %2464
    %2466 = vrot.lane.b32.xlu0 %v2274, 64
    %v2467 = vpop.permute.xlu0 %2466
    %2500 = vrot.lane.b32.xlu0 %v2291, 64
    %v2501 = vpop.permute.xlu0 %2500
    %2502 = vrot.lane.b32.xlu0 %v2292, 64
    %v2503 = vpop.permute.xlu0 %2502
    %2504 = vrot.lane.b32.xlu0 %v2293, 64
    %v2505 = vpop.permute.xlu0 %2504
    %2506 = vrot.lane.b32.xlu0 %v2294, 64
    %v2507 = vpop.permute.xlu0 %2506
    %2508 = vrot.lane.b32.xlu0 %v2295, 64
    %v2509 = vpop.permute.xlu0 %2508
    %2510 = vrot.lane.b32.xlu0 %v2296, 64
    %v2511 = vpop.permute.xlu0 %2510
    %2512 = vrot.lane.b32.xlu0 %v2297, 64
    %v2513 = vpop.permute.xlu0 %2512
    %2514 = vrot.lane.b32.xlu0 %v2298, 64
    %v2515 = vpop.permute.xlu0 %2514
    %2516 = vrot.lane.b32.xlu0 %v2299, 64
    %v2517 = vpop.permute.xlu0 %2516
    %2518 = vrot.lane.b32.xlu0 %v2300, 64
    %v2519 = vpop.permute.xlu0 %2518
    %2520 = vrot.lane.b32.xlu0 %v2301, 64
    %v2521 = vpop.permute.xlu0 %2520
    %2522 = vrot.lane.b32.xlu0 %v2302, 64
    %v2523 = vpop.permute.xlu0 %2522
    %2524 = vrot.lane.b32.xlu0 %v2303, 64
    %v2525 = vpop.permute.xlu0 %2524
    %2526 = vrot.lane.b32.xlu0 %v2304, 64
    %v2527 = vpop.permute.xlu0 %2526
    %2528 = vrot.lane.b32.xlu0 %v2305, 64
    %v2529 = vpop.permute.xlu0 %2528
    %2530 = vrot.lane.b32.xlu0 %v2306, 64
    %v2531 = vpop.permute.xlu0 %2530
    %2564 = vrot.lane.b32.xlu0 %v2324, 64
    %v2565 = vpop.permute.xlu0 %2564
    %2566 = vrot.lane.b32.xlu0 %v2325, 64
    %v2567 = vpop.permute.xlu0 %2566
    %2568 = vrot.lane.b32.xlu0 %v2326, 64
    %v2569 = vpop.permute.xlu0 %2568
    %2570 = vrot.lane.b32.xlu0 %v2327, 64
    %v2571 = vpop.permute.xlu0 %2570
    %2572 = vrot.lane.b32.xlu0 %v2328, 64
    %v2573 = vpop.permute.xlu0 %2572
    %2574 = vrot.lane.b32.xlu0 %v2329, 64
    %v2575 = vpop.permute.xlu0 %2574
    %2576 = vrot.lane.b32.xlu0 %v2330, 64
    %v2577 = vpop.permute.xlu0 %2576
    %2578 = vrot.lane.b32.xlu0 %v2331, 64
    %v2579 = vpop.permute.xlu0 %2578
    %2580 = vrot.lane.b32.xlu0 %v2332, 64
    %v2581 = vpop.permute.xlu0 %2580
    %2582 = vrot.lane.b32.xlu0 %v2333, 64
    %v2583 = vpop.permute.xlu0 %2582
    %2584 = vrot.lane.b32.xlu0 %v2334, 64
    %v2585 = vpop.permute.xlu0 %2584
    %2586 = vrot.lane.b32.xlu0 %v2335, 64
    %v2587 = vpop.permute.xlu0 %2586
    %2588 = vrot.lane.b32.xlu0 %v2336, 64
    %v2589 = vpop.permute.xlu0 %2588
    %2590 = vrot.lane.b32.xlu0 %v2337, 64
    %v2591 = vpop.permute.xlu0 %2590
    %2592 = vrot.lane.b32.xlu0 %v2338, 64
    %v2593 = vpop.permute.xlu0 %2592
    %2594 = vrot.lane.b32.xlu0 %v2339, 64
    %v2595 = vpop.permute.xlu0 %2594
    %v2612 = vsel %vm1869, %v2211, %v2373
    %v2613 = vsel %vm1869, %v2212, %v2375
    %v2614 = vsel %vm1869, %v2213, %v2377
    %v2615 = vsel %vm1869, %v2214, %v2379
    %v2616 = vsel %vm1869, %v2215, %v2381
    %v2617 = vsel %vm1869, %v2216, %v2383
    %v2618 = vsel %vm1869, %v2217, %v2385
    %v2619 = vsel %vm1869, %v2218, %v2387
    %v2620 = vsel %vm1869, %v2219, %v2389
    %v2621 = vsel %vm1869, %v2220, %v2391
    %v2622 = vsel %vm1869, %v2221, %v2393
    %v2623 = vsel %vm1869, %v2222, %v2395
    %v2624 = vsel %vm1869, %v2223, %v2397
    %v2625 = vsel %vm1869, %v2224, %v2399
    %v2626 = vsel %vm1869, %v2225, %v2401
    %v2627 = vsel %vm1869, %v2226, %v2403
    %v2628 = vsel %vm1869, %v2243, %v2437
    %v2629 = vsel %vm1869, %v2244, %v2439
    %v2630 = vsel %vm1869, %v2245, %v2441
    %v2631 = vsel %vm1869, %v2246, %v2443
    %v2632 = vsel %vm1869, %v2247, %v2445
    %v2633 = vsel %vm1869, %v2248, %v2447
    %v2634 = vsel %vm1869, %v2249, %v2449
    %v2635 = vsel %vm1869, %v2250, %v2451
    %v2636 = vsel %vm1869, %v2251, %v2453
    %v2637 = vsel %vm1869, %v2252, %v2455
    %v2638 = vsel %vm1869, %v2253, %v2457
    %v2639 = vsel %vm1869, %v2254, %v2459
    %v2640 = vsel %vm1869, %v2255, %v2461
    %v2641 = vsel %vm1869, %v2256, %v2463
    %v2642 = vsel %vm1869, %v2257, %v2465
    %v2643 = vsel %vm1869, %v2258, %v2467
    %v2644 = vsel %vm1869, %v2275, %v2501
    %v2645 = vsel %vm1869, %v2276, %v2503
    %v2646 = vsel %vm1869, %v2277, %v2505
    %v2647 = vsel %vm1869, %v2278, %v2507
    %v2648 = vsel %vm1869, %v2279, %v2509
    %v2649 = vsel %vm1869, %v2280, %v2511
    %v2650 = vsel %vm1869, %v2281, %v2513
    %v2651 = vsel %vm1869, %v2282, %v2515
    %v2652 = vsel %vm1869, %v2283, %v2517
    %v2653 = vsel %vm1869, %v2284, %v2519
    %v2654 = vsel %vm1869, %v2285, %v2521
    %v2655 = vsel %vm1869, %v2286, %v2523
    %v2656 = vsel %vm1869, %v2287, %v2525
    %v2657 = vsel %vm1869, %v2288, %v2527
    %v2658 = vsel %vm1869, %v2289, %v2529
    %v2659 = vsel %vm1869, %v2290, %v2531
    %v2660 = vsel %vm1869, %v2308, %v2565
    %v2661 = vsel %vm1869, %v2309, %v2567
    %v2662 = vsel %vm1869, %v2310, %v2569
    %v2663 = vsel %vm1869, %v2311, %v2571
    %v2664 = vsel %vm1869, %v2312, %v2573
    %v2665 = vsel %vm1869, %v2313, %v2575
    %v2666 = vsel %vm1869, %v2314, %v2577
    %v2667 = vsel %vm1869, %v2315, %v2579
    %v2668 = vsel %vm1869, %v2316, %v2581
    %v2669 = vsel %vm1869, %v2317, %v2583
    %v2670 = vsel %vm1869, %v2318, %v2585
    %v2671 = vsel %vm1869, %v2319, %v2587
    %v2672 = vsel %vm1869, %v2320, %v2589
    %v2673 = vsel %vm1869, %v2321, %v2591
    %v2674 = vsel %vm1869, %v2322, %v2593
    %v2675 = vsel %vm1869, %v2323, %v2595
    %v2676 = vld [vmem:[%s7] sm:$0xff]
    %v2677 = vld [vmem:[%s7 + $0x8] sm:$0xff]
    %v2678 = vld [vmem:[%s7 + $0x10] sm:$0xff]
    %v2679 = vld [vmem:[%s7 + $0x18] sm:$0xff]
    %v2680 = vld [vmem:[%s7 + $0x20] sm:$0xff]
    %v2681 = vld [vmem:[%s7 + $0x28] sm:$0xff]
    %v2682 = vld [vmem:[%s7 + $0x30] sm:$0xff]
    %v2683 = vld [vmem:[%s7 + $0x38] sm:$0xff]
    %v2684 = vld [vmem:[%s7 + $0x40] sm:$0xff]
    %v2685 = vld [vmem:[%s7 + $0x48] sm:$0xff]
    %v2686 = vld [vmem:[%s7 + $0x50] sm:$0xff]
    %v2687 = vld [vmem:[%s7 + $0x58] sm:$0xff]
    %v2688 = vld [vmem:[%s7 + $0x60] sm:$0xff]
    %v2689 = vld [vmem:[%s7 + $0x68] sm:$0xff]
    %v2690 = vld [vmem:[%s7 + $0x70] sm:$0xff]
    %v2691 = vld [vmem:[%s7 + $0x78] sm:$0xff]
    %v2692 = vld [vmem:[%s7 + $0x80] sm:$0xff]
    %v2693 = vld [vmem:[%s7 + $0x88] sm:$0xff]
    %v2694 = vld [vmem:[%s7 + $0x90] sm:$0xff]
    %v2695 = vld [vmem:[%s7 + $0x98] sm:$0xff]
    %v2696 = vld [vmem:[%s7 + $0xa0] sm:$0xff]
    %v2697 = vld [vmem:[%s7 + $0xa8] sm:$0xff]
    %v2698 = vld [vmem:[%s7 + $0xb0] sm:$0xff]
    %v2699 = vld [vmem:[%s7 + $0xb8] sm:$0xff]
    %v2700 = vld [vmem:[%s7 + $0xc0] sm:$0xff]
    %v2701 = vld [vmem:[%s7 + $0xc8] sm:$0xff]
    %v2702 = vld [vmem:[%s7 + $0xd0] sm:$0xff]
    %v2703 = vld [vmem:[%s7 + $0xd8] sm:$0xff]
    %v2704 = vld [vmem:[%s7 + $0xe0] sm:$0xff]
    %v2705 = vld [vmem:[%s7 + $0xe8] sm:$0xff]
    %v2706 = vld [vmem:[%s7 + $0xf0] sm:$0xff]
    %v2707 = vld [vmem:[%s7 + $0xf8] sm:$0xff]
    %v2708 = vld [vmem:[%s7 + $0x100] sm:$0xff]
    %v2709 = vld [vmem:[%s7 + $0x108] sm:$0xff]
    %v2710 = vld [vmem:[%s7 + $0x110] sm:$0xff]
    %v2711 = vld [vmem:[%s7 + $0x118] sm:$0xff]
    %v2712 = vld [vmem:[%s7 + $0x120] sm:$0xff]
    %v2713 = vld [vmem:[%s7 + $0x128] sm:$0xff]
    %v2714 = vld [vmem:[%s7 + $0x130] sm:$0xff]
    %v2715 = vld [vmem:[%s7 + $0x138] sm:$0xff]
    %v2716 = vld [vmem:[%s7 + $0x140] sm:$0xff]
    %v2717 = vld [vmem:[%s7 + $0x148] sm:$0xff]
    %v2718 = vld [vmem:[%s7 + $0x150] sm:$0xff]
    %v2719 = vld [vmem:[%s7 + $0x158] sm:$0xff]
    %v2720 = vld [vmem:[%s7 + $0x160] sm:$0xff]
    %v2721 = vld [vmem:[%s7 + $0x168] sm:$0xff]
    %v2722 = vld [vmem:[%s7 + $0x170] sm:$0xff]
    %v2723 = vld [vmem:[%s7 + $0x178] sm:$0xff]
    %v2724 = vld [vmem:[%s7 + $0x180] sm:$0xff]
    %v2725 = vld [vmem:[%s7 + $0x188] sm:$0xff]
    %v2726 = vld [vmem:[%s7 + $0x190] sm:$0xff]
    %v2727 = vld [vmem:[%s7 + $0x198] sm:$0xff]
    %v2728 = vld [vmem:[%s7 + $0x1a0] sm:$0xff]
    %v2729 = vld [vmem:[%s7 + $0x1a8] sm:$0xff]
    %v2730 = vld [vmem:[%s7 + $0x1b0] sm:$0xff]
    %v2731 = vld [vmem:[%s7 + $0x1b8] sm:$0xff]
    %v2732 = vld [vmem:[%s7 + $0x1c0] sm:$0xff]
    %v2733 = vld [vmem:[%s7 + $0x1c8] sm:$0xff]
    %v2734 = vld [vmem:[%s7 + $0x1d0] sm:$0xff]
    %v2735 = vld [vmem:[%s7 + $0x1d8] sm:$0xff]
    %v2736 = vld [vmem:[%s7 + $0x1e0] sm:$0xff]
    %v2737 = vld [vmem:[%s7 + $0x1e8] sm:$0xff]
    %v2738 = vld [vmem:[%s7 + $0x1f0] sm:$0xff]
    %v2739 = vld [vmem:[%s7 + $0x1f8] sm:$0xff]
    %v2740 = vld [vmem:[%s7 + $0x200] sm:$0xff]
    %v2741 = vld [vmem:[%s7 + $0x208] sm:$0xff]
    %v2742 = vld [vmem:[%s7 + $0x210] sm:$0xff]
    %v2743 = vld [vmem:[%s7 + $0x218] sm:$0xff]
    %v2744 = vld [vmem:[%s7 + $0x220] sm:$0xff]
    %v2745 = vld [vmem:[%s7 + $0x228] sm:$0xff]
    %v2746 = vld [vmem:[%s7 + $0x230] sm:$0xff]
    %v2747 = vld [vmem:[%s7 + $0x238] sm:$0xff]
    %v2748 = vld [vmem:[%s8] sm:$0x1]
    %v2750 = vperm.slane %v2748, 0
    %v2753 = vsel %vm1869, %v2340, 0
    %v2756 = vsel %vm1869, %v2341, 0
    %v2759 = vsel %vm1869, %v2342, 0
    %v2762 = vsel %vm1869, %v2343, 0
    %v2765 = vsel %vm1869, %v2344, 0
    %v2768 = vsel %vm1869, %v2345, 0
    %v2771 = vsel %vm1869, %v2346, 0
    %v2774 = vsel %vm1869, %v2347, 0
    %v2777 = vsel %vm1869, %v2348, 0
    %v2780 = vsel %vm1869, %v2349, 0
    %v2783 = vsel %vm1869, %v2350, 0
    %v2786 = vsel %vm1869, %v2351, 0
    %v2789 = vsel %vm1869, %v2352, 0
    %v2792 = vsel %vm1869, %v2353, 0
    %v2795 = vsel %vm1869, %v2354, 0
    %v2798 = vsel %vm1869, %v2355, 0
    %2800 = vmatpush.msra.mxu0 %v2691
    %2801 = vmatpush.msra.mxu0 %v2690
    %2802 = vmatpush.msra.mxu0 %v2689
    %2803 = vmatpush.msra.mxu0 %v2688
    %2804 = vmatpush.msra.mxu0 %v2687
    %2805 = vmatpush.msra.mxu0 %v2686
    %2806 = vmatpush.msra.mxu0 %v2685
    %2807 = vmatpush.msra.mxu0 %v2684
    %2808 = vmatpush.msra.mxu0 %v2683
    %2809 = vmatpush.msra.mxu0 %v2682
    %2810 = vmatpush.msra.mxu0 %v2681
    %2811 = vmatpush.msra.mxu0 %v2680
    %2812 = vmatpush.msra.mxu0 %v2679
    %2813 = vmatpush.msra.mxu0 %v2678
    %2814 = vmatpush.msra.mxu0 %v2677
    %2815 = vmatpush.msra.mxu0 %v2676
    %2816 = vmatmul.f32.gmra.mxu0 %v2612
    %v2817 = vpop.f32.mrf.mxu0
    %v2818 = vadd.f32 %v2750, %v2817
    %2819 = vmatmul.f32.gmra.mxu0 %v2613
    %v2820 = vpop.f32.mrf.mxu0
    %v2821 = vadd.f32 %v2750, %v2820
    %2822 = vmatmul.f32.gmra.mxu0 %v2614
    %v2823 = vpop.f32.mrf.mxu0
    %v2824 = vadd.f32 %v2750, %v2823
    %2825 = vmatmul.f32.gmra.mxu0 %v2615
    %v2826 = vpop.f32.mrf.mxu0
    %v2827 = vadd.f32 %v2750, %v2826
    %2828 = vmatmul.f32.gmra.mxu0 %v2616
    %v2829 = vpop.f32.mrf.mxu0
    %v2830 = vadd.f32 %v2750, %v2829
    %2831 = vmatmul.f32.gmra.mxu0 %v2617
    %v2832 = vpop.f32.mrf.mxu0
    %v2833 = vadd.f32 %v2750, %v2832
    %2834 = vmatmul.f32.gmra.mxu0 %v2618
    %v2835 = vpop.f32.mrf.mxu0
    %v2836 = vadd.f32 %v2750, %v2835
    %2837 = vmatmul.f32.gmra.mxu0 %v2619
    %v2838 = vpop.f32.mrf.mxu0
    %v2839 = vadd.f32 %v2750, %v2838
    %2840 = vmatmul.f32.gmra.mxu0 %v2620
    %v2841 = vpop.f32.mrf.mxu0
    %v2842 = vadd.f32 %v2750, %v2841
    %2843 = vmatmul.f32.gmra.mxu0 %v2621
    %v2844 = vpop.f32.mrf.mxu0
    %v2845 = vadd.f32 %v2750, %v2844
    %2846 = vmatmul.f32.gmra.mxu0 %v2622
    %v2847 = vpop.f32.mrf.mxu0
    %v2848 = vadd.f32 %v2750, %v2847
    %2849 = vmatmul.f32.gmra.mxu0 %v2623
    %v2850 = vpop.f32.mrf.mxu0
    %v2851 = vadd.f32 %v2750, %v2850
    %2852 = vmatmul.f32.gmra.mxu0 %v2624
    %v2853 = vpop.f32.mrf.mxu0
    %v2854 = vadd.f32 %v2750, %v2853
    %2855 = vmatmul.f32.gmra.mxu0 %v2625
    %v2856 = vpop.f32.mrf.mxu0
    %v2857 = vadd.f32 %v2750, %v2856
    %2858 = vmatmul.f32.gmra.mxu0 %v2626
    %v2859 = vpop.f32.mrf.mxu0
    %v2860 = vadd.f32 %v2750, %v2859
    %2861 = vmatmul.f32.gmra.mxu0 %v2627
    %v2862 = vpop.f32.mrf.mxu0
    %v2863 = vadd.f32 %v2750, %v2862
    %2864 = vdwg.mxu0
    %2865 = vmatpush.msra.mxu0 %v2707
    %2866 = vmatpush.msra.mxu0 %v2706
    %2867 = vmatpush.msra.mxu0 %v2705
    %2868 = vmatpush.msra.mxu0 %v2704
    %2869 = vmatpush.msra.mxu0 %v2703
    %2870 = vmatpush.msra.mxu0 %v2702
    %2871 = vmatpush.msra.mxu0 %v2701
    %2872 = vmatpush.msra.mxu0 %v2700
    %2873 = vmatpush.msra.mxu0 %v2699
    %2874 = vmatpush.msra.mxu0 %v2698
    %2875 = vmatpush.msra.mxu0 %v2697
    %2876 = vmatpush.msra.mxu0 %v2696
    %2877 = vmatpush.msra.mxu0 %v2695
    %2878 = vmatpush.msra.mxu0 %v2694
    %2879 = vmatpush.msra.mxu0 %v2693
    %2880 = vmatpush.msra.mxu0 %v2692
    %2881 = vmatmul.f32.gmra.mxu0 %v2628
    %v2882 = vpop.f32.mrf.mxu0
    %v2883 = vadd.f32 %v2818, %v2882
    %2884 = vmatmul.f32.gmra.mxu0 %v2629
    %v2885 = vpop.f32.mrf.mxu0
    %v2886 = vadd.f32 %v2821, %v2885
    %2887 = vmatmul.f32.gmra.mxu0 %v2630
    %v2888 = vpop.f32.mrf.mxu0
    %v2889 = vadd.f32 %v2824, %v2888
    %2890 = vmatmul.f32.gmra.mxu0 %v2631
    %v2891 = vpop.f32.mrf.mxu0
    %v2892 = vadd.f32 %v2827, %v2891
    %2893 = vmatmul.f32.gmra.mxu0 %v2632
    %v2894 = vpop.f32.mrf.mxu0
    %v2895 = vadd.f32 %v2830, %v2894
    %2896 = vmatmul.f32.gmra.mxu0 %v2633
    %v2897 = vpop.f32.mrf.mxu0
    %v2898 = vadd.f32 %v2833, %v2897
    %2899 = vmatmul.f32.gmra.mxu0 %v2634
    %v2900 = vpop.f32.mrf.mxu0
    %v2901 = vadd.f32 %v2836, %v2900
    %2902 = vmatmul.f32.gmra.mxu0 %v2635
    %v2903 = vpop.f32.mrf.mxu0
    %v2904 = vadd.f32 %v2839, %v2903
    %2905 = vmatmul.f32.gmra.mxu0 %v2636
    %v2906 = vpop.f32.mrf.mxu0
    %v2907 = vadd.f32 %v2842, %v2906
    %2908 = vmatmul.f32.gmra.mxu0 %v2637
    %v2909 = vpop.f32.mrf.mxu0
    %v2910 = vadd.f32 %v2845, %v2909
    %2911 = vmatmul.f32.gmra.mxu0 %v2638
    %v2912 = vpop.f32.mrf.mxu0
    %v2913 = vadd.f32 %v2848, %v2912
    %2914 = vmatmul.f32.gmra.mxu0 %v2639
    %v2915 = vpop.f32.mrf.mxu0
    %v2916 = vadd.f32 %v2851, %v2915
    %2917 = vmatmul.f32.gmra.mxu0 %v2640
    %v2918 = vpop.f32.mrf.mxu0
    %v2919 = vadd.f32 %v2854, %v2918
    %2920 = vmatmul.f32.gmra.mxu0 %v2641
    %v2921 = vpop.f32.mrf.mxu0
    %v2922 = vadd.f32 %v2857, %v2921
    %2923 = vmatmul.f32.gmra.mxu0 %v2642
    %v2924 = vpop.f32.mrf.mxu0
    %v2925 = vadd.f32 %v2860, %v2924
    %2926 = vmatmul.f32.gmra.mxu0 %v2643
    %v2927 = vpop.f32.mrf.mxu0
    %v2928 = vadd.f32 %v2863, %v2927
    %2929 = vdwg.mxu0
    %2930 = vmatpush.msra.mxu0 %v2723
    %2931 = vmatpush.msra.mxu0 %v2722
    %2932 = vmatpush.msra.mxu0 %v2721
    %2933 = vmatpush.msra.mxu0 %v2720
    %2934 = vmatpush.msra.mxu0 %v2719
    %2935 = vmatpush.msra.mxu0 %v2718
    %2936 = vmatpush.msra.mxu0 %v2717
    %2937 = vmatpush.msra.mxu0 %v2716
    %2938 = vmatpush.msra.mxu0 %v2715
    %2939 = vmatpush.msra.mxu0 %v2714
    %2940 = vmatpush.msra.mxu0 %v2713
    %2941 = vmatpush.msra.mxu0 %v2712
    %2942 = vmatpush.msra.mxu0 %v2711
    %2943 = vmatpush.msra.mxu0 %v2710
    %2944 = vmatpush.msra.mxu0 %v2709
    %2945 = vmatpush.msra.mxu0 %v2708
    %2946 = vmatmul.f32.gmra.mxu0 %v2644
    %v2947 = vpop.f32.mrf.mxu0
    %v2948 = vadd.f32 %v2883, %v2947
    %2949 = vmatmul.f32.gmra.mxu0 %v2645
    %v2950 = vpop.f32.mrf.mxu0
    %v2951 = vadd.f32 %v2886, %v2950
    %2952 = vmatmul.f32.gmra.mxu0 %v2646
    %v2953 = vpop.f32.mrf.mxu0
    %v2954 = vadd.f32 %v2889, %v2953
    %2955 = vmatmul.f32.gmra.mxu0 %v2647
    %v2956 = vpop.f32.mrf.mxu0
    %v2957 = vadd.f32 %v2892, %v2956
    %2958 = vmatmul.f32.gmra.mxu0 %v2648
    %v2959 = vpop.f32.mrf.mxu0
    %v2960 = vadd.f32 %v2895, %v2959
    %2961 = vmatmul.f32.gmra.mxu0 %v2649
    %v2962 = vpop.f32.mrf.mxu0
    %v2963 = vadd.f32 %v2898, %v2962
    %2964 = vmatmul.f32.gmra.mxu0 %v2650
    %v2965 = vpop.f32.mrf.mxu0
    %v2966 = vadd.f32 %v2901, %v2965
    %2967 = vmatmul.f32.gmra.mxu0 %v2651
    %v2968 = vpop.f32.mrf.mxu0
    %v2969 = vadd.f32 %v2904, %v2968
    %2970 = vmatmul.f32.gmra.mxu0 %v2652
    %v2971 = vpop.f32.mrf.mxu0
    %v2972 = vadd.f32 %v2907, %v2971
    %2973 = vmatmul.f32.gmra.mxu0 %v2653
    %v2974 = vpop.f32.mrf.mxu0
    %v2975 = vadd.f32 %v2910, %v2974
    %2976 = vmatmul.f32.gmra.mxu0 %v2654
    %v2977 = vpop.f32.mrf.mxu0
    %v2978 = vadd.f32 %v2913, %v2977
    %2979 = vmatmul.f32.gmra.mxu0 %v2655
    %v2980 = vpop.f32.mrf.mxu0
    %v2981 = vadd.f32 %v2916, %v2980
    %2982 = vmatmul.f32.gmra.mxu0 %v2656
    %v2983 = vpop.f32.mrf.mxu0
    %v2984 = vadd.f32 %v2919, %v2983
    %2985 = vmatmul.f32.gmra.mxu0 %v2657
    %v2986 = vpop.f32.mrf.mxu0
    %v2987 = vadd.f32 %v2922, %v2986
    %2988 = vmatmul.f32.gmra.mxu0 %v2658
    %v2989 = vpop.f32.mrf.mxu0
    %v2990 = vadd.f32 %v2925, %v2989
    %2991 = vmatmul.f32.gmra.mxu0 %v2659
    %v2992 = vpop.f32.mrf.mxu0
    %v2993 = vadd.f32 %v2928, %v2992
    %2994 = vdwg.mxu0
    %2995 = vmatpush.msra.mxu0 %v2739
    %2996 = vmatpush.msra.mxu0 %v2738
    %2997 = vmatpush.msra.mxu0 %v2737
    %2998 = vmatpush.msra.mxu0 %v2736
    %2999 = vmatpush.msra.mxu0 %v2735
    %3000 = vmatpush.msra.mxu0 %v2734
    %3001 = vmatpush.msra.mxu0 %v2733
    %3002 = vmatpush.msra.mxu0 %v2732
    %3003 = vmatpush.msra.mxu0 %v2731
    %3004 = vmatpush.msra.mxu0 %v2730
    %3005 = vmatpush.msra.mxu0 %v2729
    %3006 = vmatpush.msra.mxu0 %v2728
    %3007 = vmatpush.msra.mxu0 %v2727
    %3008 = vmatpush.msra.mxu0 %v2726
    %3009 = vmatpush.msra.mxu0 %v2725
    %3010 = vmatpush.msra.mxu0 %v2724
    %3011 = vmatmul.f32.gmra.mxu0 %v2660
    %v3012 = vpop.f32.mrf.mxu0
    %v3013 = vadd.f32 %v2948, %v3012
    %3014 = vmatmul.f32.gmra.mxu0 %v2661
    %v3015 = vpop.f32.mrf.mxu0
    %v3016 = vadd.f32 %v2951, %v3015
    %3017 = vmatmul.f32.gmra.mxu0 %v2662
    %v3018 = vpop.f32.mrf.mxu0
    %v3019 = vadd.f32 %v2954, %v3018
    %3020 = vmatmul.f32.gmra.mxu0 %v2663
    %v3021 = vpop.f32.mrf.mxu0
    %v3022 = vadd.f32 %v2957, %v3021
    %3023 = vmatmul.f32.gmra.mxu0 %v2664
    %v3024 = vpop.f32.mrf.mxu0
    %v3025 = vadd.f32 %v2960, %v3024
    %3026 = vmatmul.f32.gmra.mxu0 %v2665
    %v3027 = vpop.f32.mrf.mxu0
    %v3028 = vadd.f32 %v2963, %v3027
    %3029 = vmatmul.f32.gmra.mxu0 %v2666
    %v3030 = vpop.f32.mrf.mxu0
    %v3031 = vadd.f32 %v2966, %v3030
    %3032 = vmatmul.f32.gmra.mxu0 %v2667
    %v3033 = vpop.f32.mrf.mxu0
    %v3034 = vadd.f32 %v2969, %v3033
    %3035 = vmatmul.f32.gmra.mxu0 %v2668
    %v3036 = vpop.f32.mrf.mxu0
    %v3037 = vadd.f32 %v2972, %v3036
    %3038 = vmatmul.f32.gmra.mxu0 %v2669
    %v3039 = vpop.f32.mrf.mxu0
    %v3040 = vadd.f32 %v2975, %v3039
    %3041 = vmatmul.f32.gmra.mxu0 %v2670
    %v3042 = vpop.f32.mrf.mxu0
    %v3043 = vadd.f32 %v2978, %v3042
    %3044 = vmatmul.f32.gmra.mxu0 %v2671
    %v3045 = vpop.f32.mrf.mxu0
    %v3046 = vadd.f32 %v2981, %v3045
    %3047 = vmatmul.f32.gmra.mxu0 %v2672
    %v3048 = vpop.f32.mrf.mxu0
    %v3049 = vadd.f32 %v2984, %v3048
    %3050 = vmatmul.f32.gmra.mxu0 %v2673
    %v3051 = vpop.f32.mrf.mxu0
    %v3052 = vadd.f32 %v2987, %v3051
    %3053 = vmatmul.f32.gmra.mxu0 %v2674
    %v3054 = vpop.f32.mrf.mxu0
    %v3055 = vadd.f32 %v2990, %v3054
    %3056 = vmatmul.f32.gmra.mxu0 %v2675
    %v3057 = vpop.f32.mrf.mxu0
    %v3058 = vadd.f32 %v2993, %v3057
    %3059 = vdwg.mxu0
    %3060 = vmatpush.msra.mxu0 0.0
    %3061 = vmatpush.msra.mxu0 0.0
    %3062 = vmatpush.msra.mxu0 0.0
    %3063 = vmatpush.msra.mxu0 0.0
    %3064 = vmatpush.msra.mxu0 0.0
    %3065 = vmatpush.msra.mxu0 0.0
    %3066 = vmatpush.msra.mxu0 0.0
    %3067 = vmatpush.msra.mxu0 0.0
    %3068 = vmatpush.msra.mxu0 %v2747
    %3069 = vmatpush.msra.mxu0 %v2746
    %3070 = vmatpush.msra.mxu0 %v2745
    %3071 = vmatpush.msra.mxu0 %v2744
    %3072 = vmatpush.msra.mxu0 %v2743
    %3073 = vmatpush.msra.mxu0 %v2742
    %3074 = vmatpush.msra.mxu0 %v2741
    %3075 = vmatpush.msra.mxu0 %v2740
    %3076 = vmatmul.f32.gmra.mxu0 %v2753
    %v3077 = vpop.f32.mrf.mxu0
    %v3078 = vadd.f32 %v3013, %v3077
    %3079 = vmatmul.f32.gmra.mxu0 %v2756
    %v3080 = vpop.f32.mrf.mxu0
    %v3081 = vadd.f32 %v3016, %v3080
    %3082 = vmatmul.f32.gmra.mxu0 %v2759
    %v3083 = vpop.f32.mrf.mxu0
    %v3084 = vadd.f32 %v3019, %v3083
    %3085 = vmatmul.f32.gmra.mxu0 %v2762
    %v3086 = vpop.f32.mrf.mxu0
    %v3087 = vadd.f32 %v3022, %v3086
    %3088 = vmatmul.f32.gmra.mxu0 %v2765
    %v3089 = vpop.f32.mrf.mxu0
    %v3090 = vadd.f32 %v3025, %v3089
    %3091 = vmatmul.f32.gmra.mxu0 %v2768
    %v3092 = vpop.f32.mrf.mxu0
    %v3093 = vadd.f32 %v3028, %v3092
    %3094 = vmatmul.f32.gmra.mxu0 %v2771
    %v3095 = vpop.f32.mrf.mxu0
    %v3096 = vadd.f32 %v3031, %v3095
    %3097 = vmatmul.f32.gmra.mxu0 %v2774
    %v3098 = vpop.f32.mrf.mxu0
    %v3099 = vadd.f32 %v3034, %v3098
    %3100 = vmatmul.f32.gmra.mxu0 %v2777
    %v3101 = vpop.f32.mrf.mxu0
    %v3102 = vadd.f32 %v3037, %v3101
    %3103 = vmatmul.f32.gmra.mxu0 %v2780
    %v3104 = vpop.f32.mrf.mxu0
    %v3105 = vadd.f32 %v3040, %v3104
    %3106 = vmatmul.f32.gmra.mxu0 %v2783
    %v3107 = vpop.f32.mrf.mxu0
    %v3108 = vadd.f32 %v3043, %v3107
    %3109 = vmatmul.f32.gmra.mxu0 %v2786
    %v3110 = vpop.f32.mrf.mxu0
    %v3111 = vadd.f32 %v3046, %v3110
    %3112 = vmatmul.f32.gmra.mxu0 %v2789
    %v3113 = vpop.f32.mrf.mxu0
    %v3114 = vadd.f32 %v3049, %v3113
    %3115 = vmatmul.f32.gmra.mxu0 %v2792
    %v3116 = vpop.f32.mrf.mxu0
    %v3117 = vadd.f32 %v3052, %v3116
    %3118 = vmatmul.f32.gmra.mxu0 %v2795
    %v3119 = vpop.f32.mrf.mxu0
    %v3120 = vadd.f32 %v3055, %v3119
    %3121 = vmatmul.f32.gmra.mxu0 %v2798
    %v3122 = vpop.f32.mrf.mxu0
    %v3123 = vadd.f32 %v3058, %v3122
    %3124 = vdwg.mxu0
    %v3125 = vmax.f32 %v3078, 0.0
    %v3126 = vmax.f32 %v3081, 0.0
    %v3127 = vmax.f32 %v3084, 0.0
    %v3128 = vmax.f32 %v3087, 0.0
    %v3129 = vmax.f32 %v3090, 0.0
    %v3130 = vmax.f32 %v3093, 0.0
    %v3131 = vmax.f32 %v3096, 0.0
    %v3132 = vmax.f32 %v3099, 0.0
    %v3133 = vmax.f32 %v3102, 0.0
    %v3134 = vmax.f32 %v3105, 0.0
    %v3135 = vmax.f32 %v3108, 0.0
    %v3136 = vmax.f32 %v3111, 0.0
    %v3137 = vmax.f32 %v3114, 0.0
    %v3138 = vmax.f32 %v3117, 0.0
    %v3139 = vmax.f32 %v3120, 0.0
    %v3140 = vmax.f32 %v3123, 0.0
    %v3141 = vsel %vm1869, %v3125, -inf
    %v3142 = vsel %vm1869, %v3126, -inf
    %v3143 = vmax.f32 %v3141, %v3142
    %v3144 = vsel %vm1869, %v3127, -inf
    %v3145 = vsel %vm1869, %v3128, -inf
    %v3146 = vmax.f32 %v3144, %v3145
    %v3147 = vsel %vm1869, %v3129, -inf
    %v3148 = vsel %vm1869, %v3130, -inf
    %v3149 = vmax.f32 %v3147, %v3148
    %v3150 = vsel %vm1869, %v3131, -inf
    %v3151 = vsel %vm1869, %v3132, -inf
    %v3152 = vmax.f32 %v3150, %v3151
    %v3153 = vsel %vm1869, %v3133, -inf
    %v3154 = vsel %vm1869, %v3134, -inf
    %v3155 = vmax.f32 %v3153, %v3154
    %v3156 = vsel %vm1869, %v3135, -inf
    %v3157 = vsel %vm1869, %v3136, -inf
    %v3158 = vmax.f32 %v3156, %v3157
    %v3159 = vsel %vm1869, %v3137, -inf
    %v3160 = vsel %vm1869, %v3138, -inf
    %v3161 = vmax.f32 %v3159, %v3160
    %v3162 = vsel %vm1869, %v3139, -inf
    %v3163 = vsel %vm1869, %v3140, -inf
    %v3164 = vmax.f32 %v3162, %v3163
    %v3165 = vld [vmem:[%s13] sm:$0xff]
    %v3166 = vld [vmem:[%s13 + $0x8] sm:$0xff]
    %v3167 = vld [vmem:[%s13 + $0x10] sm:$0xff]
    %v3168 = vld [vmem:[%s13 + $0x18] sm:$0xff]
    %v3170 = vsel %vm1869, %v3165, 0
    %v3173 = vsel %vm1869, %v3166, 0
    %v3176 = vsel %vm1869, %v3167, 0
    %v3179 = vsel %vm1869, %v3168, 0
    %3181 = vmatpush.msra.mxu0 0.0
    %3182 = vmatpush.msra.mxu0 0.0
    %3183 = vmatpush.msra.mxu0 0.0
    %3184 = vmatpush.msra.mxu0 0.0
    %3185 = vmatpush.msra.mxu0 0.0
    %3186 = vmatpush.msra.mxu0 0.0
    %3187 = vmatpush.msra.mxu0 0.0
    %3188 = vmatpush.msra.mxu0 0.0
    %3189 = vmatpush.msra.mxu0 %v3164
    %3190 = vmatpush.msra.mxu0 %v3161
    %3191 = vmatpush.msra.mxu0 %v3158
    %3192 = vmatpush.msra.mxu0 %v3155
    %3193 = vmatpush.msra.mxu0 %v3152
    %3194 = vmatpush.msra.mxu0 %v3149
    %3195 = vmatpush.msra.mxu0 %v3146
    %3196 = vmatpush.msra.mxu0 %v3143
    %3197 = vmatmul.f32.gmra.mxu0 %v3170
    %v3198 = vpop.f32.mrf.mxu0
    %v3199 = vadd.f32 0.0, %v3198
    %3200 = vmatmul.f32.gmra.mxu0 %v3173
    %v3201 = vpop.f32.mrf.mxu0
    %v3202 = vadd.f32 0.0, %v3201
    %3203 = vmatmul.f32.gmra.mxu0 %v3176
    %v3204 = vpop.f32.mrf.mxu0
    %v3205 = vadd.f32 0.0, %v3204
    %3206 = vmatmul.f32.gmra.mxu0 %v3179
    %v3207 = vpop.f32.mrf.mxu0
    %v3208 = vadd.f32 0.0, %v3207
    %3209 = vdwg.mxu0
    %v3210 = vld [vmem:[%s14] sm:$0xff]
    %v3211 = vld [vmem:[%s14 + $0x8] sm:$0xff]
    %v3212 = vld [vmem:[%s14 + $0x10] sm:$0xff]
    %v3213 = vld [vmem:[%s14 + $0x18] sm:$0xff]
    %v3215 = vsel %vm1869, %v3210, 0
    %v3218 = vsel %vm1869, %v3211, 0
    %v3221 = vsel %vm1869, %v3212, 0
    %v3224 = vsel %vm1869, %v3213, 0
    %3226 = vmatpush.msra.mxu0 0.0
    %3227 = vmatpush.msra.mxu0 0.0
    %3228 = vmatpush.msra.mxu0 0.0
    %3229 = vmatpush.msra.mxu0 0.0
    %3230 = vmatpush.msra.mxu0 0.0
    %3231 = vmatpush.msra.mxu0 0.0
    %3232 = vmatpush.msra.mxu0 0.0
    %3233 = vmatpush.msra.mxu0 0.0
    %3234 = vmatpush.msra.mxu0 %v3164
    %3235 = vmatpush.msra.mxu0 %v3161
    %3236 = vmatpush.msra.mxu0 %v3158
    %3237 = vmatpush.msra.mxu0 %v3155
    %3238 = vmatpush.msra.mxu0 %v3152
    %3239 = vmatpush.msra.mxu0 %v3149
    %3240 = vmatpush.msra.mxu0 %v3146
    %3241 = vmatpush.msra.mxu0 %v3143
    %3242 = vmatmul.f32.gmra.mxu0 %v3215
    %v3243 = vpop.f32.mrf.mxu0
    %v3244 = vadd.f32 0.0, %v3243
    %3245 = vmatmul.f32.gmra.mxu0 %v3218
    %v3246 = vpop.f32.mrf.mxu0
    %v3247 = vadd.f32 0.0, %v3246
    %3248 = vmatmul.f32.gmra.mxu0 %v3221
    %v3249 = vpop.f32.mrf.mxu0
    %v3250 = vadd.f32 0.0, %v3249
    %3251 = vmatmul.f32.gmra.mxu0 %v3224
    %v3252 = vpop.f32.mrf.mxu0
    %v3253 = vadd.f32 0.0, %v3252
    %3254 = vdwg.mxu0
    %v3255 = vmax.f32 %v3199, %v3244
    %v3256 = vmax.f32 %v3202, %v3247
    %v3257 = vmax.f32 %v3205, %v3250
    %v3258 = vmax.f32 %v3208, %v3253
    %v3259 = vld [vmem:[%s15] sm:$0x3]
    %v3261 = vsel %vm594, %v3259, 0
    %3263 = vmatpush.msra.mxu0 0.0
    %3264 = vmatpush.msra.mxu0 0.0
    %3265 = vmatpush.msra.mxu0 0.0
    %3266 = vmatpush.msra.mxu0 0.0
    %3267 = vmatpush.msra.mxu0 0.0
    %3268 = vmatpush.msra.mxu0 0.0
    %3269 = vmatpush.msra.mxu0 0.0
    %3270 = vmatpush.msra.mxu0 0.0
    %3271 = vmatpush.msra.mxu0 0.0
    %3272 = vmatpush.msra.mxu0 0.0
    %3273 = vmatpush.msra.mxu0 0.0
    %3274 = vmatpush.msra.mxu0 0.0
    %3275 = vmatpush.msra.mxu0 %v3258
    %3276 = vmatpush.msra.mxu0 %v3257
    %3277 = vmatpush.msra.mxu0 %v3256
    %3278 = vmatpush.msra.mxu0 %v3255
    %3279 = vmatmul.f32.gmra.mxu0 %v3261
    %v3280 = vpop.f32.mrf.mxu0
    %v3281 = vadd.f32 0.0, %v3280
    %3282 = vdwg.mxu0
    %v3283 = vld [vmem:[%s9] sm:$0xff]
    %v3284 = vld [vmem:[%s9 + $0x8] sm:$0xff]
    %v3285 = vld [vmem:[%s9 + $0x10] sm:$0xff]
    %v3286 = vld [vmem:[%s9 + $0x18] sm:$0xff]
    %v3287 = vld [vmem:[%s9 + $0x20] sm:$0xff]
    %v3288 = vld [vmem:[%s9 + $0x28] sm:$0xff]
    %v3289 = vld [vmem:[%s9 + $0x30] sm:$0xff]
    %v3290 = vld [vmem:[%s9 + $0x38] sm:$0xff]
    %v3291 = vld [vmem:[%s10] sm:$0x1]
    %v3293 = vperm.slane %v3291, 0
    %v3296 = vsel %vm1869, %v3281, 0
    %3298 = vmatpush.msra.mxu0 0.0
    %3299 = vmatpush.msra.mxu0 0.0
    %3300 = vmatpush.msra.mxu0 0.0
    %3301 = vmatpush.msra.mxu0 0.0
    %3302 = vmatpush.msra.mxu0 0.0
    %3303 = vmatpush.msra.mxu0 0.0
    %3304 = vmatpush.msra.mxu0 0.0
    %3305 = vmatpush.msra.mxu0 0.0
    %3306 = vmatpush.msra.mxu0 %v3290
    %3307 = vmatpush.msra.mxu0 %v3289
    %3308 = vmatpush.msra.mxu0 %v3288
    %3309 = vmatpush.msra.mxu0 %v3287
    %3310 = vmatpush.msra.mxu0 %v3286
    %3311 = vmatpush.msra.mxu0 %v3285
    %3312 = vmatpush.msra.mxu0 %v3284
    %3313 = vmatpush.msra.mxu0 %v3283
    %3314 = vmatmul.f32.gmra.mxu0 %v3296
    %v3315 = vpop.f32.mrf.mxu0
    %v3316 = vadd.f32 %v3293, %v3315
    %3317 = vdwg.mxu0
    %vm3318 = vcmask 25600
    %3319 = vst.msk [vmem:[#allocation4] sm:$0x3] %vm3318, %v3316
    // Predicated region
    $region66: #{tpu_custom_call.1} parent=1 // pred_check
      _
    $region67: #{tpu_custom_call.1} parent=1 // pred_check_branch
      %3321 = sbr.rel (0) target = $region69
    $region68: #{tpu_custom_call.1} parent=1 // pred_region
      %3323 = vsyncadd [#allocation5], 0
      %s3325 = sshll.u32 [#allocation4], 4
      %s3326 = int_to_ptr.vmem [resolvable:$true] %s3325
      %s3327 = sshll.u32 %s16, 4
      %s3328 = int_to_ptr.hbm [resolvable:$true] %s3327
      %3330 = dma.vmem_to_hbm [thread:$0]  %s3326, 32, %s3328, [#allocation5]
    $region69: #{tpu_custom_call.1} parent=1 // pred_fallthru
      _
    // Predicated region
    $region70: #{tpu_custom_call.1} parent=1 // pred_check
      _
    $region71: #{tpu_custom_call.1} parent=1 // pred_check_branch
      %3332 = sbr.rel (0) target = $region73
    $region72: #{tpu_custom_call.1} parent=1 // pred_region
      %3334 = dma.done [#allocation5], 32
    $region73: #{tpu_custom_call.1} parent=1 // pred_fallthru
      _
    %3335 = vsyncpa [#allocation5], 1

</llo_original>
